<compile_context>
chip_gen: v7x
topology: tpu7x:2x2x1
jax: 0.10.0
libtpu: 0.0.40
codegen_flags: <defaults>
</compile_context>

<pallas_src>
import functools

import jax
import jax.numpy as jnp
from jax.experimental import pallas as pl
from jax.experimental.pallas import tpu as pltpu


# ----------------------------- kernel --------------------------------------- #

def _fused_mhsa_kernel(x_ref, pos_ref, wqkv_ref, wo_ref, g_ref, b_ref, o_ref,
                       *, num_head, d_head, eps):
    """One batch-block per grid step.

    x_ref   : (B_blk, S, D)   activations for this batch-block
    pos_ref : (S, D)          positional embedding (shared, resident)
    wqkv_ref: (D, 3*H*Dh)     pre-transposed QKV weight, Q columns pre-scaled
    wo_ref  : (H*Dh, D)       pre-transposed output weight (resident)
    g_ref   : (1, D)          LayerNorm gamma (f32)
    b_ref   : (1, D)          LayerNorm beta  (f32)
    o_ref   : (B_blk, S, D)   output block (lane-dense, last dim = d_model)
    """
    b_blk, seq, d_model = x_ref.shape
    hd = num_head * d_head
    rows = b_blk * seq

    # x + pos_emb (memory=None path); also the residual input to the LayerNorm.
    xp = x_ref[...] + pos_ref[...]                         # (B_blk, S, D)
    xf = xp.reshape(rows, d_model)                         # free: collapse leading dims

    # Fused QKV projection: one fat MXU matmul per grid step, f32 accumulation.
    qkv = jnp.dot(xf, wqkv_ref[...],
                  preferred_element_type=jnp.float32)      # (rows, 3*hd)
    qkv = qkv.astype(x_ref.dtype).reshape(b_blk, seq, 3 * hd)

    # Per-head attention.  The head loop is a small static unroll of 32-lane
    # slices, but every matmul inside it is batched over the batch-block with
    # the leading-batch dot_general pattern, so MXU pushes stay contiguous.
    # TODO(synk): fold the head dim into the dot_general batch as well
    #   ((B_blk*H, S, Dh) operands) once Mosaic supports the (0, 2, 1, 3)
    #   relayout / einshape needed for d_head < 128; that removes the remaining
    #   sub-128-lane slice + concat shuffle work flagged in the review.
    # TODO(synk): for long sequences (S >~ 1k) add a flash-style KV grid axis
    #   ("arbitrary", online-softmax m/l/acc scratch) so the (S, S) score tile
    #   never materializes -- mandatory earlier on v7x (64 MiB VMEM).
    av_heads = []
    for h in range(num_head):
        q = qkv[..., h * d_head:(h + 1) * d_head]                   # (B_blk, S, Dh)
        k = qkv[..., hd + h * d_head:hd + (h + 1) * d_head]         # scale already in W_q
        v = qkv[..., 2 * hd + h * d_head:2 * hd + (h + 1) * d_head]

        # scores = q @ k^T batched over the batch-block (no materialized k.T).
        s = jnp.einsum("bqd,bkd->bqk", q, k,
                       preferred_element_type=jnp.float32)          # (B_blk, S, S)

        # softmax over the key axis (== torch softmax over dim 1 of 'ijbn'), f32.
        s = s - jnp.max(s, axis=-1, keepdims=True)
        p = jnp.exp(s)
        denom = jnp.sum(p, axis=-1, keepdims=True)                  # (B_blk, S, 1)
        inv = pl.reciprocal(denom, approx=True)                     # EUP slot
        inv = inv * (2.0 - denom * inv)        # one Newton step, near-f32 accuracy
        p = p * inv

        av_heads.append(jnp.einsum("bqk,bkd->bqd", p.astype(v.dtype), v,
                                   preferred_element_type=jnp.float32))

    av = jnp.concatenate(av_heads, axis=-1)                # (B_blk, S, hd) f32
    av = av.reshape(rows, hd).astype(wo_ref.dtype)

    # Output projection + residual + LayerNorm (f32 math, lane-dense last dim).
    attn_out = jnp.dot(av, wo_ref[...],
                       preferred_element_type=jnp.float32)          # (rows, D)
    # TODO(synk): dropout on attn_out is eval-mode identity here; training-mode
    #   dropout would use pltpu.prng_seed / pltpu.prng_random_bits.
    y = xf.astype(jnp.float32) + attn_out
    mu = jnp.mean(y, axis=-1, keepdims=True)
    var = jnp.mean(jnp.square(y - mu), axis=-1, keepdims=True)
    yn = (y - mu) * jax.lax.rsqrt(var + eps)
    out = yn * g_ref[...] + b_ref[...]
    o_ref[...] = out.astype(o_ref.dtype).reshape(b_blk, seq, d_model)


# ----------------------------- wrappers -------------------------------------- #

def multihead_self_attention_batch_first(xb, pos2d, params, *, num_head, d_head,
                                         compute_dtype=None, eps=1e-5):
    """Core entry point. xb: (B, S, D), pos2d: (S, D). Returns (B, S, D).

    No layout transposes anywhere on this path -- keep the surrounding model
    batch-first to pay zero boundary-layout HBM traffic (review item).
    """
    batch, seq_len, d_model = xb.shape
    hd = num_head * d_head
    out_dtype = xb.dtype

    # >= 2 grid steps keep both v7x TensorCores busy; 2 fat steps (not `batch`
    # thin ones) removes the per-step overhead that dominated at these shapes.
    if batch % 2 == 0 and batch >= 2:
        b_blk = batch // 2
    else:
        b_blk = 1
    num_steps = batch // b_blk

    # Optional bf16 MXU operands (v6e/v7x fast path); accumulation and all
    # softmax / LayerNorm math stay f32 inside the kernel.
    cdt = compute_dtype if compute_dtype is not None else xb.dtype
    xb_c = xb.astype(cdt)
    pos_c = pos2d.astype(cdt)
    wqkv_c = params["w_qkv_t"].astype(cdt)
    wo_c = params["w_o_t"].astype(cdt)
    gamma = params["gamma"].reshape(1, d_model).astype(jnp.float32)
    beta = params["beta"].reshape(1, d_model).astype(jnp.float32)

    kernel = functools.partial(_fused_mhsa_kernel, num_head=num_head,
                               d_head=d_head, eps=eps)

    # NOTE: pos / weights / gamma / beta have constant index_maps (resident
    # blocks).  TODO(synk): mark them pipeline_mode=pl.Buffered(1) once the
    # single-buffering hint becomes load-bearing (large d_model on v7x 64 MiB VMEM).
    return pl.pallas_call(
        kernel,
        out_shape=jax.ShapeDtypeStruct((batch, seq_len, d_model), out_dtype),
        grid=(num_steps,),
        in_specs=[
            pl.BlockSpec((b_blk, seq_len, d_model), lambda i: (i, 0, 0)),  # x block
            pl.BlockSpec((seq_len, d_model), lambda i: (0, 0)),            # pos (resident)
            pl.BlockSpec((d_model, 3 * hd), lambda i: (0, 0)),             # w_qkv^T (resident)
            pl.BlockSpec((hd, d_model), lambda i: (0, 0)),                 # w_o^T   (resident)
            pl.BlockSpec((1, d_model), lambda i: (0, 0)),                  # gamma
            pl.BlockSpec((1, d_model), lambda i: (0, 0)),                  # beta
        ],
        out_specs=pl.BlockSpec((b_blk, seq_len, d_model), lambda i: (i, 0, 0)),
        compiler_params=pltpu.CompilerParams(
            dimension_semantics=("parallel",),     # 2 steps -> both v7x TCs
            vmem_limit_bytes=32 * 1024 * 1024,     # explicit; re-derive for big S/D
        ),
    )(xb_c, pos_c, wqkv_c, wo_c, gamma, beta)


def multihead_self_attention(x, pos_emb, params, *, num_head, d_head,
                             compute_dtype=None):
    """Module-interface adapter: x (S, B, D), pos_emb (S, 1, D) -> (S, B, D).

    The two boundary transposes below are the ONLY layout passes left; a
    batch-first caller should call multihead_self_attention_batch_first directly.
    """
    seq_len, batch, d_model = x.shape
    xb = jnp.transpose(x, (1, 0, 2))                        # (B, S, D)
    pos2d = pos_emb[-seq_len:].reshape(seq_len, d_model)    # (S, D)
    ob = multihead_self_attention_batch_first(
        xb, pos2d, params, num_head=num_head, d_head=d_head,
        compute_dtype=compute_dtype)
    return jnp.transpose(ob, (1, 0, 2))


def make_params(w_qkv, w_o, gamma, beta, *, num_head, d_head):
    """Pre-transpose torch Linear weights into matmul layout and fold the
    1/sqrt(d_head) attention scale into the Q columns (one-time, zero-cost)."""
    hd = num_head * d_head
    scale = 1.0 / d_head ** 0.5
    w_qkv_t = jnp.asarray(w_qkv).T                          # (D, 3*H*Dh)
    w_qkv_t = w_qkv_t.at[:, :hd].multiply(scale)            # fold attn scale into W_q
    return {
        "w_qkv_t": w_qkv_t,
        "w_o_t": jnp.asarray(w_o).T,                        # (H*Dh, D)
        "gamma": jnp.asarray(gamma),
        "beta": jnp.asarray(beta),
    }


# ----------------------------- reference ------------------------------------ #

def reference(x, pos_emb, w_qkv, w_o, gamma, beta, *, num_head, d_head, eps=1e-5):
    S, B, D = x.shape
    xp = x + pos_emb[-S:]
    h = xp @ w_qkv.T
    q, k, v = jnp.split(h, 3, axis=-1)
    q = q.reshape(S, B, num_head, d_head)
    k = k.reshape(S, B, num_head, d_head)
    v = v.reshape(S, B, num_head, d_head)
    s = jnp.einsum("ibnd,jbnd->ijbn", q, k) * (1.0 / d_head ** 0.5)
    p = jax.nn.softmax(s, axis=1)
    av = jnp.einsum("ijbn,jbnd->ibnd", p, v).reshape(S, B, num_head * d_head)
    y = xp + av @ w_o.T
    mu = y.mean(-1, keepdims=True)
    var = ((y - mu) ** 2).mean(-1, keepdims=True)
    return (y - mu) / jnp.sqrt(var + eps) * gamma + beta


# ----------------------------- main ----------------------------------------- #

if __name__ == "__main__":
    num_head, d_head, d_model = 4, 32, 128       # small but (8,128)-aligned
    seq_len, batch = 64, 4

    key = jax.random.PRNGKey(0)
    kx, kp, kq, ko = jax.random.split(key, 4)

    x = jax.random.normal(kx, (seq_len, batch, d_model), dtype=jnp.float32)
    pos_emb = jax.random.normal(kp, (seq_len, 1, d_model), dtype=jnp.float32)

    # torch Linear(bias=False) layouts + init bounds
    bound_qkv = 1.0 / (d_model ** 0.5)
    bound_o = 1.0 / ((num_head * d_head) ** 0.5)
    w_qkv = jax.random.uniform(kq, (3 * num_head * d_head, d_model),
                               minval=-bound_qkv, maxval=bound_qkv, dtype=jnp.float32)
    w_o = jax.random.uniform(ko, (d_model, num_head * d_head),
                             minval=-bound_o, maxval=bound_o, dtype=jnp.float32)
    gamma = jnp.ones((d_model,), jnp.float32)     # nn.LayerNorm default weight
    beta = jnp.zeros((d_model,), jnp.float32)     # nn.LayerNorm default bias

    params = make_params(w_qkv, w_o, gamma, beta, num_head=num_head, d_head=d_head)

    ref = reference(x, pos_emb, w_qkv, w_o, gamma, beta,
                    num_head=num_head, d_head=d_head)

    # f32-operand run: near-exact parity with the reference (the approx
    # reciprocal + Newton step stays well inside the 1e-3 tolerance).
    out = multihead_self_attention(x, pos_emb, params,
                                   num_head=num_head, d_head=d_head)
    out = jax.block_until_ready(out)
    assert out.shape == (seq_len, batch, d_model)
    assert jnp.allclose(out, ref, atol=1e-3, rtol=1e-3), "f32 mismatch vs reference"

    # bf16 MXU-operand run (v6e/v7x fast path): f32 accumulation + f32
    # softmax/LayerNorm, so the only deviation is bf16 operand rounding.
    out_bf16 = multihead_self_attention(x, pos_emb, params, num_head=num_head,
                                        d_head=d_head, compute_dtype=jnp.bfloat16)
    out_bf16 = jax.block_until_ready(out_bf16)
    assert float(jnp.max(jnp.abs(out_bf16 - ref))) < 0.25, "bf16 path sanity check failed"

    print("KERNEL_OK")
</pallas_src>

<mosaic_0001>
module attributes {stable_mosaic.version = 11 : i64} {
  func.func @_fused_mhsa_kernel(%arg0: i32, %arg1: memref<2x64x128xf32, #tpu.memory_space<vmem>>, %arg2: memref<64x128xf32, #tpu.memory_space<vmem>>, %arg3: memref<128x384xf32, #tpu.memory_space<vmem>>, %arg4: memref<128x128xf32, #tpu.memory_space<vmem>>, %arg5: memref<1x128xf32, #tpu.memory_space<vmem>>, %arg6: memref<1x128xf32, #tpu.memory_space<vmem>>, %arg7: memref<2x64x128xf32, #tpu.memory_space<vmem>>) attributes {dimension_semantics = [#tpu.dimension_semantics<parallel>], iteration_bounds = array<i64: 2>, scalar_prefetch = 0 : i64, scratch_operands = 0 : i64, tpu.core_type = #tpu.core_type<tc>, window_params = [{transform_indices = @transform_0, window_bounds = array<i64: 2, 64, 128>}, {pipeline_mode = #tpu.pipeline_mode<synchronous>, transform_indices = @transform_1, window_bounds = array<i64: 64, 128>}, {pipeline_mode = #tpu.pipeline_mode<synchronous>, transform_indices = @transform_2, window_bounds = array<i64: 128, 384>}, {pipeline_mode = #tpu.pipeline_mode<synchronous>, transform_indices = @transform_3, window_bounds = array<i64: 128, 128>}, {pipeline_mode = #tpu.pipeline_mode<synchronous>, transform_indices = @transform_4, window_bounds = array<i64: 1, 128>}, {pipeline_mode = #tpu.pipeline_mode<synchronous>, transform_indices = @transform_5, window_bounds = array<i64: 1, 128>}, {transform_indices = @transform_6, window_bounds = array<i64: 2, 64, 128>}]} {
    %c0 = arith.constant 0 : index
    %c0_0 = arith.constant 0 : index
    %c0_1 = arith.constant 0 : index
    %0 = vector.load %arg1[%c0, %c0_0, %c0_1] : memref<2x64x128xf32, #tpu.memory_space<vmem>>, vector<2x64x128xf32>
    %c0_2 = arith.constant 0 : index
    %c0_3 = arith.constant 0 : index
    %1 = vector.load %arg2[%c0_2, %c0_3] : memref<64x128xf32, #tpu.memory_space<vmem>>, vector<64x128xf32>
    %2 = vector.shape_cast %1 : vector<64x128xf32> to vector<1x64x128xf32>
    %3 = vector.broadcast %2 : vector<1x64x128xf32> to vector<2x64x128xf32>
    %4 = arith.addf %0, %3 : vector<2x64x128xf32>
    %5 = vector.shape_cast %4 : vector<2x64x128xf32> to vector<128x128xf32>
    %c0_4 = arith.constant 0 : index
    %c0_5 = arith.constant 0 : index
    %6 = vector.load %arg3[%c0_4, %c0_5] : memref<128x384xf32, #tpu.memory_space<vmem>>, vector<128x384xf32>
    %cst = arith.constant dense<0.000000e+00> : vector<128x384xf32>
    %7 = tpu.matmul %5, %6, %cst {dimension_numbers = #tpu.dot_dimension_numbers<[1], [0], [0], [1], [0, 0, 1, 1], [], []>} : vector<128x128xf32>, vector<128x384xf32>, vector<128x384xf32> -> vector<128x384xf32>
    %8 = vector.shape_cast %7 : vector<128x384xf32> to vector<2x64x384xf32>
    %9 = vector.extract_strided_slice %8 {offsets = [0, 0, 0], sizes = [2, 64, 32], strides = [1, 1, 1]} : vector<2x64x384xf32> to vector<2x64x32xf32>
    %10 = vector.extract_strided_slice %8 {offsets = [0, 0, 128], sizes = [2, 64, 32], strides = [1, 1, 1]} : vector<2x64x384xf32> to vector<2x64x32xf32>
    %11 = vector.extract_strided_slice %8 {offsets = [0, 0, 256], sizes = [2, 64, 32], strides = [1, 1, 1]} : vector<2x64x384xf32> to vector<2x64x32xf32>
    "tpu.trace_start"() <{level = 10 : i32, message = "bqd,bkd->bqk"}> : () -> ()
    %cst_6 = arith.constant dense<0.000000e+00> : vector<2x64x64xf32>
    %12 = tpu.matmul %9, %10, %cst_6 {dimension_numbers = #tpu.dot_dimension_numbers<[2], [2], [1], [1], [0, 0, 0, 1, 1, 1], [0], [0]>} : vector<2x64x32xf32>, vector<2x64x32xf32>, vector<2x64x64xf32> -> vector<2x64x64xf32>
    "tpu.trace_stop"() : () -> ()
    %cst_7 = arith.constant dense<0xFF800000> : vector<2x64xf32>
    %13 = vector.multi_reduction <maximumf>, %12, %cst_7 [2] : vector<2x64x64xf32> to vector<2x64xf32>
    %14 = vector.shape_cast %13 : vector<2x64xf32> to vector<2x64x1xf32>
    %15 = vector.broadcast %14 : vector<2x64x1xf32> to vector<2x64x64xf32>
    %16 = arith.subf %12, %15 : vector<2x64x64xf32>
    %17 = math.exp %16 : vector<2x64x64xf32>
    %cst_8 = arith.constant dense<0.000000e+00> : vector<2x64xf32>
    %18 = vector.multi_reduction <add>, %17, %cst_8 [2] : vector<2x64x64xf32> to vector<2x64xf32>
    %19 = vector.shape_cast %18 : vector<2x64xf32> to vector<2x64x1xf32>
    %20 = tpu.reciprocal %19 {approx = true} : vector<2x64x1xf32> -> vector<2x64x1xf32>
    %21 = arith.mulf %19, %20 : vector<2x64x1xf32>
    %cst_9 = arith.constant 2.000000e+00 : f32
    %22 = vector.broadcast %cst_9 : f32 to vector<2x64x1xf32>
    %23 = arith.subf %22, %21 : vector<2x64x1xf32>
    %24 = arith.mulf %20, %23 : vector<2x64x1xf32>
    %25 = vector.broadcast %24 : vector<2x64x1xf32> to vector<2x64x64xf32>
    %26 = arith.mulf %17, %25 : vector<2x64x64xf32>
    "tpu.trace_start"() <{level = 10 : i32, message = "bqk,bkd->bqd"}> : () -> ()
    %cst_10 = arith.constant dense<0.000000e+00> : vector<2x64x32xf32>
    %27 = tpu.matmul %26, %11, %cst_10 {dimension_numbers = #tpu.dot_dimension_numbers<[2], [1], [1], [2], [0, 0, 0, 1, 1, 2], [0], [0]>} : vector<2x64x64xf32>, vector<2x64x32xf32>, vector<2x64x32xf32> -> vector<2x64x32xf32>
    "tpu.trace_stop"() : () -> ()
    %28 = vector.extract_strided_slice %8 {offsets = [0, 0, 32], sizes = [2, 64, 32], strides = [1, 1, 1]} : vector<2x64x384xf32> to vector<2x64x32xf32>
    %29 = vector.extract_strided_slice %8 {offsets = [0, 0, 160], sizes = [2, 64, 32], strides = [1, 1, 1]} : vector<2x64x384xf32> to vector<2x64x32xf32>
    %30 = vector.extract_strided_slice %8 {offsets = [0, 0, 288], sizes = [2, 64, 32], strides = [1, 1, 1]} : vector<2x64x384xf32> to vector<2x64x32xf32>
    "tpu.trace_start"() <{level = 10 : i32, message = "bqd,bkd->bqk"}> : () -> ()
    %cst_11 = arith.constant dense<0.000000e+00> : vector<2x64x64xf32>
    %31 = tpu.matmul %28, %29, %cst_11 {dimension_numbers = #tpu.dot_dimension_numbers<[2], [2], [1], [1], [0, 0, 0, 1, 1, 1], [0], [0]>} : vector<2x64x32xf32>, vector<2x64x32xf32>, vector<2x64x64xf32> -> vector<2x64x64xf32>
    "tpu.trace_stop"() : () -> ()
    %cst_12 = arith.constant dense<0xFF800000> : vector<2x64xf32>
    %32 = vector.multi_reduction <maximumf>, %31, %cst_12 [2] : vector<2x64x64xf32> to vector<2x64xf32>
    %33 = vector.shape_cast %32 : vector<2x64xf32> to vector<2x64x1xf32>
    %34 = vector.broadcast %33 : vector<2x64x1xf32> to vector<2x64x64xf32>
    %35 = arith.subf %31, %34 : vector<2x64x64xf32>
    %36 = math.exp %35 : vector<2x64x64xf32>
    %cst_13 = arith.constant dense<0.000000e+00> : vector<2x64xf32>
    %37 = vector.multi_reduction <add>, %36, %cst_13 [2] : vector<2x64x64xf32> to vector<2x64xf32>
    %38 = vector.shape_cast %37 : vector<2x64xf32> to vector<2x64x1xf32>
    %39 = tpu.reciprocal %38 {approx = true} : vector<2x64x1xf32> -> vector<2x64x1xf32>
    %40 = arith.mulf %38, %39 : vector<2x64x1xf32>
    %cst_14 = arith.constant 2.000000e+00 : f32
    %41 = vector.broadcast %cst_14 : f32 to vector<2x64x1xf32>
    %42 = arith.subf %41, %40 : vector<2x64x1xf32>
    %43 = arith.mulf %39, %42 : vector<2x64x1xf32>
    %44 = vector.broadcast %43 : vector<2x64x1xf32> to vector<2x64x64xf32>
    %45 = arith.mulf %36, %44 : vector<2x64x64xf32>
    "tpu.trace_start"() <{level = 10 : i32, message = "bqk,bkd->bqd"}> : () -> ()
    %cst_15 = arith.constant dense<0.000000e+00> : vector<2x64x32xf32>
    %46 = tpu.matmul %45, %30, %cst_15 {dimension_numbers = #tpu.dot_dimension_numbers<[2], [1], [1], [2], [0, 0, 0, 1, 1, 2], [0], [0]>} : vector<2x64x64xf32>, vector<2x64x32xf32>, vector<2x64x32xf32> -> vector<2x64x32xf32>
    "tpu.trace_stop"() : () -> ()
    %47 = vector.extract_strided_slice %8 {offsets = [0, 0, 64], sizes = [2, 64, 32], strides = [1, 1, 1]} : vector<2x64x384xf32> to vector<2x64x32xf32>
    %48 = vector.extract_strided_slice %8 {offsets = [0, 0, 192], sizes = [2, 64, 32], strides = [1, 1, 1]} : vector<2x64x384xf32> to vector<2x64x32xf32>
    %49 = vector.extract_strided_slice %8 {offsets = [0, 0, 320], sizes = [2, 64, 32], strides = [1, 1, 1]} : vector<2x64x384xf32> to vector<2x64x32xf32>
    "tpu.trace_start"() <{level = 10 : i32, message = "bqd,bkd->bqk"}> : () -> ()
    %cst_16 = arith.constant dense<0.000000e+00> : vector<2x64x64xf32>
    %50 = tpu.matmul %47, %48, %cst_16 {dimension_numbers = #tpu.dot_dimension_numbers<[2], [2], [1], [1], [0, 0, 0, 1, 1, 1], [0], [0]>} : vector<2x64x32xf32>, vector<2x64x32xf32>, vector<2x64x64xf32> -> vector<2x64x64xf32>
    "tpu.trace_stop"() : () -> ()
    %cst_17 = arith.constant dense<0xFF800000> : vector<2x64xf32>
    %51 = vector.multi_reduction <maximumf>, %50, %cst_17 [2] : vector<2x64x64xf32> to vector<2x64xf32>
    %52 = vector.shape_cast %51 : vector<2x64xf32> to vector<2x64x1xf32>
    %53 = vector.broadcast %52 : vector<2x64x1xf32> to vector<2x64x64xf32>
    %54 = arith.subf %50, %53 : vector<2x64x64xf32>
    %55 = math.exp %54 : vector<2x64x64xf32>
    %cst_18 = arith.constant dense<0.000000e+00> : vector<2x64xf32>
    %56 = vector.multi_reduction <add>, %55, %cst_18 [2] : vector<2x64x64xf32> to vector<2x64xf32>
    %57 = vector.shape_cast %56 : vector<2x64xf32> to vector<2x64x1xf32>
    %58 = tpu.reciprocal %57 {approx = true} : vector<2x64x1xf32> -> vector<2x64x1xf32>
    %59 = arith.mulf %57, %58 : vector<2x64x1xf32>
    %cst_19 = arith.constant 2.000000e+00 : f32
    %60 = vector.broadcast %cst_19 : f32 to vector<2x64x1xf32>
    %61 = arith.subf %60, %59 : vector<2x64x1xf32>
    %62 = arith.mulf %58, %61 : vector<2x64x1xf32>
    %63 = vector.broadcast %62 : vector<2x64x1xf32> to vector<2x64x64xf32>
    %64 = arith.mulf %55, %63 : vector<2x64x64xf32>
    "tpu.trace_start"() <{level = 10 : i32, message = "bqk,bkd->bqd"}> : () -> ()
    %cst_20 = arith.constant dense<0.000000e+00> : vector<2x64x32xf32>
    %65 = tpu.matmul %64, %49, %cst_20 {dimension_numbers = #tpu.dot_dimension_numbers<[2], [1], [1], [2], [0, 0, 0, 1, 1, 2], [0], [0]>} : vector<2x64x64xf32>, vector<2x64x32xf32>, vector<2x64x32xf32> -> vector<2x64x32xf32>
    "tpu.trace_stop"() : () -> ()
    %66 = vector.extract_strided_slice %8 {offsets = [0, 0, 96], sizes = [2, 64, 32], strides = [1, 1, 1]} : vector<2x64x384xf32> to vector<2x64x32xf32>
    %67 = vector.extract_strided_slice %8 {offsets = [0, 0, 224], sizes = [2, 64, 32], strides = [1, 1, 1]} : vector<2x64x384xf32> to vector<2x64x32xf32>
    %68 = vector.extract_strided_slice %8 {offsets = [0, 0, 352], sizes = [2, 64, 32], strides = [1, 1, 1]} : vector<2x64x384xf32> to vector<2x64x32xf32>
    "tpu.trace_start"() <{level = 10 : i32, message = "bqd,bkd->bqk"}> : () -> ()
    %cst_21 = arith.constant dense<0.000000e+00> : vector<2x64x64xf32>
    %69 = tpu.matmul %66, %67, %cst_21 {dimension_numbers = #tpu.dot_dimension_numbers<[2], [2], [1], [1], [0, 0, 0, 1, 1, 1], [0], [0]>} : vector<2x64x32xf32>, vector<2x64x32xf32>, vector<2x64x64xf32> -> vector<2x64x64xf32>
    "tpu.trace_stop"() : () -> ()
    %cst_22 = arith.constant dense<0xFF800000> : vector<2x64xf32>
    %70 = vector.multi_reduction <maximumf>, %69, %cst_22 [2] : vector<2x64x64xf32> to vector<2x64xf32>
    %71 = vector.shape_cast %70 : vector<2x64xf32> to vector<2x64x1xf32>
    %72 = vector.broadcast %71 : vector<2x64x1xf32> to vector<2x64x64xf32>
    %73 = arith.subf %69, %72 : vector<2x64x64xf32>
    %74 = math.exp %73 : vector<2x64x64xf32>
    %cst_23 = arith.constant dense<0.000000e+00> : vector<2x64xf32>
    %75 = vector.multi_reduction <add>, %74, %cst_23 [2] : vector<2x64x64xf32> to vector<2x64xf32>
    %76 = vector.shape_cast %75 : vector<2x64xf32> to vector<2x64x1xf32>
    %77 = tpu.reciprocal %76 {approx = true} : vector<2x64x1xf32> -> vector<2x64x1xf32>
    %78 = arith.mulf %76, %77 : vector<2x64x1xf32>
    %cst_24 = arith.constant 2.000000e+00 : f32
    %79 = vector.broadcast %cst_24 : f32 to vector<2x64x1xf32>
    %80 = arith.subf %79, %78 : vector<2x64x1xf32>
    %81 = arith.mulf %77, %80 : vector<2x64x1xf32>
    %82 = vector.broadcast %81 : vector<2x64x1xf32> to vector<2x64x64xf32>
    %83 = arith.mulf %74, %82 : vector<2x64x64xf32>
    "tpu.trace_start"() <{level = 10 : i32, message = "bqk,bkd->bqd"}> : () -> ()
    %cst_25 = arith.constant dense<0.000000e+00> : vector<2x64x32xf32>
    %84 = tpu.matmul %83, %68, %cst_25 {dimension_numbers = #tpu.dot_dimension_numbers<[2], [1], [1], [2], [0, 0, 0, 1, 1, 2], [0], [0]>} : vector<2x64x64xf32>, vector<2x64x32xf32>, vector<2x64x32xf32> -> vector<2x64x32xf32>
    "tpu.trace_stop"() : () -> ()
    %85 = tpu.concatenate %27, %46, %65, %84 in 2 : vector<2x64x32xf32>, vector<2x64x32xf32>, vector<2x64x32xf32>, vector<2x64x32xf32> -> vector<2x64x128xf32>
    %86 = vector.shape_cast %85 : vector<2x64x128xf32> to vector<128x128xf32>
    %c0_26 = arith.constant 0 : index
    %c0_27 = arith.constant 0 : index
    %87 = vector.load %arg4[%c0_26, %c0_27] : memref<128x128xf32, #tpu.memory_space<vmem>>, vector<128x128xf32>
    %cst_28 = arith.constant dense<0.000000e+00> : vector<128x128xf32>
    %88 = tpu.matmul %86, %87, %cst_28 {dimension_numbers = #tpu.dot_dimension_numbers<[1], [0], [0], [1], [0, 0, 1, 1], [], []>} : vector<128x128xf32>, vector<128x128xf32>, vector<128x128xf32> -> vector<128x128xf32>
    %89 = arith.addf %5, %88 : vector<128x128xf32>
    %cst_29 = arith.constant dense<0.000000e+00> : vector<128xf32>
    %90 = vector.multi_reduction <add>, %89, %cst_29 [1] : vector<128x128xf32> to vector<128xf32>
    %91 = vector.shape_cast %90 : vector<128xf32> to vector<128x1xf32>
    %cst_30 = arith.constant 1.280000e+02 : f32
    %92 = vector.broadcast %cst_30 : f32 to vector<128x1xf32>
    %93 = arith.divf %91, %92 : vector<128x1xf32>
    %94 = vector.broadcast %93 : vector<128x1xf32> to vector<128x128xf32>
    %95 = arith.subf %89, %94 : vector<128x128xf32>
    %96 = arith.mulf %95, %95 : vector<128x128xf32>
    %cst_31 = arith.constant dense<0.000000e+00> : vector<128xf32>
    %97 = vector.multi_reduction <add>, %96, %cst_31 [1] : vector<128x128xf32> to vector<128xf32>
    %98 = vector.shape_cast %97 : vector<128xf32> to vector<128x1xf32>
    %cst_32 = arith.constant 1.280000e+02 : f32
    %99 = vector.broadcast %cst_32 : f32 to vector<128x1xf32>
    %100 = arith.divf %98, %99 : vector<128x1xf32>
    %101 = vector.broadcast %93 : vector<128x1xf32> to vector<128x128xf32>
    %102 = arith.subf %89, %101 : vector<128x128xf32>
    %cst_33 = arith.constant 9.99999974E-6 : f32
    %103 = vector.broadcast %cst_33 : f32 to vector<128x1xf32>
    %104 = arith.addf %100, %103 : vector<128x1xf32>
    %105 = math.rsqrt %104 : vector<128x1xf32>
    %106 = vector.broadcast %105 : vector<128x1xf32> to vector<128x128xf32>
    %107 = arith.mulf %102, %106 : vector<128x128xf32>
    %c0_34 = arith.constant 0 : index
    %c0_35 = arith.constant 0 : index
    %108 = vector.load %arg5[%c0_34, %c0_35] : memref<1x128xf32, #tpu.memory_space<vmem>>, vector<1x128xf32>
    %109 = vector.broadcast %108 : vector<1x128xf32> to vector<128x128xf32>
    %110 = arith.mulf %107, %109 : vector<128x128xf32>
    %c0_36 = arith.constant 0 : index
    %c0_37 = arith.constant 0 : index
    %111 = vector.load %arg6[%c0_36, %c0_37] : memref<1x128xf32, #tpu.memory_space<vmem>>, vector<1x128xf32>
    %112 = vector.broadcast %111 : vector<1x128xf32> to vector<128x128xf32>
    %113 = arith.addf %110, %112 : vector<128x128xf32>
    %114 = vector.shape_cast %113 : vector<128x128xf32> to vector<2x64x128xf32>
    %c0_38 = arith.constant 0 : index
    %c0_39 = arith.constant 0 : index
    %c0_40 = arith.constant 0 : index
    %115 = vector.load %arg7[%c0_38, %c0_39, %c0_40] : memref<2x64x128xf32, #tpu.memory_space<vmem>>, vector<2x64x128xf32>
    tpu.vector_store %arg7[%c0_38, %c0_39, %c0_40], %114 {strides = array<i32>} : memref<2x64x128xf32, #tpu.memory_space<vmem>>, vector<2x64x128xf32>,
    return
  }
  func.func @transform_0(%arg0: i32) -> (i32, i32, i32) {
    %c0_i32 = arith.constant 0 : i32
    %c0_i32_0 = arith.constant 0 : i32
    %c0_i32_1 = arith.constant 0 : i32
    return %arg0, %c0_i32, %c0_i32_0 : i32, i32, i32
  }
  func.func @transform_1(%arg0: i32) -> (i32, i32) {
    %c0_i32 = arith.constant 0 : i32
    %c0_i32_0 = arith.constant 0 : i32
    %c0_i32_1 = arith.constant 0 : i32
    return %c0_i32, %c0_i32_0 : i32, i32
  }
  func.func @transform_2(%arg0: i32) -> (i32, i32) {
    %c0_i32 = arith.constant 0 : i32
    %c0_i32_0 = arith.constant 0 : i32
    %c0_i32_1 = arith.constant 0 : i32
    return %c0_i32, %c0_i32_0 : i32, i32
  }
  func.func @transform_3(%arg0: i32) -> (i32, i32) {
    %c0_i32 = arith.constant 0 : i32
    %c0_i32_0 = arith.constant 0 : i32
    %c0_i32_1 = arith.constant 0 : i32
    return %c0_i32, %c0_i32_0 : i32, i32
  }
  func.func @transform_4(%arg0: i32) -> (i32, i32) {
    %c0_i32 = arith.constant 0 : i32
    %c0_i32_0 = arith.constant 0 : i32
    %c0_i32_1 = arith.constant 0 : i32
    return %c0_i32, %c0_i32_0 : i32, i32
  }
  func.func @transform_5(%arg0: i32) -> (i32, i32) {
    %c0_i32 = arith.constant 0 : i32
    %c0_i32_0 = arith.constant 0 : i32
    %c0_i32_1 = arith.constant 0 : i32
    return %c0_i32, %c0_i32_0 : i32, i32
  }
  func.func @transform_6(%arg0: i32) -> (i32, i32, i32) {
    %c0_i32 = arith.constant 0 : i32
    %c0_i32_0 = arith.constant 0 : i32
    %c0_i32_1 = arith.constant 0 : i32
    return %arg0, %c0_i32, %c0_i32_0 : i32, i32, i32
  }
}

</mosaic_0001>

<llo_original>
// kernel: tpu_custom_call.1
$region0: #{tpu_custom_call.1}
  #allocation0 [shape = 'u32[]', space=smem, size = 0x4, offset = 0x4, fixed_abs, tag = 'smem constant byte address 0x4 - core index']
  #allocation1 [shape = 'u32[144,128]{1,0:T(1,128)}', space=vmem, size = 0x12000, scoped, tag = 'internal scratch']
  %s0 = inlined_call_operand.hbm [shape: f32[4,64,128], index: 0, kind: input, shape index: {}]
  %s1 = inlined_call_operand.hbm [shape: f32[64,128], index: 1, kind: input, shape index: {}]
  %s2 = inlined_call_operand.hbm [shape: f32[128,384], index: 2, kind: input, shape index: {}]
  %s3 = inlined_call_operand.hbm [shape: f32[128,128], index: 3, kind: input, shape index: {}]
  %s4 = inlined_call_operand.vmem [shape: f32[1,128], index: 4, kind: input, shape index: {}]
  %s5 = inlined_call_operand.vmem [shape: f32[1,128], index: 5, kind: input, shape index: {}]
  %s6 = inlined_call_operand.hbm [shape: f32[4,64,128], index: 6, kind: output, shape index: {}]
  %s7 = sld [smem:[#allocation0]]
  $region73: #{tpu_custom_call.1} parent=0
    _
  %s9 = ssub.s32 1, %s7
  %s10 = scalar_select 0, %s9, %s7
  $region1: #{tpu_custom_call.1} parent=0
    #allocation2 [shape = 'u8[131072]{0}', space=vmem, size = 0x20000, scoped, tag = 'input window, operand 0']
    #allocation3 [shape = 's32[2]{0}', space=sflag, size = 0x8, scoped, tag = 'scoped memory for tpu_custom_call.1']
    #allocation4 [shape = 's32[2]{0}', space=sflag, size = 0x8, scoped, tag = 'scoped memory for tpu_custom_call.1']
    #allocation5 [shape = 'u8[32768]{0}', space=vmem, size = 0x8000, scoped, tag = 'input window, operand 1, single buffered']
    #allocation6 [shape = 's32[1]{0}', space=sflag, size = 0x4, scoped, tag = 'scoped memory for tpu_custom_call.1']
    #allocation7 [shape = 'u8[196608]{0}', space=vmem, size = 0x30000, scoped, tag = 'input window, operand 2, single buffered']
    #allocation8 [shape = 'u8[65536]{0}', space=vmem, size = 0x10000, scoped, tag = 'input window, operand 3, single buffered']
    #allocation9 [shape = 's32[1]{0}', space=sflag, size = 0x4, scoped, tag = 'scoped memory for tpu_custom_call.1']
    #allocation10 [shape = 'u8[131072]{0}', space=vmem, size = 0x20000, scoped, tag = 'output window, operand 0']
    %11 = vsyncpa [#allocation3], 0
    %s12 = scalar_lea.sflag [#allocation3], 1
    %13 = vsyncpa %s12, 0
    %14 = vsyncpa [#allocation6], 0
    %15 = vsyncpa [#allocation9], 0
    %16 = vsyncpa [#allocation4], 0
    %s17 = scalar_lea.sflag [#allocation4], 1
    %18 = vsyncpa %s17, 0
    loop: start=0, step=1, limit=4
    $region2: #{tpu_custom_call.1} parent=1 // loop_pre_header
      _
    $region3: #{tpu_custom_call.1} parent=1 // loop_header
      %s20 = sphi 0, %s24
      %p21 = scmp.ge.s32.totalorder %s20, 4
      %s30 = sphi 0, %s32
      %s33 = sphi 0, %s30
      %s34 = sphi 0, %s33
      %s50 = sphi 0, %s34
      %s54 = sphi 0, %s54
      %s56 = sphi 0, %s54
      %s57 = sphi 0, %s56
      %s71 = sphi 0, %s57
      %s75 = sphi 0, %s75
      %s77 = sphi 0, %s75
      %s78 = sphi 0, %s77
      %s92 = sphi 0, %s78
      %s96 = sphi 0, %s96
      %s98 = sphi 0, %s96
      %s99 = sphi 0, %s98
      %s113 = sphi 0, %s99
      %s117 = sphi 0, %s117
      %s119 = sphi 0, %s117
      %s120 = sphi 0, %s119
      %s134 = sphi 0, %s120
      %s138 = sphi 0, %s138
      %s140 = sphi 0, %s138
      %s141 = sphi 0, %s140
      %s155 = sphi 0, %s141
      %s161 = sphi 0, %s163
      %s164 = sphi 0, %s161
      %s165 = sphi 0, %s164
      %s181 = sphi 0, %s165
    $region4: #{tpu_custom_call.1} parent=1 // loop_header_branch
      %23 = sbr.rel (%p21) target = $region8
    $region5: #{tpu_custom_call.1} parent=1 // loop_body
      %s25 = ssub.s32 %s20, 1
      %s26 = ssub.s32 %s20, 2
      %s27 = sadd.s32 %s20, 1
      %s28 = ssub.s32 %s20, %s27
      %p29 = scmp.eq.s32.totalorder %s28, 0
      %s31 = sadd.s32 %s30, 1
      %s32 = scalar_select %p29, %s30, %s31
      %p35 = pneg %p29
      %p36 = scmp.eq.s32.totalorder %s20, 1
      %p37 = por %p35, %p36
      %p38 = scmp.ne.s32.totalorder %s30, %s33
      %p39 = scmp.eq.s32.totalorder %s20, 0
      %p40 = por %p38, %p39
      %p41 = scmp.ne.s32.totalorder %s30, %s33
      %p42 = scmp.eq.s32.totalorder %s25, 1
      %p43 = por %p41, %p42
      %p44 = scmp.ne.s32.totalorder %s33, %s34
      %p45 = scmp.eq.s32.totalorder %s25, 0
      %p46 = por %p44, %p45
      %p47 = scmp.ne.s32.totalorder %s33, %s34
      %p48 = scmp.eq.s32.totalorder %s26, 1
      %p49 = por %p47, %p48
      %p51 = scmp.ne.s32.totalorder %s34, %s50
      %p52 = scmp.eq.s32.totalorder %s26, 0
      %p53 = por %p51, %p52
      %s55 = sadd.s32 %s54, 1
      %p58 = scmp.eq.s32.totalorder %s20, 1
      %p59 = scmp.ne.s32.totalorder %s54, %s56
      %p60 = scmp.eq.s32.totalorder %s20, 0
      %p61 = por %p59, %p60
      %p62 = scmp.ne.s32.totalorder %s54, %s56
      %p63 = scmp.eq.s32.totalorder %s25, 1
      %p64 = por %p62, %p63
      %p65 = scmp.ne.s32.totalorder %s56, %s57
      %p66 = scmp.eq.s32.totalorder %s25, 0
      %p67 = por %p65, %p66
      %p68 = scmp.ne.s32.totalorder %s56, %s57
      %p69 = scmp.eq.s32.totalorder %s26, 1
      %p70 = por %p68, %p69
      %p72 = scmp.ne.s32.totalorder %s57, %s71
      %p73 = scmp.eq.s32.totalorder %s26, 0
      %p74 = por %p72, %p73
      %s76 = sadd.s32 %s75, 1
      %p79 = scmp.eq.s32.totalorder %s20, 1
      %p80 = scmp.ne.s32.totalorder %s75, %s77
      %p81 = scmp.eq.s32.totalorder %s20, 0
      %p82 = por %p80, %p81
      %p83 = scmp.ne.s32.totalorder %s75, %s77
      %p84 = scmp.eq.s32.totalorder %s25, 1
      %p85 = por %p83, %p84
      %p86 = scmp.ne.s32.totalorder %s77, %s78
      %p87 = scmp.eq.s32.totalorder %s25, 0
      %p88 = por %p86, %p87
      %p89 = scmp.ne.s32.totalorder %s77, %s78
      %p90 = scmp.eq.s32.totalorder %s26, 1
      %p91 = por %p89, %p90
      %p93 = scmp.ne.s32.totalorder %s78, %s92
      %p94 = scmp.eq.s32.totalorder %s26, 0
      %p95 = por %p93, %p94
      %s97 = sadd.s32 %s96, 1
      %p100 = scmp.eq.s32.totalorder %s20, 1
      %p101 = scmp.ne.s32.totalorder %s96, %s98
      %p102 = scmp.eq.s32.totalorder %s20, 0
      %p103 = por %p101, %p102
      %p104 = scmp.ne.s32.totalorder %s96, %s98
      %p105 = scmp.eq.s32.totalorder %s25, 1
      %p106 = por %p104, %p105
      %p107 = scmp.ne.s32.totalorder %s98, %s99
      %p108 = scmp.eq.s32.totalorder %s25, 0
      %p109 = por %p107, %p108
      %p110 = scmp.ne.s32.totalorder %s98, %s99
      %p111 = scmp.eq.s32.totalorder %s26, 1
      %p112 = por %p110, %p111
      %p114 = scmp.ne.s32.totalorder %s99, %s113
      %p115 = scmp.eq.s32.totalorder %s26, 0
      %p116 = por %p114, %p115
      %s118 = sadd.s32 %s117, 1
      %p121 = scmp.eq.s32.totalorder %s20, 1
      %p122 = scmp.ne.s32.totalorder %s117, %s119
      %p123 = scmp.eq.s32.totalorder %s20, 0
      %p124 = por %p122, %p123
      %p125 = scmp.ne.s32.totalorder %s117, %s119
      %p126 = scmp.eq.s32.totalorder %s25, 1
      %p127 = por %p125, %p126
      %p128 = scmp.ne.s32.totalorder %s119, %s120
      %p129 = scmp.eq.s32.totalorder %s25, 0
      %p130 = por %p128, %p129
      %p131 = scmp.ne.s32.totalorder %s119, %s120
      %p132 = scmp.eq.s32.totalorder %s26, 1
      %p133 = por %p131, %p132
      %p135 = scmp.ne.s32.totalorder %s120, %s134
      %p136 = scmp.eq.s32.totalorder %s26, 0
      %p137 = por %p135, %p136
      %s139 = sadd.s32 %s138, 1
      %p142 = scmp.eq.s32.totalorder %s20, 1
      %p143 = scmp.ne.s32.totalorder %s138, %s140
      %p144 = scmp.eq.s32.totalorder %s20, 0
      %p145 = por %p143, %p144
      %p146 = scmp.ne.s32.totalorder %s138, %s140
      %p147 = scmp.eq.s32.totalorder %s25, 1
      %p148 = por %p146, %p147
      %p149 = scmp.ne.s32.totalorder %s140, %s141
      %p150 = scmp.eq.s32.totalorder %s25, 0
      %p151 = por %p149, %p150
      %p152 = scmp.ne.s32.totalorder %s140, %s141
      %p153 = scmp.eq.s32.totalorder %s26, 1
      %p154 = por %p152, %p153
      %p156 = scmp.ne.s32.totalorder %s141, %s155
      %p157 = scmp.eq.s32.totalorder %s26, 0
      %p158 = por %p156, %p157
      %s159 = ssub.s32 %s20, %s27
      %p160 = scmp.eq.s32.totalorder %s159, 0
      %s162 = sadd.s32 %s161, 1
      %s163 = scalar_select %p160, %s161, %s162
      %p166 = pneg %p160
      %p167 = scmp.eq.s32.totalorder %s20, 1
      %p168 = por %p166, %p167
      %p169 = scmp.ne.s32.totalorder %s161, %s164
      %p170 = scmp.eq.s32.totalorder %s20, 0
      %p171 = por %p169, %p170
      %p172 = scmp.ne.s32.totalorder %s161, %s164
      %p173 = scmp.eq.s32.totalorder %s25, 1
      %p174 = por %p172, %p173
      %p175 = scmp.ne.s32.totalorder %s164, %s165
      %p176 = scmp.eq.s32.totalorder %s25, 0
      %p177 = por %p175, %p176
      %p178 = scmp.ne.s32.totalorder %s164, %s165
      %p179 = scmp.eq.s32.totalorder %s26, 1
      %p180 = por %p178, %p179
      %p182 = scmp.ne.s32.totalorder %s165, %s181
      %p183 = scmp.eq.s32.totalorder %s26, 0
      %p184 = por %p182, %p183
      %p185 = scmp.le.s32.totalorder 1, %s20
      %p186 = scmp.lt.s32.totalorder %s20, 3
      %p187 = pnand %p185, %p186
      %p188 = pneg %p187
      // Predicated region
      $region9: #{tpu_custom_call.1} parent=5 // pred_check
        _
      $region10: #{tpu_custom_call.1} parent=5 // pred_check_branch
        %190 = sbr.rel (%p187) target = $region12
      $region11: #{tpu_custom_call.1} parent=5 // pred_region
        %s191 = ssub.s32 %s20, 1
        // Predicated region
        $region13: #{tpu_custom_call.1} parent=11 // pred_check
          %p192 = pneg %p67
        $region14: #{tpu_custom_call.1} parent=11 // pred_check_branch
          %194 = sbr.rel (%p192) target = $region16
        $region15: #{tpu_custom_call.1} parent=11 // pred_region
          %s196 = ssub.s32 1024, 1024
          %197 = vsyncadd [#allocation6], %s196
          %s198 = sshll.u32 [#allocation5], 4
          %s199 = int_to_ptr.vmem [resolvable:$true] %s198
          %204 = dma.hbm_to_vmem [thread:$0]  %s1, 1024, %s199, [#allocation6], 128, 128, 8
        $region16: #{tpu_custom_call.1} parent=11 // pred_fallthru
          _
        // Predicated region
        $region17: #{tpu_custom_call.1} parent=11 // pred_check
          %p205 = pneg %p88
        $region18: #{tpu_custom_call.1} parent=11 // pred_check_branch
          %207 = sbr.rel (%p205) target = $region20
        $region19: #{tpu_custom_call.1} parent=11 // pred_region
          %s209 = ssub.s32 6144, 6144
          %210 = vsyncadd [#allocation6], %s209
          %s211 = sshll.u32 [#allocation7], 4
          %s212 = int_to_ptr.vmem [resolvable:$true] %s211
          %217 = dma.hbm_to_vmem [thread:$0]  %s2, 6144, %s212, [#allocation6], 384, 384, 24
        $region20: #{tpu_custom_call.1} parent=11 // pred_fallthru
          _
        // Predicated region
        $region21: #{tpu_custom_call.1} parent=11 // pred_check
          %p218 = pneg %p109
        $region22: #{tpu_custom_call.1} parent=11 // pred_check_branch
          %220 = sbr.rel (%p218) target = $region24
        $region23: #{tpu_custom_call.1} parent=11 // pred_region
          %s222 = ssub.s32 2048, 2048
          %223 = vsyncadd [#allocation9], %s222
          %s224 = sshll.u32 [#allocation8], 4
          %s225 = int_to_ptr.vmem [resolvable:$true] %s224
          %230 = dma.hbm_to_vmem [thread:$0]  %s3, 2048, %s225, [#allocation9], 128, 128, 8
        $region24: #{tpu_custom_call.1} parent=11 // pred_fallthru
          _
        // Predicated region
        $region25: #{tpu_custom_call.1} parent=11 // pred_check
          %p231 = pneg %p130
        $region26: #{tpu_custom_call.1} parent=11 // pred_check_branch
          %233 = sbr.rel (%p231) target = $region28
        $region27: #{tpu_custom_call.1} parent=11 // pred_region
          _
        $region28: #{tpu_custom_call.1} parent=11 // pred_fallthru
          _
        // Predicated region
        $region29: #{tpu_custom_call.1} parent=11 // pred_check
          %p234 = pneg %p151
        $region30: #{tpu_custom_call.1} parent=11 // pred_check_branch
          %236 = sbr.rel (%p234) target = $region32
        $region31: #{tpu_custom_call.1} parent=11 // pred_region
          _
        $region32: #{tpu_custom_call.1} parent=11 // pred_fallthru
          _
      $region12: #{tpu_custom_call.1} parent=5 // pred_fallthru
        _
      %p237 = scmp.lt.s32.totalorder %s20, 2
      // Predicated region
      $region33: #{tpu_custom_call.1} parent=5 // pred_check
        %p238 = pneg %p237
      $region34: #{tpu_custom_call.1} parent=5 // pred_check_branch
        %240 = sbr.rel (%p238) target = $region36
      $region35: #{tpu_custom_call.1} parent=5 // pred_region
        // Predicated region
        $region37: #{tpu_custom_call.1} parent=35 // pred_check
          %p241 = pneg %p40
        $region38: #{tpu_custom_call.1} parent=35 // pred_check_branch
          %243 = sbr.rel (%p241) target = $region40
        $region39: #{tpu_custom_call.1} parent=35 // pred_region
          %s244 = sand.u32 %s30, 1
          %s245 = scalar_lea.sflag [#allocation3], %s244
          %s246 = sand.u32 %s30, 1
          %s247 = smul.addr %s246, 128
          %s248 = scalar_lea.vmem [#allocation2], %s247
          %s249 = smul.u32 2, %s20
          %s251 = ssub.s32 2048, 2048
          %252 = vsyncadd %s245, %s251
          %s253 = smul.addr %s249, 8
          %s254 = smul.addr %s253, 128
          %s255 = scalar_lea.hbm %s0, %s254
          %s256 = sshll.u32 %s248, 4
          %s257 = int_to_ptr.vmem [resolvable:$true] %s256
          %262 = dma.hbm_to_vmem [thread:$0]  %s255, 2048, %s257, %s245, 128, 128, 8
        $region40: #{tpu_custom_call.1} parent=35 // pred_fallthru
          _
      $region36: #{tpu_custom_call.1} parent=5 // pred_fallthru
        _
      %p263 = scmp.le.s32.totalorder 1, %s20
      %p264 = scmp.lt.s32.totalorder %s20, 3
      %p265 = pnand %p263, %p264
      %p266 = pneg %p265
      // Predicated region
      $region41: #{tpu_custom_call.1} parent=5 // pred_check
        _
      $region42: #{tpu_custom_call.1} parent=5 // pred_check_branch
        %268 = sbr.rel (%p265) target = $region44
      $region43: #{tpu_custom_call.1} parent=5 // pred_region
        %s269 = ssub.s32 %s20, 1
        %s270 = sand.u32 %s33, 1
        %s271 = scalar_lea.sflag [#allocation3], %s270
        %s272 = sand.u32 %s33, 1
        %s273 = smul.addr %s272, 128
        %s274 = scalar_lea.vmem [#allocation2], %s273
        // Predicated region
        $region45: #{tpu_custom_call.1} parent=43 // pred_check
          %p275 = pneg %p46
        $region46: #{tpu_custom_call.1} parent=43 // pred_check_branch
          %277 = sbr.rel (%p275) target = $region48
        $region47: #{tpu_custom_call.1} parent=43 // pred_region
          %278 = dma.done %s271, 2048
        $region48: #{tpu_custom_call.1} parent=43 // pred_fallthru
          _
        // Predicated region
        $region49: #{tpu_custom_call.1} parent=43 // pred_check
          %p279 = pneg %p67
        $region50: #{tpu_custom_call.1} parent=43 // pred_check_branch
          %281 = sbr.rel (%p279) target = $region52
        $region51: #{tpu_custom_call.1} parent=43 // pred_region
          %282 = dma.done [#allocation6], 1024
        $region52: #{tpu_custom_call.1} parent=43 // pred_fallthru
          _
        // Predicated region
        $region53: #{tpu_custom_call.1} parent=43 // pred_check
          %p283 = pneg %p88
        $region54: #{tpu_custom_call.1} parent=43 // pred_check_branch
          %285 = sbr.rel (%p283) target = $region56
        $region55: #{tpu_custom_call.1} parent=43 // pred_region
          %286 = dma.done [#allocation6], 6144
        $region56: #{tpu_custom_call.1} parent=43 // pred_fallthru
          _
        // Predicated region
        $region57: #{tpu_custom_call.1} parent=43 // pred_check
          %p287 = pneg %p109
        $region58: #{tpu_custom_call.1} parent=43 // pred_check_branch
          %289 = sbr.rel (%p287) target = $region60
        $region59: #{tpu_custom_call.1} parent=43 // pred_region
          %290 = dma.done [#allocation9], 2048
        $region60: #{tpu_custom_call.1} parent=43 // pred_fallthru
          _
        %s291 = sand.u32 %s33, 1
        %s292 = scalar_lea.sflag [#allocation3], %s291
        %s293 = sand.u32 %s33, 1
        %s294 = smul.addr %s293, 128
        %s295 = scalar_lea.vmem [#allocation2], %s294
        %p296 = pneg %p46
        %p297 = pneg %p43
        %p298 = pneg %p67
        %p299 = pneg %p64
        %p300 = pneg %p88
        %p301 = pneg %p85
        %p302 = pneg %p109
        %p303 = pneg %p106
        %p304 = pneg %p130
        %p305 = pneg %p127
        %p306 = pneg %p151
        %p307 = pneg %p148
        %p308 = pneg %p177
        %p309 = pneg %p174
        %s310 = sand.u32 %s164, 1
        %s311 = scalar_lea.sflag [#allocation4], %s310
        %s312 = sand.u32 %s164, 1
        %s313 = smul.addr %s312, 128
        %s314 = scalar_lea.vmem [#allocation10], %s313
        %s315 = smul.u32 2, %s25
        %s316 = smul.u32 2, %s25
        %v317 = vld [vmem:[%s274] sm:$0xff]
        %v318 = vld [vmem:[%s274 + $0x8] sm:$0xff]
        %v319 = vld [vmem:[%s274 + $0x10] sm:$0xff]
        %v320 = vld [vmem:[%s274 + $0x18] sm:$0xff]
        %v321 = vld [vmem:[%s274 + $0x20] sm:$0xff]
        %v322 = vld [vmem:[%s274 + $0x28] sm:$0xff]
        %v323 = vld [vmem:[%s274 + $0x30] sm:$0xff]
        %v324 = vld [vmem:[%s274 + $0x38] sm:$0xff]
        %v325 = vld [vmem:[%s274 + $0x40] sm:$0xff]
        %v326 = vld [vmem:[%s274 + $0x48] sm:$0xff]
        %v327 = vld [vmem:[%s274 + $0x50] sm:$0xff]
        %v328 = vld [vmem:[%s274 + $0x58] sm:$0xff]
        %v329 = vld [vmem:[%s274 + $0x60] sm:$0xff]
        %v330 = vld [vmem:[%s274 + $0x68] sm:$0xff]
        %v331 = vld [vmem:[%s274 + $0x70] sm:$0xff]
        %v332 = vld [vmem:[%s274 + $0x78] sm:$0xff]
        %v333 = vld [vmem:[#allocation5] sm:$0xff]
        %v334 = vld [vmem:[#allocation5 + $0x8] sm:$0xff]
        %v335 = vld [vmem:[#allocation5 + $0x10] sm:$0xff]
        %v336 = vld [vmem:[#allocation5 + $0x18] sm:$0xff]
        %v337 = vld [vmem:[#allocation5 + $0x20] sm:$0xff]
        %v338 = vld [vmem:[#allocation5 + $0x28] sm:$0xff]
        %v339 = vld [vmem:[#allocation5 + $0x30] sm:$0xff]
        %v340 = vld [vmem:[#allocation5 + $0x38] sm:$0xff]
        %v341 = vadd.f32 %v317, %v333
        %v342 = vadd.f32 %v318, %v334
        %v343 = vadd.f32 %v319, %v335
        %v344 = vadd.f32 %v320, %v336
        %v345 = vadd.f32 %v321, %v337
        %v346 = vadd.f32 %v322, %v338
        %v347 = vadd.f32 %v323, %v339
        %v348 = vadd.f32 %v324, %v340
        %v349 = vadd.f32 %v325, %v333
        %v350 = vadd.f32 %v326, %v334
        %v351 = vadd.f32 %v327, %v335
        %v352 = vadd.f32 %v328, %v336
        %v353 = vadd.f32 %v329, %v337
        %v354 = vadd.f32 %v330, %v338
        %v355 = vadd.f32 %v331, %v339
        %v356 = vadd.f32 %v332, %v340
        %v357 = vld [vmem:[#allocation7] sm:$0xff]
        %v358 = vld [vmem:[#allocation7 + $0x8] sm:$0xff]
        %v359 = vld [vmem:[#allocation7 + $0x10] sm:$0xff]
        %v360 = vld [vmem:[#allocation7 + $0x18] sm:$0xff]
        %v361 = vld [vmem:[#allocation7 + $0x20] sm:$0xff]
        %v362 = vld [vmem:[#allocation7 + $0x28] sm:$0xff]
        %v363 = vld [vmem:[#allocation7 + $0x30] sm:$0xff]
        %v364 = vld [vmem:[#allocation7 + $0x38] sm:$0xff]
        %v365 = vld [vmem:[#allocation7 + $0x40] sm:$0xff]
        %v366 = vld [vmem:[#allocation7 + $0x48] sm:$0xff]
        %v367 = vld [vmem:[#allocation7 + $0x50] sm:$0xff]
        %v368 = vld [vmem:[#allocation7 + $0x58] sm:$0xff]
        %v369 = vld [vmem:[#allocation7 + $0x60] sm:$0xff]
        %v370 = vld [vmem:[#allocation7 + $0x68] sm:$0xff]
        %v371 = vld [vmem:[#allocation7 + $0x70] sm:$0xff]
        %v372 = vld [vmem:[#allocation7 + $0x78] sm:$0xff]
        %v373 = vld [vmem:[#allocation7 + $0x80] sm:$0xff]
        %v374 = vld [vmem:[#allocation7 + $0x88] sm:$0xff]
        %v375 = vld [vmem:[#allocation7 + $0x90] sm:$0xff]
        %v376 = vld [vmem:[#allocation7 + $0x98] sm:$0xff]
        %v377 = vld [vmem:[#allocation7 + $0xa0] sm:$0xff]
        %v378 = vld [vmem:[#allocation7 + $0xa8] sm:$0xff]
        %v379 = vld [vmem:[#allocation7 + $0xb0] sm:$0xff]
        %v380 = vld [vmem:[#allocation7 + $0xb8] sm:$0xff]
        %v381 = vld [vmem:[#allocation7 + $0xc0] sm:$0xff]
        %v382 = vld [vmem:[#allocation7 + $0xc8] sm:$0xff]
        %v383 = vld [vmem:[#allocation7 + $0xd0] sm:$0xff]
        %v384 = vld [vmem:[#allocation7 + $0xd8] sm:$0xff]
        %v385 = vld [vmem:[#allocation7 + $0xe0] sm:$0xff]
        %v386 = vld [vmem:[#allocation7 + $0xe8] sm:$0xff]
        %v387 = vld [vmem:[#allocation7 + $0xf0] sm:$0xff]
        %v388 = vld [vmem:[#allocation7 + $0xf8] sm:$0xff]
        %v389 = vld [vmem:[#allocation7 + $0x100] sm:$0xff]
        %v390 = vld [vmem:[#allocation7 + $0x108] sm:$0xff]
        %v391 = vld [vmem:[#allocation7 + $0x110] sm:$0xff]
        %v392 = vld [vmem:[#allocation7 + $0x118] sm:$0xff]
        %v393 = vld [vmem:[#allocation7 + $0x120] sm:$0xff]
        %v394 = vld [vmem:[#allocation7 + $0x128] sm:$0xff]
        %v395 = vld [vmem:[#allocation7 + $0x130] sm:$0xff]
        %v396 = vld [vmem:[#allocation7 + $0x138] sm:$0xff]
        %v397 = vld [vmem:[#allocation7 + $0x140] sm:$0xff]
        %v398 = vld [vmem:[#allocation7 + $0x148] sm:$0xff]
        %v399 = vld [vmem:[#allocation7 + $0x150] sm:$0xff]
        %v400 = vld [vmem:[#allocation7 + $0x158] sm:$0xff]
        %v401 = vld [vmem:[#allocation7 + $0x160] sm:$0xff]
        %v402 = vld [vmem:[#allocation7 + $0x168] sm:$0xff]
        %v403 = vld [vmem:[#allocation7 + $0x170] sm:$0xff]
        %v404 = vld [vmem:[#allocation7 + $0x178] sm:$0xff]
        %405 = vmatprep.subr.mxu0 %v358
        %406 = vmatpush1.msra.mxu0 %v357
        %407 = vmatprep.subr.mxu0 %v361
        %408 = vmatpush1.msra.mxu0 %v360
        %409 = vmatprep.subr.mxu0 %v364
        %410 = vmatpush1.msra.mxu0 %v363
        %411 = vmatprep.subr.mxu0 %v367
        %412 = vmatpush1.msra.mxu0 %v366
        %413 = vmatprep.subr.mxu0 %v370
        %414 = vmatpush1.msra.mxu0 %v369
        %415 = vmatprep.subr.mxu0 %v373
        %416 = vmatpush1.msra.mxu0 %v372
        %417 = vmatprep.subr.mxu0 %v376
        %418 = vmatpush1.msra.mxu0 %v375
        %419 = vmatprep.subr.mxu0 %v379
        %420 = vmatpush1.msra.mxu0 %v378
        %421 = vmatprep.subr.mxu0 %v382
        %422 = vmatpush1.msra.mxu0 %v381
        %423 = vmatprep.subr.mxu0 %v385
        %424 = vmatpush1.msra.mxu0 %v384
        %425 = vmatprep.subr.mxu0 %v388
        %426 = vmatpush1.msra.mxu0 %v387
        %427 = vmatprep.subr.mxu0 %v391
        %428 = vmatpush1.msra.mxu0 %v390
        %429 = vmatprep.subr.mxu0 %v394
        %430 = vmatpush1.msra.mxu0 %v393
        %431 = vmatprep.subr.mxu0 %v397
        %432 = vmatpush1.msra.mxu0 %v396
        %433 = vmatprep.subr.mxu0 %v400
        %434 = vmatpush1.msra.mxu0 %v399
        %435 = vmatprep.subr.mxu0 %v403
        %436 = vmatpush1.msra.mxu0 %v402
        %437 = vmatprep.subr.mxu0 0.0
        %438 = vmatpush1.msra.mxu0 0.0
        %439 = vmatprep.subr.mxu0 0.0
        %440 = vmatpush1.msra.mxu0 0.0
        %441 = vmatprep.subr.mxu0 0.0
        %442 = vmatpush1.msra.mxu0 0.0
        %443 = vmatprep.subr.mxu0 0.0
        %444 = vmatpush1.msra.mxu0 0.0
        %445 = vmatprep.subr.mxu0 0.0
        %446 = vmatpush1.msra.mxu0 0.0
        %447 = vmatprep.subr.mxu0 0.0
        %448 = vmatpush1.msra.mxu0 0.0
        %449 = vmatprep.subr.mxu0 0.0
        %450 = vmatpush1.msra.mxu0 0.0
        %451 = vmatprep.subr.mxu0 0.0
        %452 = vmatpush1.msra.mxu0 0.0
        %453 = vmatprep.subr.mxu0 0.0
        %454 = vmatpush1.msra.mxu0 0.0
        %455 = vmatprep.subr.mxu0 0.0
        %456 = vmatpush1.msra.mxu0 0.0
        %457 = vmatprep.subr.mxu0 0.0
        %458 = vmatpush1.msra.mxu0 0.0
        %459 = vmatprep.subr.mxu0 0.0
        %460 = vmatpush1.msra.mxu0 0.0
        %461 = vmatprep.subr.mxu0 0.0
        %462 = vmatpush1.msra.mxu0 0.0
        %463 = vmatprep.subr.mxu0 0.0
        %464 = vmatpush1.msra.mxu0 0.0
        %465 = vmatprep.subr.mxu0 0.0
        %466 = vmatpush1.msra.mxu0 0.0
        %467 = vmatprep.subr.mxu0 0.0
        %468 = vmatpush1.msra.mxu0 0.0
        %469 = vmatprep.mubr.f32.mxu0 0.0
        %470 = vmatmul.mubr.f32.gmra.mrb[0].mxu0 %v341
        %v471 = vpop.f32.mrb[0].mxu0
        %v472 = vadd.f32 0.0, %v471
        %v473 = vpop.f32.mrb[0].mxu0
        %v474 = vadd.f32 0.0, %v473
        %475 = vmatprep.mubr.f32.mxu0 0.0
        %476 = vmatmul.mubr.f32.gmra.mrb[0].mxu0 %v342
        %v477 = vpop.f32.mrb[0].mxu0
        %v478 = vadd.f32 0.0, %v477
        %v479 = vpop.f32.mrb[0].mxu0
        %v480 = vadd.f32 0.0, %v479
        %481 = vmatprep.mubr.f32.mxu0 0.0
        %482 = vmatmul.mubr.f32.gmra.mrb[0].mxu0 %v343
        %v483 = vpop.f32.mrb[0].mxu0
        %v484 = vadd.f32 0.0, %v483
        %v485 = vpop.f32.mrb[0].mxu0
        %v486 = vadd.f32 0.0, %v485
        %487 = vmatprep.mubr.f32.mxu0 0.0
        %488 = vmatmul.mubr.f32.gmra.mrb[0].mxu0 %v344
        %v489 = vpop.f32.mrb[0].mxu0
        %v490 = vadd.f32 0.0, %v489
        %v491 = vpop.f32.mrb[0].mxu0
        %v492 = vadd.f32 0.0, %v491
        %493 = vmatprep.mubr.f32.mxu0 0.0
        %494 = vmatmul.mubr.f32.gmra.mrb[0].mxu0 %v345
        %v495 = vpop.f32.mrb[0].mxu0
        %v496 = vadd.f32 0.0, %v495
        %v497 = vpop.f32.mrb[0].mxu0
        %v498 = vadd.f32 0.0, %v497
        %499 = vmatprep.mubr.f32.mxu0 0.0
        %500 = vmatmul.mubr.f32.gmra.mrb[0].mxu0 %v346
        %v501 = vpop.f32.mrb[0].mxu0
        %v502 = vadd.f32 0.0, %v501
        %v503 = vpop.f32.mrb[0].mxu0
        %v504 = vadd.f32 0.0, %v503
        %505 = vmatprep.mubr.f32.mxu0 0.0
        %506 = vmatmul.mubr.f32.gmra.mrb[0].mxu0 %v347
        %v507 = vpop.f32.mrb[0].mxu0
        %v508 = vadd.f32 0.0, %v507
        %v509 = vpop.f32.mrb[0].mxu0
        %v510 = vadd.f32 0.0, %v509
        %511 = vmatprep.mubr.f32.mxu0 0.0
        %512 = vmatmul.mubr.f32.gmra.mrb[0].mxu0 %v348
        %v513 = vpop.f32.mrb[0].mxu0
        %v514 = vadd.f32 0.0, %v513
        %v515 = vpop.f32.mrb[0].mxu0
        %v516 = vadd.f32 0.0, %v515
        %517 = vmatprep.mubr.f32.mxu0 0.0
        %518 = vmatmul.mubr.f32.gmra.mrb[0].mxu0 %v349
        %v519 = vpop.f32.mrb[0].mxu0
        %v520 = vadd.f32 0.0, %v519
        %v521 = vpop.f32.mrb[0].mxu0
        %v522 = vadd.f32 0.0, %v521
        %523 = vmatprep.mubr.f32.mxu0 0.0
        %524 = vmatmul.mubr.f32.gmra.mrb[0].mxu0 %v350
        %v525 = vpop.f32.mrb[0].mxu0
        %v526 = vadd.f32 0.0, %v525
        %v527 = vpop.f32.mrb[0].mxu0
        %v528 = vadd.f32 0.0, %v527
        %529 = vmatprep.mubr.f32.mxu0 0.0
        %530 = vmatmul.mubr.f32.gmra.mrb[0].mxu0 %v351
        %v531 = vpop.f32.mrb[0].mxu0
        %v532 = vadd.f32 0.0, %v531
        %v533 = vpop.f32.mrb[0].mxu0
        %v534 = vadd.f32 0.0, %v533
        %535 = vmatprep.mubr.f32.mxu0 0.0
        %536 = vmatmul.mubr.f32.gmra.mrb[0].mxu0 %v352
        %v537 = vpop.f32.mrb[0].mxu0
        %v538 = vadd.f32 0.0, %v537
        %v539 = vpop.f32.mrb[0].mxu0
        %v540 = vadd.f32 0.0, %v539
        %541 = vmatprep.mubr.f32.mxu0 0.0
        %542 = vmatmul.mubr.f32.gmra.mrb[0].mxu0 %v353
        %v543 = vpop.f32.mrb[0].mxu0
        %v544 = vadd.f32 0.0, %v543
        %v545 = vpop.f32.mrb[0].mxu0
        %v546 = vadd.f32 0.0, %v545
        %547 = vmatprep.mubr.f32.mxu0 0.0
        %548 = vmatmul.mubr.f32.gmra.mrb[0].mxu0 %v354
        %v549 = vpop.f32.mrb[0].mxu0
        %v550 = vadd.f32 0.0, %v549
        %v551 = vpop.f32.mrb[0].mxu0
        %v552 = vadd.f32 0.0, %v551
        %553 = vmatprep.mubr.f32.mxu0 0.0
        %554 = vmatmul.mubr.f32.gmra.mrb[0].mxu0 %v355
        %v555 = vpop.f32.mrb[0].mxu0
        %v556 = vadd.f32 0.0, %v555
        %v557 = vpop.f32.mrb[0].mxu0
        %v558 = vadd.f32 0.0, %v557
        %559 = vmatprep.mubr.f32.mxu0 0.0
        %560 = vmatmul.mubr.f32.gmra.mrb[0].mxu0 %v356
        %v561 = vpop.f32.mrb[0].mxu0
        %v562 = vadd.f32 0.0, %v561
        %v563 = vpop.f32.mrb[0].mxu0
        %v564 = vadd.f32 0.0, %v563
        %565 = vdwg.mxu0
        %566 = vmatprep.subr.mxu0 0.0
        %567 = vmatpush1.msra.mxu0 %v359
        %568 = vmatprep.subr.mxu0 0.0
        %569 = vmatpush1.msra.mxu0 %v362
        %570 = vmatprep.subr.mxu0 0.0
        %571 = vmatpush1.msra.mxu0 %v365
        %572 = vmatprep.subr.mxu0 0.0
        %573 = vmatpush1.msra.mxu0 %v368
        %574 = vmatprep.subr.mxu0 0.0
        %575 = vmatpush1.msra.mxu0 %v371
        %576 = vmatprep.subr.mxu0 0.0
        %577 = vmatpush1.msra.mxu0 %v374
        %578 = vmatprep.subr.mxu0 0.0
        %579 = vmatpush1.msra.mxu0 %v377
        %580 = vmatprep.subr.mxu0 0.0
        %581 = vmatpush1.msra.mxu0 %v380
        %582 = vmatprep.subr.mxu0 0.0
        %583 = vmatpush1.msra.mxu0 %v383
        %584 = vmatprep.subr.mxu0 0.0
        %585 = vmatpush1.msra.mxu0 %v386
        %586 = vmatprep.subr.mxu0 0.0
        %587 = vmatpush1.msra.mxu0 %v389
        %588 = vmatprep.subr.mxu0 0.0
        %589 = vmatpush1.msra.mxu0 %v392
        %590 = vmatprep.subr.mxu0 0.0
        %591 = vmatpush1.msra.mxu0 %v395
        %592 = vmatprep.subr.mxu0 0.0
        %593 = vmatpush1.msra.mxu0 %v398
        %594 = vmatprep.subr.mxu0 0.0
        %595 = vmatpush1.msra.mxu0 %v401
        %596 = vmatprep.subr.mxu0 0.0
        %597 = vmatpush1.msra.mxu0 %v404
        %598 = vmatprep.subr.mxu0 0.0
        %599 = vmatpush1.msra.mxu0 0.0
        %600 = vmatprep.subr.mxu0 0.0
        %601 = vmatpush1.msra.mxu0 0.0
        %602 = vmatprep.subr.mxu0 0.0
        %603 = vmatpush1.msra.mxu0 0.0
        %604 = vmatprep.subr.mxu0 0.0
        %605 = vmatpush1.msra.mxu0 0.0
        %606 = vmatprep.subr.mxu0 0.0
        %607 = vmatpush1.msra.mxu0 0.0
        %608 = vmatprep.subr.mxu0 0.0
        %609 = vmatpush1.msra.mxu0 0.0
        %610 = vmatprep.subr.mxu0 0.0
        %611 = vmatpush1.msra.mxu0 0.0
        %612 = vmatprep.subr.mxu0 0.0
        %613 = vmatpush1.msra.mxu0 0.0
        %614 = vmatprep.subr.mxu0 0.0
        %615 = vmatpush1.msra.mxu0 0.0
        %616 = vmatprep.subr.mxu0 0.0
        %617 = vmatpush1.msra.mxu0 0.0
        %618 = vmatprep.subr.mxu0 0.0
        %619 = vmatpush1.msra.mxu0 0.0
        %620 = vmatprep.subr.mxu0 0.0
        %621 = vmatpush1.msra.mxu0 0.0
        %622 = vmatprep.subr.mxu0 0.0
        %623 = vmatpush1.msra.mxu0 0.0
        %624 = vmatprep.subr.mxu0 0.0
        %625 = vmatpush1.msra.mxu0 0.0
        %626 = vmatprep.subr.mxu0 0.0
        %627 = vmatpush1.msra.mxu0 0.0
        %628 = vmatprep.subr.mxu0 0.0
        %629 = vmatpush1.msra.mxu0 0.0
        %630 = vmatprep.mubr.f32.mxu0 0.0
        %631 = vmatmul.mubr.f32.gmra.mrb[0].mxu0 %v341
        %v632 = vpop.f32.mrb[0].mxu0
        %v633 = vadd.f32 0.0, %v632
        %v634 = vpop.f32.mrb[0].mxu0
        %635 = vmatprep.mubr.f32.mxu0 0.0
        %636 = vmatmul.mubr.f32.gmra.mrb[0].mxu0 %v342
        %v637 = vpop.f32.mrb[0].mxu0
        %v638 = vadd.f32 0.0, %v637
        %v639 = vpop.f32.mrb[0].mxu0
        %640 = vmatprep.mubr.f32.mxu0 0.0
        %641 = vmatmul.mubr.f32.gmra.mrb[0].mxu0 %v343
        %v642 = vpop.f32.mrb[0].mxu0
        %v643 = vadd.f32 0.0, %v642
        %v644 = vpop.f32.mrb[0].mxu0
        %645 = vmatprep.mubr.f32.mxu0 0.0
        %646 = vmatmul.mubr.f32.gmra.mrb[0].mxu0 %v344
        %v647 = vpop.f32.mrb[0].mxu0
        %v648 = vadd.f32 0.0, %v647
        %v649 = vpop.f32.mrb[0].mxu0
        %650 = vmatprep.mubr.f32.mxu0 0.0
        %651 = vmatmul.mubr.f32.gmra.mrb[0].mxu0 %v345
        %v652 = vpop.f32.mrb[0].mxu0
        %v653 = vadd.f32 0.0, %v652
        %v654 = vpop.f32.mrb[0].mxu0
        %655 = vmatprep.mubr.f32.mxu0 0.0
        %656 = vmatmul.mubr.f32.gmra.mrb[0].mxu0 %v346
        %v657 = vpop.f32.mrb[0].mxu0
        %v658 = vadd.f32 0.0, %v657
        %v659 = vpop.f32.mrb[0].mxu0
        %660 = vmatprep.mubr.f32.mxu0 0.0
        %661 = vmatmul.mubr.f32.gmra.mrb[0].mxu0 %v347
        %v662 = vpop.f32.mrb[0].mxu0
        %v663 = vadd.f32 0.0, %v662
        %v664 = vpop.f32.mrb[0].mxu0
        %665 = vmatprep.mubr.f32.mxu0 0.0
        %666 = vmatmul.mubr.f32.gmra.mrb[0].mxu0 %v348
        %v667 = vpop.f32.mrb[0].mxu0
        %v668 = vadd.f32 0.0, %v667
        %v669 = vpop.f32.mrb[0].mxu0
        %670 = vmatprep.mubr.f32.mxu0 0.0
        %671 = vmatmul.mubr.f32.gmra.mrb[0].mxu0 %v349
        %v672 = vpop.f32.mrb[0].mxu0
        %v673 = vadd.f32 0.0, %v672
        %v674 = vpop.f32.mrb[0].mxu0
        %675 = vmatprep.mubr.f32.mxu0 0.0
        %676 = vmatmul.mubr.f32.gmra.mrb[0].mxu0 %v350
        %v677 = vpop.f32.mrb[0].mxu0
        %v678 = vadd.f32 0.0, %v677
        %v679 = vpop.f32.mrb[0].mxu0
        %680 = vmatprep.mubr.f32.mxu0 0.0
        %681 = vmatmul.mubr.f32.gmra.mrb[0].mxu0 %v351
        %v682 = vpop.f32.mrb[0].mxu0
        %v683 = vadd.f32 0.0, %v682
        %v684 = vpop.f32.mrb[0].mxu0
        %685 = vmatprep.mubr.f32.mxu0 0.0
        %686 = vmatmul.mubr.f32.gmra.mrb[0].mxu0 %v352
        %v687 = vpop.f32.mrb[0].mxu0
        %v688 = vadd.f32 0.0, %v687
        %v689 = vpop.f32.mrb[0].mxu0
        %690 = vmatprep.mubr.f32.mxu0 0.0
        %691 = vmatmul.mubr.f32.gmra.mrb[0].mxu0 %v353
        %v692 = vpop.f32.mrb[0].mxu0
        %v693 = vadd.f32 0.0, %v692
        %v694 = vpop.f32.mrb[0].mxu0
        %695 = vmatprep.mubr.f32.mxu0 0.0
        %696 = vmatmul.mubr.f32.gmra.mrb[0].mxu0 %v354
        %v697 = vpop.f32.mrb[0].mxu0
        %v698 = vadd.f32 0.0, %v697
        %v699 = vpop.f32.mrb[0].mxu0
        %700 = vmatprep.mubr.f32.mxu0 0.0
        %701 = vmatmul.mubr.f32.gmra.mrb[0].mxu0 %v355
        %v702 = vpop.f32.mrb[0].mxu0
        %v703 = vadd.f32 0.0, %v702
        %v704 = vpop.f32.mrb[0].mxu0
        %705 = vmatprep.mubr.f32.mxu0 0.0
        %706 = vmatmul.mubr.f32.gmra.mrb[0].mxu0 %v356
        %v707 = vpop.f32.mrb[0].mxu0
        %v708 = vadd.f32 0.0, %v707
        %v709 = vpop.f32.mrb[0].mxu0
        %710 = vdwg.mxu0
        %vm711 = vcmask 261120
        %v713 = vsel %vm711, %v472, 0
        %v716 = vsel %vm711, %v478, 0
        %v719 = vsel %vm711, %v484, 0
        %v722 = vsel %vm711, %v490, 0
        %v725 = vsel %vm711, %v496, 0
        %v728 = vsel %vm711, %v502, 0
        %v731 = vsel %vm711, %v508, 0
        %v734 = vsel %vm711, %v514, 0
        %v737 = vsel %vm711, %v474, 0
        %v740 = vsel %vm711, %v480, 0
        %v743 = vsel %vm711, %v486, 0
        %v746 = vsel %vm711, %v492, 0
        %v749 = vsel %vm711, %v498, 0
        %v752 = vsel %vm711, %v504, 0
        %v755 = vsel %vm711, %v510, 0
        %v758 = vsel %vm711, %v516, 0
        %760 = vmatprep.subr.mxu0 0.0
        %761 = vmatpush1.xpose.msra.mxu0 %v737
        %762 = vmatprep.subr.mxu0 0.0
        %763 = vmatpush1.xpose.msra.mxu0 %v740
        %764 = vmatprep.subr.mxu0 0.0
        %765 = vmatpush1.xpose.msra.mxu0 %v743
        %766 = vmatprep.subr.mxu0 0.0
        %767 = vmatpush1.xpose.msra.mxu0 %v746
        %768 = vmatprep.subr.mxu0 0.0
        %769 = vmatpush1.xpose.msra.mxu0 %v749
        %770 = vmatprep.subr.mxu0 0.0
        %771 = vmatpush1.xpose.msra.mxu0 %v752
        %772 = vmatprep.subr.mxu0 0.0
        %773 = vmatpush1.xpose.msra.mxu0 %v755
        %774 = vmatprep.subr.mxu0 0.0
        %775 = vmatpush1.xpose.msra.mxu0 %v758
        %776 = vmatprep.subr.mxu0 0.0
        %777 = vmatpush1.xpose.msra.mxu0 0.0
        %778 = vmatprep.subr.mxu0 0.0
        %779 = vmatpush1.xpose.msra.mxu0 0.0
        %780 = vmatprep.subr.mxu0 0.0
        %781 = vmatpush1.xpose.msra.mxu0 0.0
        %782 = vmatprep.subr.mxu0 0.0
        %783 = vmatpush1.xpose.msra.mxu0 0.0
        %784 = vmatprep.subr.mxu0 0.0
        %785 = vmatpush1.xpose.msra.mxu0 0.0
        %786 = vmatprep.subr.mxu0 0.0
        %787 = vmatpush1.xpose.msra.mxu0 0.0
        %788 = vmatprep.subr.mxu0 0.0
        %789 = vmatpush1.xpose.msra.mxu0 0.0
        %790 = vmatprep.subr.mxu0 0.0
        %791 = vmatpush1.xpose.msra.mxu0 0.0
        %792 = vmatprep.subr.mxu0 0.0
        %793 = vmatpush1.xpose.msra.mxu0 0.0
        %794 = vmatprep.subr.mxu0 0.0
        %795 = vmatpush1.xpose.msra.mxu0 0.0
        %796 = vmatprep.subr.mxu0 0.0
        %797 = vmatpush1.xpose.msra.mxu0 0.0
        %798 = vmatprep.subr.mxu0 0.0
        %799 = vmatpush1.xpose.msra.mxu0 0.0
        %800 = vmatprep.subr.mxu0 0.0
        %801 = vmatpush1.xpose.msra.mxu0 0.0
        %802 = vmatprep.subr.mxu0 0.0
        %803 = vmatpush1.xpose.msra.mxu0 0.0
        %804 = vmatprep.subr.mxu0 0.0
        %805 = vmatpush1.xpose.msra.mxu0 0.0
        %806 = vmatprep.subr.mxu0 0.0
        %807 = vmatpush1.xpose.msra.mxu0 0.0
        %808 = vmatprep.subr.mxu0 0.0
        %809 = vmatpush1.xpose.msra.mxu0 0.0
        %810 = vmatprep.subr.mxu0 0.0
        %811 = vmatpush1.xpose.msra.mxu0 0.0
        %812 = vmatprep.subr.mxu0 0.0
        %813 = vmatpush1.xpose.msra.mxu0 0.0
        %814 = vmatprep.subr.mxu0 0.0
        %815 = vmatpush1.xpose.msra.mxu0 0.0
        %816 = vmatprep.subr.mxu0 0.0
        %817 = vmatpush1.xpose.msra.mxu0 0.0
        %818 = vmatprep.subr.mxu0 0.0
        %819 = vmatpush1.xpose.msra.mxu0 0.0
        %820 = vmatprep.subr.mxu0 0.0
        %821 = vmatpush1.xpose.msra.mxu0 0.0
        %822 = vmatprep.subr.mxu0 0.0
        %823 = vmatpush1.xpose.msra.mxu0 0.0
        %824 = vmatprep.mubr.f32.mxu0 0.0
        %825 = vmatmul.mubr.f32.gmra.mrb[0].mxu0 %v713
        %v826 = vpop.f32.mrb[0].mxu0
        %v827 = vadd.f32 0.0, %v826
        %v828 = vpop.f32.mrb[0].mxu0
        %829 = vmatprep.mubr.f32.mxu0 0.0
        %830 = vmatmul.mubr.f32.gmra.mrb[0].mxu0 %v716
        %v831 = vpop.f32.mrb[0].mxu0
        %v832 = vadd.f32 0.0, %v831
        %v833 = vpop.f32.mrb[0].mxu0
        %834 = vmatprep.mubr.f32.mxu0 0.0
        %835 = vmatmul.mubr.f32.gmra.mrb[0].mxu0 %v719
        %v836 = vpop.f32.mrb[0].mxu0
        %v837 = vadd.f32 0.0, %v836
        %v838 = vpop.f32.mrb[0].mxu0
        %839 = vmatprep.mubr.f32.mxu0 0.0
        %840 = vmatmul.mubr.f32.gmra.mrb[0].mxu0 %v722
        %v841 = vpop.f32.mrb[0].mxu0
        %v842 = vadd.f32 0.0, %v841
        %v843 = vpop.f32.mrb[0].mxu0
        %844 = vmatprep.mubr.f32.mxu0 0.0
        %845 = vmatmul.mubr.f32.gmra.mrb[0].mxu0 %v725
        %v846 = vpop.f32.mrb[0].mxu0
        %v847 = vadd.f32 0.0, %v846
        %v848 = vpop.f32.mrb[0].mxu0
        %849 = vmatprep.mubr.f32.mxu0 0.0
        %850 = vmatmul.mubr.f32.gmra.mrb[0].mxu0 %v728
        %v851 = vpop.f32.mrb[0].mxu0
        %v852 = vadd.f32 0.0, %v851
        %v853 = vpop.f32.mrb[0].mxu0
        %854 = vmatprep.mubr.f32.mxu0 0.0
        %855 = vmatmul.mubr.f32.gmra.mrb[0].mxu0 %v731
        %v856 = vpop.f32.mrb[0].mxu0
        %v857 = vadd.f32 0.0, %v856
        %v858 = vpop.f32.mrb[0].mxu0
        %859 = vmatprep.mubr.f32.mxu0 0.0
        %860 = vmatmul.mubr.f32.gmra.mrb[0].mxu0 %v734
        %v861 = vpop.f32.mrb[0].mxu0
        %v862 = vadd.f32 0.0, %v861
        %v863 = vpop.f32.mrb[0].mxu0
        %864 = vdwg.mxu0
        %v866 = vsel %vm711, %v520, 0
        %v869 = vsel %vm711, %v526, 0
        %v872 = vsel %vm711, %v532, 0
        %v875 = vsel %vm711, %v538, 0
        %v878 = vsel %vm711, %v544, 0
        %v881 = vsel %vm711, %v550, 0
        %v884 = vsel %vm711, %v556, 0
        %v887 = vsel %vm711, %v562, 0
        %v890 = vsel %vm711, %v522, 0
        %v893 = vsel %vm711, %v528, 0
        %v896 = vsel %vm711, %v534, 0
        %v899 = vsel %vm711, %v540, 0
        %v902 = vsel %vm711, %v546, 0
        %v905 = vsel %vm711, %v552, 0
        %v908 = vsel %vm711, %v558, 0
        %v911 = vsel %vm711, %v564, 0
        %913 = vmatprep.subr.mxu0 0.0
        %914 = vmatpush1.xpose.msra.mxu0 %v890
        %915 = vmatprep.subr.mxu0 0.0
        %916 = vmatpush1.xpose.msra.mxu0 %v893
        %917 = vmatprep.subr.mxu0 0.0
        %918 = vmatpush1.xpose.msra.mxu0 %v896
        %919 = vmatprep.subr.mxu0 0.0
        %920 = vmatpush1.xpose.msra.mxu0 %v899
        %921 = vmatprep.subr.mxu0 0.0
        %922 = vmatpush1.xpose.msra.mxu0 %v902
        %923 = vmatprep.subr.mxu0 0.0
        %924 = vmatpush1.xpose.msra.mxu0 %v905
        %925 = vmatprep.subr.mxu0 0.0
        %926 = vmatpush1.xpose.msra.mxu0 %v908
        %927 = vmatprep.subr.mxu0 0.0
        %928 = vmatpush1.xpose.msra.mxu0 %v911
        %929 = vmatprep.subr.mxu0 0.0
        %930 = vmatpush1.xpose.msra.mxu0 0.0
        %931 = vmatprep.subr.mxu0 0.0
        %932 = vmatpush1.xpose.msra.mxu0 0.0
        %933 = vmatprep.subr.mxu0 0.0
        %934 = vmatpush1.xpose.msra.mxu0 0.0
        %935 = vmatprep.subr.mxu0 0.0
        %936 = vmatpush1.xpose.msra.mxu0 0.0
        %937 = vmatprep.subr.mxu0 0.0
        %938 = vmatpush1.xpose.msra.mxu0 0.0
        %939 = vmatprep.subr.mxu0 0.0
        %940 = vmatpush1.xpose.msra.mxu0 0.0
        %941 = vmatprep.subr.mxu0 0.0
        %942 = vmatpush1.xpose.msra.mxu0 0.0
        %943 = vmatprep.subr.mxu0 0.0
        %944 = vmatpush1.xpose.msra.mxu0 0.0
        %945 = vmatprep.subr.mxu0 0.0
        %946 = vmatpush1.xpose.msra.mxu0 0.0
        %947 = vmatprep.subr.mxu0 0.0
        %948 = vmatpush1.xpose.msra.mxu0 0.0
        %949 = vmatprep.subr.mxu0 0.0
        %950 = vmatpush1.xpose.msra.mxu0 0.0
        %951 = vmatprep.subr.mxu0 0.0
        %952 = vmatpush1.xpose.msra.mxu0 0.0
        %953 = vmatprep.subr.mxu0 0.0
        %954 = vmatpush1.xpose.msra.mxu0 0.0
        %955 = vmatprep.subr.mxu0 0.0
        %956 = vmatpush1.xpose.msra.mxu0 0.0
        %957 = vmatprep.subr.mxu0 0.0
        %958 = vmatpush1.xpose.msra.mxu0 0.0
        %959 = vmatprep.subr.mxu0 0.0
        %960 = vmatpush1.xpose.msra.mxu0 0.0
        %961 = vmatprep.subr.mxu0 0.0
        %962 = vmatpush1.xpose.msra.mxu0 0.0
        %963 = vmatprep.subr.mxu0 0.0
        %964 = vmatpush1.xpose.msra.mxu0 0.0
        %965 = vmatprep.subr.mxu0 0.0
        %966 = vmatpush1.xpose.msra.mxu0 0.0
        %967 = vmatprep.subr.mxu0 0.0
        %968 = vmatpush1.xpose.msra.mxu0 0.0
        %969 = vmatprep.subr.mxu0 0.0
        %970 = vmatpush1.xpose.msra.mxu0 0.0
        %971 = vmatprep.subr.mxu0 0.0
        %972 = vmatpush1.xpose.msra.mxu0 0.0
        %973 = vmatprep.subr.mxu0 0.0
        %974 = vmatpush1.xpose.msra.mxu0 0.0
        %975 = vmatprep.subr.mxu0 0.0
        %976 = vmatpush1.xpose.msra.mxu0 0.0
        %977 = vmatprep.mubr.f32.mxu0 0.0
        %978 = vmatmul.mubr.f32.gmra.mrb[0].mxu0 %v866
        %v979 = vpop.f32.mrb[0].mxu0
        %v980 = vadd.f32 0.0, %v979
        %v981 = vpop.f32.mrb[0].mxu0
        %982 = vmatprep.mubr.f32.mxu0 0.0
        %983 = vmatmul.mubr.f32.gmra.mrb[0].mxu0 %v869
        %v984 = vpop.f32.mrb[0].mxu0
        %v985 = vadd.f32 0.0, %v984
        %v986 = vpop.f32.mrb[0].mxu0
        %987 = vmatprep.mubr.f32.mxu0 0.0
        %988 = vmatmul.mubr.f32.gmra.mrb[0].mxu0 %v872
        %v989 = vpop.f32.mrb[0].mxu0
        %v990 = vadd.f32 0.0, %v989
        %v991 = vpop.f32.mrb[0].mxu0
        %992 = vmatprep.mubr.f32.mxu0 0.0
        %993 = vmatmul.mubr.f32.gmra.mrb[0].mxu0 %v875
        %v994 = vpop.f32.mrb[0].mxu0
        %v995 = vadd.f32 0.0, %v994
        %v996 = vpop.f32.mrb[0].mxu0
        %997 = vmatprep.mubr.f32.mxu0 0.0
        %998 = vmatmul.mubr.f32.gmra.mrb[0].mxu0 %v878
        %v999 = vpop.f32.mrb[0].mxu0
        %v1000 = vadd.f32 0.0, %v999
        %v1001 = vpop.f32.mrb[0].mxu0
        %1002 = vmatprep.mubr.f32.mxu0 0.0
        %1003 = vmatmul.mubr.f32.gmra.mrb[0].mxu0 %v881
        %v1004 = vpop.f32.mrb[0].mxu0
        %v1005 = vadd.f32 0.0, %v1004
        %v1006 = vpop.f32.mrb[0].mxu0
        %1007 = vmatprep.mubr.f32.mxu0 0.0
        %1008 = vmatmul.mubr.f32.gmra.mrb[0].mxu0 %v884
        %v1009 = vpop.f32.mrb[0].mxu0
        %v1010 = vadd.f32 0.0, %v1009
        %v1011 = vpop.f32.mrb[0].mxu0
        %1012 = vmatprep.mubr.f32.mxu0 0.0
        %1013 = vmatmul.mubr.f32.gmra.mrb[0].mxu0 %v887
        %v1014 = vpop.f32.mrb[0].mxu0
        %v1015 = vadd.f32 0.0, %v1014
        %v1016 = vpop.f32.mrb[0].mxu0
        %1017 = vdwg.mxu0
        %vm1018 = vcmask 523264
        %v1019 = vsel %vm1018, %v827, -inf
        %1020 = vmax.xlane.f32.xlu0 %v1019
        %v1021 = vpop.xlane.xlu0 %1020
        %v1022 = vsel %vm1018, %v832, -inf
        %1023 = vmax.xlane.f32.xlu0 %v1022
        %v1024 = vpop.xlane.xlu0 %1023
        %v1025 = vsel %vm1018, %v837, -inf
        %1026 = vmax.xlane.f32.xlu0 %v1025
        %v1027 = vpop.xlane.xlu0 %1026
        %v1028 = vsel %vm1018, %v842, -inf
        %1029 = vmax.xlane.f32.xlu0 %v1028
        %v1030 = vpop.xlane.xlu0 %1029
        %v1031 = vsel %vm1018, %v847, -inf
        %1032 = vmax.xlane.f32.xlu0 %v1031
        %v1033 = vpop.xlane.xlu0 %1032
        %v1034 = vsel %vm1018, %v852, -inf
        %1035 = vmax.xlane.f32.xlu0 %v1034
        %v1036 = vpop.xlane.xlu0 %1035
        %v1037 = vsel %vm1018, %v857, -inf
        %1038 = vmax.xlane.f32.xlu0 %v1037
        %v1039 = vpop.xlane.xlu0 %1038
        %v1040 = vsel %vm1018, %v862, -inf
        %1041 = vmax.xlane.f32.xlu0 %v1040
        %v1042 = vpop.xlane.xlu0 %1041
        %v1043 = vsel %vm1018, %v980, -inf
        %1044 = vmax.xlane.f32.xlu0 %v1043
        %v1045 = vpop.xlane.xlu0 %1044
        %v1046 = vsel %vm1018, %v985, -inf
        %1047 = vmax.xlane.f32.xlu0 %v1046
        %v1048 = vpop.xlane.xlu0 %1047
        %v1049 = vsel %vm1018, %v990, -inf
        %1050 = vmax.xlane.f32.xlu0 %v1049
        %v1051 = vpop.xlane.xlu0 %1050
        %v1052 = vsel %vm1018, %v995, -inf
        %1053 = vmax.xlane.f32.xlu0 %v1052
        %v1054 = vpop.xlane.xlu0 %1053
        %v1055 = vsel %vm1018, %v1000, -inf
        %1056 = vmax.xlane.f32.xlu0 %v1055
        %v1057 = vpop.xlane.xlu0 %1056
        %v1058 = vsel %vm1018, %v1005, -inf
        %1059 = vmax.xlane.f32.xlu0 %v1058
        %v1060 = vpop.xlane.xlu0 %1059
        %v1061 = vsel %vm1018, %v1010, -inf
        %1062 = vmax.xlane.f32.xlu0 %v1061
        %v1063 = vpop.xlane.xlu0 %1062
        %v1064 = vsel %vm1018, %v1015, -inf
        %1065 = vmax.xlane.f32.xlu0 %v1064
        %v1066 = vpop.xlane.xlu0 %1065
        %v1067 = vsub.f32 %v827, %v1021
        %v1068 = vsub.f32 %v832, %v1024
        %v1069 = vsub.f32 %v837, %v1027
        %v1070 = vsub.f32 %v842, %v1030
        %v1071 = vsub.f32 %v847, %v1033
        %v1072 = vsub.f32 %v852, %v1036
        %v1073 = vsub.f32 %v857, %v1039
        %v1074 = vsub.f32 %v862, %v1042
        %v1075 = vsub.f32 %v980, %v1045
        %v1076 = vsub.f32 %v985, %v1048
        %v1077 = vsub.f32 %v990, %v1051
        %v1078 = vsub.f32 %v995, %v1054
        %v1079 = vsub.f32 %v1000, %v1057
        %v1080 = vsub.f32 %v1005, %v1060
        %v1081 = vsub.f32 %v1010, %v1063
        %v1082 = vsub.f32 %v1015, %v1066
        %v1083 = vmul.f32 %v1067, 1.442695
        %v1084 = vpow.pop %v1083
        %v1085 = vmul.f32 %v1068, 1.442695
        %v1086 = vpow.pop %v1085
        %v1087 = vmul.f32 %v1069, 1.442695
        %v1088 = vpow.pop %v1087
        %v1089 = vmul.f32 %v1070, 1.442695
        %v1090 = vpow.pop %v1089
        %v1091 = vmul.f32 %v1071, 1.442695
        %v1092 = vpow.pop %v1091
        %v1093 = vmul.f32 %v1072, 1.442695
        %v1094 = vpow.pop %v1093
        %v1095 = vmul.f32 %v1073, 1.442695
        %v1096 = vpow.pop %v1095
        %v1097 = vmul.f32 %v1074, 1.442695
        %v1098 = vpow.pop %v1097
        %v1099 = vmul.f32 %v1075, 1.442695
        %v1100 = vpow.pop %v1099
        %v1101 = vmul.f32 %v1076, 1.442695
        %v1102 = vpow.pop %v1101
        %v1103 = vmul.f32 %v1077, 1.442695
        %v1104 = vpow.pop %v1103
        %v1105 = vmul.f32 %v1078, 1.442695
        %v1106 = vpow.pop %v1105
        %v1107 = vmul.f32 %v1079, 1.442695
        %v1108 = vpow.pop %v1107
        %v1109 = vmul.f32 %v1080, 1.442695
        %v1110 = vpow.pop %v1109
        %v1111 = vmul.f32 %v1081, 1.442695
        %v1112 = vpow.pop %v1111
        %v1113 = vmul.f32 %v1082, 1.442695
        %v1114 = vpow.pop %v1113
        %v1115 = vsel %vm1018, %v1084, 0.0
        %1116 = vadd.xlane.f32.xlu0 %v1115
        %v1117 = vpop.xlane.xlu0 %1116
        %v1118 = vsel %vm1018, %v1086, 0.0
        %1119 = vadd.xlane.f32.xlu0 %v1118
        %v1120 = vpop.xlane.xlu0 %1119
        %v1121 = vsel %vm1018, %v1088, 0.0
        %1122 = vadd.xlane.f32.xlu0 %v1121
        %v1123 = vpop.xlane.xlu0 %1122
        %v1124 = vsel %vm1018, %v1090, 0.0
        %1125 = vadd.xlane.f32.xlu0 %v1124
        %v1126 = vpop.xlane.xlu0 %1125
        %v1127 = vsel %vm1018, %v1092, 0.0
        %1128 = vadd.xlane.f32.xlu0 %v1127
        %v1129 = vpop.xlane.xlu0 %1128
        %v1130 = vsel %vm1018, %v1094, 0.0
        %1131 = vadd.xlane.f32.xlu0 %v1130
        %v1132 = vpop.xlane.xlu0 %1131
        %v1133 = vsel %vm1018, %v1096, 0.0
        %1134 = vadd.xlane.f32.xlu0 %v1133
        %v1135 = vpop.xlane.xlu0 %1134
        %v1136 = vsel %vm1018, %v1098, 0.0
        %1137 = vadd.xlane.f32.xlu0 %v1136
        %v1138 = vpop.xlane.xlu0 %1137
        %v1139 = vsel %vm1018, %v1100, 0.0
        %1140 = vadd.xlane.f32.xlu0 %v1139
        %v1141 = vpop.xlane.xlu0 %1140
        %v1142 = vsel %vm1018, %v1102, 0.0
        %1143 = vadd.xlane.f32.xlu0 %v1142
        %v1144 = vpop.xlane.xlu0 %1143
        %v1145 = vsel %vm1018, %v1104, 0.0
        %1146 = vadd.xlane.f32.xlu0 %v1145
        %v1147 = vpop.xlane.xlu0 %1146
        %v1148 = vsel %vm1018, %v1106, 0.0
        %1149 = vadd.xlane.f32.xlu0 %v1148
        %v1150 = vpop.xlane.xlu0 %1149
        %v1151 = vsel %vm1018, %v1108, 0.0
        %1152 = vadd.xlane.f32.xlu0 %v1151
        %v1153 = vpop.xlane.xlu0 %1152
        %v1154 = vsel %vm1018, %v1110, 0.0
        %1155 = vadd.xlane.f32.xlu0 %v1154
        %v1156 = vpop.xlane.xlu0 %1155
        %v1157 = vsel %vm1018, %v1112, 0.0
        %1158 = vadd.xlane.f32.xlu0 %v1157
        %v1159 = vpop.xlane.xlu0 %1158
        %v1160 = vsel %vm1018, %v1114, 0.0
        %1161 = vadd.xlane.f32.xlu0 %v1160
        %v1162 = vpop.xlane.xlu0 %1161
        %v1163 = vrcp.pop %v1117
        %v1164 = vrcp.pop %v1120
        %v1165 = vrcp.pop %v1123
        %v1166 = vrcp.pop %v1126
        %v1167 = vrcp.pop %v1129
        %v1168 = vrcp.pop %v1132
        %v1169 = vrcp.pop %v1135
        %v1170 = vrcp.pop %v1138
        %v1171 = vrcp.pop %v1141
        %v1172 = vrcp.pop %v1144
        %v1173 = vrcp.pop %v1147
        %v1174 = vrcp.pop %v1150
        %v1175 = vrcp.pop %v1153
        %v1176 = vrcp.pop %v1156
        %v1177 = vrcp.pop %v1159
        %v1178 = vrcp.pop %v1162
        %v1179 = vmul.f32 %v1117, %v1163
        %v1180 = vmul.f32 %v1120, %v1164
        %v1181 = vmul.f32 %v1123, %v1165
        %v1182 = vmul.f32 %v1126, %v1166
        %v1183 = vmul.f32 %v1129, %v1167
        %v1184 = vmul.f32 %v1132, %v1168
        %v1185 = vmul.f32 %v1135, %v1169
        %v1186 = vmul.f32 %v1138, %v1170
        %v1187 = vmul.f32 %v1141, %v1171
        %v1188 = vmul.f32 %v1144, %v1172
        %v1189 = vmul.f32 %v1147, %v1173
        %v1190 = vmul.f32 %v1150, %v1174
        %v1191 = vmul.f32 %v1153, %v1175
        %v1192 = vmul.f32 %v1156, %v1176
        %v1193 = vmul.f32 %v1159, %v1177
        %v1194 = vmul.f32 %v1162, %v1178
        %v1195 = vsub.f32 2.0, %v1179
        %v1196 = vsub.f32 2.0, %v1180
        %v1197 = vsub.f32 2.0, %v1181
        %v1198 = vsub.f32 2.0, %v1182
        %v1199 = vsub.f32 2.0, %v1183
        %v1200 = vsub.f32 2.0, %v1184
        %v1201 = vsub.f32 2.0, %v1185
        %v1202 = vsub.f32 2.0, %v1186
        %v1203 = vsub.f32 2.0, %v1187
        %v1204 = vsub.f32 2.0, %v1188
        %v1205 = vsub.f32 2.0, %v1189
        %v1206 = vsub.f32 2.0, %v1190
        %v1207 = vsub.f32 2.0, %v1191
        %v1208 = vsub.f32 2.0, %v1192
        %v1209 = vsub.f32 2.0, %v1193
        %v1210 = vsub.f32 2.0, %v1194
        %v1211 = vmul.f32 %v1163, %v1195
        %v1212 = vmul.f32 %v1164, %v1196
        %v1213 = vmul.f32 %v1165, %v1197
        %v1214 = vmul.f32 %v1166, %v1198
        %v1215 = vmul.f32 %v1167, %v1199
        %v1216 = vmul.f32 %v1168, %v1200
        %v1217 = vmul.f32 %v1169, %v1201
        %v1218 = vmul.f32 %v1170, %v1202
        %v1219 = vmul.f32 %v1171, %v1203
        %v1220 = vmul.f32 %v1172, %v1204
        %v1221 = vmul.f32 %v1173, %v1205
        %v1222 = vmul.f32 %v1174, %v1206
        %v1223 = vmul.f32 %v1175, %v1207
        %v1224 = vmul.f32 %v1176, %v1208
        %v1225 = vmul.f32 %v1177, %v1209
        %v1226 = vmul.f32 %v1178, %v1210
        %v1227 = vmul.f32 %v1084, %v1211
        %v1228 = vmul.f32 %v1086, %v1212
        %v1229 = vmul.f32 %v1088, %v1213
        %v1230 = vmul.f32 %v1090, %v1214
        %v1231 = vmul.f32 %v1092, %v1215
        %v1232 = vmul.f32 %v1094, %v1216
        %v1233 = vmul.f32 %v1096, %v1217
        %v1234 = vmul.f32 %v1098, %v1218
        %v1235 = vmul.f32 %v1100, %v1219
        %v1236 = vmul.f32 %v1102, %v1220
        %v1237 = vmul.f32 %v1104, %v1221
        %v1238 = vmul.f32 %v1106, %v1222
        %v1239 = vmul.f32 %v1108, %v1223
        %v1240 = vmul.f32 %v1110, %v1224
        %v1241 = vmul.f32 %v1112, %v1225
        %v1242 = vmul.f32 %v1114, %v1226
        %v1244 = vsel %vm1018, %v1227, 0
        %v1247 = vsel %vm1018, %v1228, 0
        %v1250 = vsel %vm1018, %v1229, 0
        %v1253 = vsel %vm1018, %v1230, 0
        %v1256 = vsel %vm1018, %v1231, 0
        %v1259 = vsel %vm1018, %v1232, 0
        %v1262 = vsel %vm1018, %v1233, 0
        %v1265 = vsel %vm1018, %v1234, 0
        %1267 = vmatprep.subr.mxu0 0.0
        %1268 = vmatpush1.msra.mxu0 %v633
        %1269 = vmatprep.subr.mxu0 0.0
        %1270 = vmatpush1.msra.mxu0 %v638
        %1271 = vmatprep.subr.mxu0 0.0
        %1272 = vmatpush1.msra.mxu0 %v643
        %1273 = vmatprep.subr.mxu0 0.0
        %1274 = vmatpush1.msra.mxu0 %v648
        %1275 = vmatprep.subr.mxu0 0.0
        %1276 = vmatpush1.msra.mxu0 %v653
        %1277 = vmatprep.subr.mxu0 0.0
        %1278 = vmatpush1.msra.mxu0 %v658
        %1279 = vmatprep.subr.mxu0 0.0
        %1280 = vmatpush1.msra.mxu0 %v663
        %1281 = vmatprep.subr.mxu0 0.0
        %1282 = vmatpush1.msra.mxu0 %v668
        %1283 = vmatprep.subr.mxu0 0.0
        %1284 = vmatpush1.msra.mxu0 0.0
        %1285 = vmatprep.subr.mxu0 0.0
        %1286 = vmatpush1.msra.mxu0 0.0
        %1287 = vmatprep.subr.mxu0 0.0
        %1288 = vmatpush1.msra.mxu0 0.0
        %1289 = vmatprep.subr.mxu0 0.0
        %1290 = vmatpush1.msra.mxu0 0.0
        %1291 = vmatprep.subr.mxu0 0.0
        %1292 = vmatpush1.msra.mxu0 0.0
        %1293 = vmatprep.subr.mxu0 0.0
        %1294 = vmatpush1.msra.mxu0 0.0
        %1295 = vmatprep.subr.mxu0 0.0
        %1296 = vmatpush1.msra.mxu0 0.0
        %1297 = vmatprep.subr.mxu0 0.0
        %1298 = vmatpush1.msra.mxu0 0.0
        %1299 = vmatprep.subr.mxu0 0.0
        %1300 = vmatpush1.msra.mxu0 0.0
        %1301 = vmatprep.subr.mxu0 0.0
        %1302 = vmatpush1.msra.mxu0 0.0
        %1303 = vmatprep.subr.mxu0 0.0
        %1304 = vmatpush1.msra.mxu0 0.0
        %1305 = vmatprep.subr.mxu0 0.0
        %1306 = vmatpush1.msra.mxu0 0.0
        %1307 = vmatprep.subr.mxu0 0.0
        %1308 = vmatpush1.msra.mxu0 0.0
        %1309 = vmatprep.subr.mxu0 0.0
        %1310 = vmatpush1.msra.mxu0 0.0
        %1311 = vmatprep.subr.mxu0 0.0
        %1312 = vmatpush1.msra.mxu0 0.0
        %1313 = vmatprep.subr.mxu0 0.0
        %1314 = vmatpush1.msra.mxu0 0.0
        %1315 = vmatprep.subr.mxu0 0.0
        %1316 = vmatpush1.msra.mxu0 0.0
        %1317 = vmatprep.subr.mxu0 0.0
        %1318 = vmatpush1.msra.mxu0 0.0
        %1319 = vmatprep.subr.mxu0 0.0
        %1320 = vmatpush1.msra.mxu0 0.0
        %1321 = vmatprep.subr.mxu0 0.0
        %1322 = vmatpush1.msra.mxu0 0.0
        %1323 = vmatprep.subr.mxu0 0.0
        %1324 = vmatpush1.msra.mxu0 0.0
        %1325 = vmatprep.subr.mxu0 0.0
        %1326 = vmatpush1.msra.mxu0 0.0
        %1327 = vmatprep.subr.mxu0 0.0
        %1328 = vmatpush1.msra.mxu0 0.0
        %1329 = vmatprep.subr.mxu0 0.0
        %1330 = vmatpush1.msra.mxu0 0.0
        %1331 = vmatprep.mubr.f32.mxu0 0.0
        %1332 = vmatmul.mubr.f32.gmra.mrb[0].mxu0 %v1244
        %v1333 = vpop.f32.mrb[0].mxu0
        %v1334 = vadd.f32 0.0, %v1333
        %v1335 = vpop.f32.mrb[0].mxu0
        %1336 = vmatprep.mubr.f32.mxu0 0.0
        %1337 = vmatmul.mubr.f32.gmra.mrb[0].mxu0 %v1247
        %v1338 = vpop.f32.mrb[0].mxu0
        %v1339 = vadd.f32 0.0, %v1338
        %v1340 = vpop.f32.mrb[0].mxu0
        %1341 = vmatprep.mubr.f32.mxu0 0.0
        %1342 = vmatmul.mubr.f32.gmra.mrb[0].mxu0 %v1250
        %v1343 = vpop.f32.mrb[0].mxu0
        %v1344 = vadd.f32 0.0, %v1343
        %v1345 = vpop.f32.mrb[0].mxu0
        %1346 = vmatprep.mubr.f32.mxu0 0.0
        %1347 = vmatmul.mubr.f32.gmra.mrb[0].mxu0 %v1253
        %v1348 = vpop.f32.mrb[0].mxu0
        %v1349 = vadd.f32 0.0, %v1348
        %v1350 = vpop.f32.mrb[0].mxu0
        %1351 = vmatprep.mubr.f32.mxu0 0.0
        %1352 = vmatmul.mubr.f32.gmra.mrb[0].mxu0 %v1256
        %v1353 = vpop.f32.mrb[0].mxu0
        %v1354 = vadd.f32 0.0, %v1353
        %v1355 = vpop.f32.mrb[0].mxu0
        %1356 = vmatprep.mubr.f32.mxu0 0.0
        %1357 = vmatmul.mubr.f32.gmra.mrb[0].mxu0 %v1259
        %v1358 = vpop.f32.mrb[0].mxu0
        %v1359 = vadd.f32 0.0, %v1358
        %v1360 = vpop.f32.mrb[0].mxu0
        %1361 = vmatprep.mubr.f32.mxu0 0.0
        %1362 = vmatmul.mubr.f32.gmra.mrb[0].mxu0 %v1262
        %v1363 = vpop.f32.mrb[0].mxu0
        %v1364 = vadd.f32 0.0, %v1363
        %v1365 = vpop.f32.mrb[0].mxu0
        %1366 = vmatprep.mubr.f32.mxu0 0.0
        %1367 = vmatmul.mubr.f32.gmra.mrb[0].mxu0 %v1265
        %v1368 = vpop.f32.mrb[0].mxu0
        %v1369 = vadd.f32 0.0, %v1368
        %v1370 = vpop.f32.mrb[0].mxu0
        %1371 = vdwg.mxu0
        %v1373 = vsel %vm1018, %v1235, 0
        %v1376 = vsel %vm1018, %v1236, 0
        %v1379 = vsel %vm1018, %v1237, 0
        %v1382 = vsel %vm1018, %v1238, 0
        %v1385 = vsel %vm1018, %v1239, 0
        %v1388 = vsel %vm1018, %v1240, 0
        %v1391 = vsel %vm1018, %v1241, 0
        %v1394 = vsel %vm1018, %v1242, 0
        %1396 = vmatprep.subr.mxu0 0.0
        %1397 = vmatpush1.msra.mxu0 %v673
        %1398 = vmatprep.subr.mxu0 0.0
        %1399 = vmatpush1.msra.mxu0 %v678
        %1400 = vmatprep.subr.mxu0 0.0
        %1401 = vmatpush1.msra.mxu0 %v683
        %1402 = vmatprep.subr.mxu0 0.0
        %1403 = vmatpush1.msra.mxu0 %v688
        %1404 = vmatprep.subr.mxu0 0.0
        %1405 = vmatpush1.msra.mxu0 %v693
        %1406 = vmatprep.subr.mxu0 0.0
        %1407 = vmatpush1.msra.mxu0 %v698
        %1408 = vmatprep.subr.mxu0 0.0
        %1409 = vmatpush1.msra.mxu0 %v703
        %1410 = vmatprep.subr.mxu0 0.0
        %1411 = vmatpush1.msra.mxu0 %v708
        %1412 = vmatprep.subr.mxu0 0.0
        %1413 = vmatpush1.msra.mxu0 0.0
        %1414 = vmatprep.subr.mxu0 0.0
        %1415 = vmatpush1.msra.mxu0 0.0
        %1416 = vmatprep.subr.mxu0 0.0
        %1417 = vmatpush1.msra.mxu0 0.0
        %1418 = vmatprep.subr.mxu0 0.0
        %1419 = vmatpush1.msra.mxu0 0.0
        %1420 = vmatprep.subr.mxu0 0.0
        %1421 = vmatpush1.msra.mxu0 0.0
        %1422 = vmatprep.subr.mxu0 0.0
        %1423 = vmatpush1.msra.mxu0 0.0
        %1424 = vmatprep.subr.mxu0 0.0
        %1425 = vmatpush1.msra.mxu0 0.0
        %1426 = vmatprep.subr.mxu0 0.0
        %1427 = vmatpush1.msra.mxu0 0.0
        %1428 = vmatprep.subr.mxu0 0.0
        %1429 = vmatpush1.msra.mxu0 0.0
        %1430 = vmatprep.subr.mxu0 0.0
        %1431 = vmatpush1.msra.mxu0 0.0
        %1432 = vmatprep.subr.mxu0 0.0
        %1433 = vmatpush1.msra.mxu0 0.0
        %1434 = vmatprep.subr.mxu0 0.0
        %1435 = vmatpush1.msra.mxu0 0.0
        %1436 = vmatprep.subr.mxu0 0.0
        %1437 = vmatpush1.msra.mxu0 0.0
        %1438 = vmatprep.subr.mxu0 0.0
        %1439 = vmatpush1.msra.mxu0 0.0
        %1440 = vmatprep.subr.mxu0 0.0
        %1441 = vmatpush1.msra.mxu0 0.0
        %1442 = vmatprep.subr.mxu0 0.0
        %1443 = vmatpush1.msra.mxu0 0.0
        %1444 = vmatprep.subr.mxu0 0.0
        %1445 = vmatpush1.msra.mxu0 0.0
        %1446 = vmatprep.subr.mxu0 0.0
        %1447 = vmatpush1.msra.mxu0 0.0
        %1448 = vmatprep.subr.mxu0 0.0
        %1449 = vmatpush1.msra.mxu0 0.0
        %1450 = vmatprep.subr.mxu0 0.0
        %1451 = vmatpush1.msra.mxu0 0.0
        %1452 = vmatprep.subr.mxu0 0.0
        %1453 = vmatpush1.msra.mxu0 0.0
        %1454 = vmatprep.subr.mxu0 0.0
        %1455 = vmatpush1.msra.mxu0 0.0
        %1456 = vmatprep.subr.mxu0 0.0
        %1457 = vmatpush1.msra.mxu0 0.0
        %1458 = vmatprep.subr.mxu0 0.0
        %1459 = vmatpush1.msra.mxu0 0.0
        %1460 = vmatprep.mubr.f32.mxu0 0.0
        %1461 = vmatmul.mubr.f32.gmra.mrb[0].mxu0 %v1373
        %v1462 = vpop.f32.mrb[0].mxu0
        %v1463 = vadd.f32 0.0, %v1462
        %v1464 = vpop.f32.mrb[0].mxu0
        %1465 = vmatprep.mubr.f32.mxu0 0.0
        %1466 = vmatmul.mubr.f32.gmra.mrb[0].mxu0 %v1376
        %v1467 = vpop.f32.mrb[0].mxu0
        %v1468 = vadd.f32 0.0, %v1467
        %v1469 = vpop.f32.mrb[0].mxu0
        %1470 = vmatprep.mubr.f32.mxu0 0.0
        %1471 = vmatmul.mubr.f32.gmra.mrb[0].mxu0 %v1379
        %v1472 = vpop.f32.mrb[0].mxu0
        %v1473 = vadd.f32 0.0, %v1472
        %v1474 = vpop.f32.mrb[0].mxu0
        %1475 = vmatprep.mubr.f32.mxu0 0.0
        %1476 = vmatmul.mubr.f32.gmra.mrb[0].mxu0 %v1382
        %v1477 = vpop.f32.mrb[0].mxu0
        %v1478 = vadd.f32 0.0, %v1477
        %v1479 = vpop.f32.mrb[0].mxu0
        %1480 = vmatprep.mubr.f32.mxu0 0.0
        %1481 = vmatmul.mubr.f32.gmra.mrb[0].mxu0 %v1385
        %v1482 = vpop.f32.mrb[0].mxu0
        %v1483 = vadd.f32 0.0, %v1482
        %v1484 = vpop.f32.mrb[0].mxu0
        %1485 = vmatprep.mubr.f32.mxu0 0.0
        %1486 = vmatmul.mubr.f32.gmra.mrb[0].mxu0 %v1388
        %v1487 = vpop.f32.mrb[0].mxu0
        %v1488 = vadd.f32 0.0, %v1487
        %v1489 = vpop.f32.mrb[0].mxu0
        %1490 = vmatprep.mubr.f32.mxu0 0.0
        %1491 = vmatmul.mubr.f32.gmra.mrb[0].mxu0 %v1391
        %v1492 = vpop.f32.mrb[0].mxu0
        %v1493 = vadd.f32 0.0, %v1492
        %v1494 = vpop.f32.mrb[0].mxu0
        %1495 = vmatprep.mubr.f32.mxu0 0.0
        %1496 = vmatmul.mubr.f32.gmra.mrb[0].mxu0 %v1394
        %v1497 = vpop.f32.mrb[0].mxu0
        %v1498 = vadd.f32 0.0, %v1497
        %v1499 = vpop.f32.mrb[0].mxu0
        %1500 = vdwg.mxu0
        %1501 = vrot.lane.b32.xlu0 %v472, 96
        %v1502 = vpop.permute.xlu0 %1501
        %1503 = vrot.lane.b32.xlu0 %v478, 96
        %v1504 = vpop.permute.xlu0 %1503
        %1505 = vrot.lane.b32.xlu0 %v484, 96
        %v1506 = vpop.permute.xlu0 %1505
        %1507 = vrot.lane.b32.xlu0 %v490, 96
        %v1508 = vpop.permute.xlu0 %1507
        %1509 = vrot.lane.b32.xlu0 %v496, 96
        %v1510 = vpop.permute.xlu0 %1509
        %1511 = vrot.lane.b32.xlu0 %v502, 96
        %v1512 = vpop.permute.xlu0 %1511
        %1513 = vrot.lane.b32.xlu0 %v508, 96
        %v1514 = vpop.permute.xlu0 %1513
        %1515 = vrot.lane.b32.xlu0 %v514, 96
        %v1516 = vpop.permute.xlu0 %1515
        %1517 = vrot.lane.b32.xlu0 %v474, 96
        %v1518 = vpop.permute.xlu0 %1517
        %1519 = vrot.lane.b32.xlu0 %v480, 96
        %v1520 = vpop.permute.xlu0 %1519
        %1521 = vrot.lane.b32.xlu0 %v486, 96
        %v1522 = vpop.permute.xlu0 %1521
        %1523 = vrot.lane.b32.xlu0 %v492, 96
        %v1524 = vpop.permute.xlu0 %1523
        %1525 = vrot.lane.b32.xlu0 %v498, 96
        %v1526 = vpop.permute.xlu0 %1525
        %1527 = vrot.lane.b32.xlu0 %v504, 96
        %v1528 = vpop.permute.xlu0 %1527
        %1529 = vrot.lane.b32.xlu0 %v510, 96
        %v1530 = vpop.permute.xlu0 %1529
        %1531 = vrot.lane.b32.xlu0 %v516, 96
        %v1532 = vpop.permute.xlu0 %1531
        %v1533 = vsel %vm711, %v1502, 0
        %v1535 = vsel %vm711, %v1504, 0
        %v1537 = vsel %vm711, %v1506, 0
        %v1539 = vsel %vm711, %v1508, 0
        %v1541 = vsel %vm711, %v1510, 0
        %v1543 = vsel %vm711, %v1512, 0
        %v1545 = vsel %vm711, %v1514, 0
        %v1547 = vsel %vm711, %v1516, 0
        %v1549 = vsel %vm711, %v1518, 0
        %v1551 = vsel %vm711, %v1520, 0
        %v1553 = vsel %vm711, %v1522, 0
        %v1555 = vsel %vm711, %v1524, 0
        %v1557 = vsel %vm711, %v1526, 0
        %v1559 = vsel %vm711, %v1528, 0
        %v1561 = vsel %vm711, %v1530, 0
        %v1563 = vsel %vm711, %v1532, 0
        %1565 = vmatprep.subr.mxu0 0.0
        %1566 = vmatpush1.xpose.msra.mxu0 %v1549
        %1567 = vmatprep.subr.mxu0 0.0
        %1568 = vmatpush1.xpose.msra.mxu0 %v1551
        %1569 = vmatprep.subr.mxu0 0.0
        %1570 = vmatpush1.xpose.msra.mxu0 %v1553
        %1571 = vmatprep.subr.mxu0 0.0
        %1572 = vmatpush1.xpose.msra.mxu0 %v1555
        %1573 = vmatprep.subr.mxu0 0.0
        %1574 = vmatpush1.xpose.msra.mxu0 %v1557
        %1575 = vmatprep.subr.mxu0 0.0
        %1576 = vmatpush1.xpose.msra.mxu0 %v1559
        %1577 = vmatprep.subr.mxu0 0.0
        %1578 = vmatpush1.xpose.msra.mxu0 %v1561
        %1579 = vmatprep.subr.mxu0 0.0
        %1580 = vmatpush1.xpose.msra.mxu0 %v1563
        %1581 = vmatprep.subr.mxu0 0.0
        %1582 = vmatpush1.xpose.msra.mxu0 0.0
        %1583 = vmatprep.subr.mxu0 0.0
        %1584 = vmatpush1.xpose.msra.mxu0 0.0
        %1585 = vmatprep.subr.mxu0 0.0
        %1586 = vmatpush1.xpose.msra.mxu0 0.0
        %1587 = vmatprep.subr.mxu0 0.0
        %1588 = vmatpush1.xpose.msra.mxu0 0.0
        %1589 = vmatprep.subr.mxu0 0.0
        %1590 = vmatpush1.xpose.msra.mxu0 0.0
        %1591 = vmatprep.subr.mxu0 0.0
        %1592 = vmatpush1.xpose.msra.mxu0 0.0
        %1593 = vmatprep.subr.mxu0 0.0
        %1594 = vmatpush1.xpose.msra.mxu0 0.0
        %1595 = vmatprep.subr.mxu0 0.0
        %1596 = vmatpush1.xpose.msra.mxu0 0.0
        %1597 = vmatprep.subr.mxu0 0.0
        %1598 = vmatpush1.xpose.msra.mxu0 0.0
        %1599 = vmatprep.subr.mxu0 0.0
        %1600 = vmatpush1.xpose.msra.mxu0 0.0
        %1601 = vmatprep.subr.mxu0 0.0
        %1602 = vmatpush1.xpose.msra.mxu0 0.0
        %1603 = vmatprep.subr.mxu0 0.0
        %1604 = vmatpush1.xpose.msra.mxu0 0.0
        %1605 = vmatprep.subr.mxu0 0.0
        %1606 = vmatpush1.xpose.msra.mxu0 0.0
        %1607 = vmatprep.subr.mxu0 0.0
        %1608 = vmatpush1.xpose.msra.mxu0 0.0
        %1609 = vmatprep.subr.mxu0 0.0
        %1610 = vmatpush1.xpose.msra.mxu0 0.0
        %1611 = vmatprep.subr.mxu0 0.0
        %1612 = vmatpush1.xpose.msra.mxu0 0.0
        %1613 = vmatprep.subr.mxu0 0.0
        %1614 = vmatpush1.xpose.msra.mxu0 0.0
        %1615 = vmatprep.subr.mxu0 0.0
        %1616 = vmatpush1.xpose.msra.mxu0 0.0
        %1617 = vmatprep.subr.mxu0 0.0
        %1618 = vmatpush1.xpose.msra.mxu0 0.0
        %1619 = vmatprep.subr.mxu0 0.0
        %1620 = vmatpush1.xpose.msra.mxu0 0.0
        %1621 = vmatprep.subr.mxu0 0.0
        %1622 = vmatpush1.xpose.msra.mxu0 0.0
        %1623 = vmatprep.subr.mxu0 0.0
        %1624 = vmatpush1.xpose.msra.mxu0 0.0
        %1625 = vmatprep.subr.mxu0 0.0
        %1626 = vmatpush1.xpose.msra.mxu0 0.0
        %1627 = vmatprep.subr.mxu0 0.0
        %1628 = vmatpush1.xpose.msra.mxu0 0.0
        %1629 = vmatprep.mubr.f32.mxu0 0.0
        %1630 = vmatmul.mubr.f32.gmra.mrb[0].mxu0 %v1533
        %v1631 = vpop.f32.mrb[0].mxu0
        %v1632 = vadd.f32 0.0, %v1631
        %v1633 = vpop.f32.mrb[0].mxu0
        %1634 = vmatprep.mubr.f32.mxu0 0.0
        %1635 = vmatmul.mubr.f32.gmra.mrb[0].mxu0 %v1535
        %v1636 = vpop.f32.mrb[0].mxu0
        %v1637 = vadd.f32 0.0, %v1636
        %v1638 = vpop.f32.mrb[0].mxu0
        %1639 = vmatprep.mubr.f32.mxu0 0.0
        %1640 = vmatmul.mubr.f32.gmra.mrb[0].mxu0 %v1537
        %v1641 = vpop.f32.mrb[0].mxu0
        %v1642 = vadd.f32 0.0, %v1641
        %v1643 = vpop.f32.mrb[0].mxu0
        %1644 = vmatprep.mubr.f32.mxu0 0.0
        %1645 = vmatmul.mubr.f32.gmra.mrb[0].mxu0 %v1539
        %v1646 = vpop.f32.mrb[0].mxu0
        %v1647 = vadd.f32 0.0, %v1646
        %v1648 = vpop.f32.mrb[0].mxu0
        %1649 = vmatprep.mubr.f32.mxu0 0.0
        %1650 = vmatmul.mubr.f32.gmra.mrb[0].mxu0 %v1541
        %v1651 = vpop.f32.mrb[0].mxu0
        %v1652 = vadd.f32 0.0, %v1651
        %v1653 = vpop.f32.mrb[0].mxu0
        %1654 = vmatprep.mubr.f32.mxu0 0.0
        %1655 = vmatmul.mubr.f32.gmra.mrb[0].mxu0 %v1543
        %v1656 = vpop.f32.mrb[0].mxu0
        %v1657 = vadd.f32 0.0, %v1656
        %v1658 = vpop.f32.mrb[0].mxu0
        %1659 = vmatprep.mubr.f32.mxu0 0.0
        %1660 = vmatmul.mubr.f32.gmra.mrb[0].mxu0 %v1545
        %v1661 = vpop.f32.mrb[0].mxu0
        %v1662 = vadd.f32 0.0, %v1661
        %v1663 = vpop.f32.mrb[0].mxu0
        %1664 = vmatprep.mubr.f32.mxu0 0.0
        %1665 = vmatmul.mubr.f32.gmra.mrb[0].mxu0 %v1547
        %v1666 = vpop.f32.mrb[0].mxu0
        %v1667 = vadd.f32 0.0, %v1666
        %v1668 = vpop.f32.mrb[0].mxu0
        %1669 = vdwg.mxu0
        %1670 = vrot.lane.b32.xlu0 %v520, 96
        %v1671 = vpop.permute.xlu0 %1670
        %1672 = vrot.lane.b32.xlu0 %v526, 96
        %v1673 = vpop.permute.xlu0 %1672
        %1674 = vrot.lane.b32.xlu0 %v532, 96
        %v1675 = vpop.permute.xlu0 %1674
        %1676 = vrot.lane.b32.xlu0 %v538, 96
        %v1677 = vpop.permute.xlu0 %1676
        %1678 = vrot.lane.b32.xlu0 %v544, 96
        %v1679 = vpop.permute.xlu0 %1678
        %1680 = vrot.lane.b32.xlu0 %v550, 96
        %v1681 = vpop.permute.xlu0 %1680
        %1682 = vrot.lane.b32.xlu0 %v556, 96
        %v1683 = vpop.permute.xlu0 %1682
        %1684 = vrot.lane.b32.xlu0 %v562, 96
        %v1685 = vpop.permute.xlu0 %1684
        %1686 = vrot.lane.b32.xlu0 %v522, 96
        %v1687 = vpop.permute.xlu0 %1686
        %1688 = vrot.lane.b32.xlu0 %v528, 96
        %v1689 = vpop.permute.xlu0 %1688
        %1690 = vrot.lane.b32.xlu0 %v534, 96
        %v1691 = vpop.permute.xlu0 %1690
        %1692 = vrot.lane.b32.xlu0 %v540, 96
        %v1693 = vpop.permute.xlu0 %1692
        %1694 = vrot.lane.b32.xlu0 %v546, 96
        %v1695 = vpop.permute.xlu0 %1694
        %1696 = vrot.lane.b32.xlu0 %v552, 96
        %v1697 = vpop.permute.xlu0 %1696
        %1698 = vrot.lane.b32.xlu0 %v558, 96
        %v1699 = vpop.permute.xlu0 %1698
        %1700 = vrot.lane.b32.xlu0 %v564, 96
        %v1701 = vpop.permute.xlu0 %1700
        %v1702 = vsel %vm711, %v1671, 0
        %v1704 = vsel %vm711, %v1673, 0
        %v1706 = vsel %vm711, %v1675, 0
        %v1708 = vsel %vm711, %v1677, 0
        %v1710 = vsel %vm711, %v1679, 0
        %v1712 = vsel %vm711, %v1681, 0
        %v1714 = vsel %vm711, %v1683, 0
        %v1716 = vsel %vm711, %v1685, 0
        %v1718 = vsel %vm711, %v1687, 0
        %v1720 = vsel %vm711, %v1689, 0
        %v1722 = vsel %vm711, %v1691, 0
        %v1724 = vsel %vm711, %v1693, 0
        %v1726 = vsel %vm711, %v1695, 0
        %v1728 = vsel %vm711, %v1697, 0
        %v1730 = vsel %vm711, %v1699, 0
        %v1732 = vsel %vm711, %v1701, 0
        %1734 = vmatprep.subr.mxu0 0.0
        %1735 = vmatpush1.xpose.msra.mxu0 %v1718
        %1736 = vmatprep.subr.mxu0 0.0
        %1737 = vmatpush1.xpose.msra.mxu0 %v1720
        %1738 = vmatprep.subr.mxu0 0.0
        %1739 = vmatpush1.xpose.msra.mxu0 %v1722
        %1740 = vmatprep.subr.mxu0 0.0
        %1741 = vmatpush1.xpose.msra.mxu0 %v1724
        %1742 = vmatprep.subr.mxu0 0.0
        %1743 = vmatpush1.xpose.msra.mxu0 %v1726
        %1744 = vmatprep.subr.mxu0 0.0
        %1745 = vmatpush1.xpose.msra.mxu0 %v1728
        %1746 = vmatprep.subr.mxu0 0.0
        %1747 = vmatpush1.xpose.msra.mxu0 %v1730
        %1748 = vmatprep.subr.mxu0 0.0
        %1749 = vmatpush1.xpose.msra.mxu0 %v1732
        %1750 = vmatprep.subr.mxu0 0.0
        %1751 = vmatpush1.xpose.msra.mxu0 0.0
        %1752 = vmatprep.subr.mxu0 0.0
        %1753 = vmatpush1.xpose.msra.mxu0 0.0
        %1754 = vmatprep.subr.mxu0 0.0
        %1755 = vmatpush1.xpose.msra.mxu0 0.0
        %1756 = vmatprep.subr.mxu0 0.0
        %1757 = vmatpush1.xpose.msra.mxu0 0.0
        %1758 = vmatprep.subr.mxu0 0.0
        %1759 = vmatpush1.xpose.msra.mxu0 0.0
        %1760 = vmatprep.subr.mxu0 0.0
        %1761 = vmatpush1.xpose.msra.mxu0 0.0
        %1762 = vmatprep.subr.mxu0 0.0
        %1763 = vmatpush1.xpose.msra.mxu0 0.0
        %1764 = vmatprep.subr.mxu0 0.0
        %1765 = vmatpush1.xpose.msra.mxu0 0.0
        %1766 = vmatprep.subr.mxu0 0.0
        %1767 = vmatpush1.xpose.msra.mxu0 0.0
        %1768 = vmatprep.subr.mxu0 0.0
        %1769 = vmatpush1.xpose.msra.mxu0 0.0
        %1770 = vmatprep.subr.mxu0 0.0
        %1771 = vmatpush1.xpose.msra.mxu0 0.0
        %1772 = vmatprep.subr.mxu0 0.0
        %1773 = vmatpush1.xpose.msra.mxu0 0.0
        %1774 = vmatprep.subr.mxu0 0.0
        %1775 = vmatpush1.xpose.msra.mxu0 0.0
        %1776 = vmatprep.subr.mxu0 0.0
        %1777 = vmatpush1.xpose.msra.mxu0 0.0
        %1778 = vmatprep.subr.mxu0 0.0
        %1779 = vmatpush1.xpose.msra.mxu0 0.0
        %1780 = vmatprep.subr.mxu0 0.0
        %1781 = vmatpush1.xpose.msra.mxu0 0.0
        %1782 = vmatprep.subr.mxu0 0.0
        %1783 = vmatpush1.xpose.msra.mxu0 0.0
        %1784 = vmatprep.subr.mxu0 0.0
        %1785 = vmatpush1.xpose.msra.mxu0 0.0
        %1786 = vmatprep.subr.mxu0 0.0
        %1787 = vmatpush1.xpose.msra.mxu0 0.0
        %1788 = vmatprep.subr.mxu0 0.0
        %1789 = vmatpush1.xpose.msra.mxu0 0.0
        %1790 = vmatprep.subr.mxu0 0.0
        %1791 = vmatpush1.xpose.msra.mxu0 0.0
        %1792 = vmatprep.subr.mxu0 0.0
        %1793 = vmatpush1.xpose.msra.mxu0 0.0
        %1794 = vmatprep.subr.mxu0 0.0
        %1795 = vmatpush1.xpose.msra.mxu0 0.0
        %1796 = vmatprep.subr.mxu0 0.0
        %1797 = vmatpush1.xpose.msra.mxu0 0.0
        %1798 = vmatprep.mubr.f32.mxu0 0.0
        %1799 = vmatmul.mubr.f32.gmra.mrb[0].mxu0 %v1702
        %v1800 = vpop.f32.mrb[0].mxu0
        %v1801 = vadd.f32 0.0, %v1800
        %v1802 = vpop.f32.mrb[0].mxu0
        %1803 = vmatprep.mubr.f32.mxu0 0.0
        %1804 = vmatmul.mubr.f32.gmra.mrb[0].mxu0 %v1704
        %v1805 = vpop.f32.mrb[0].mxu0
        %v1806 = vadd.f32 0.0, %v1805
        %v1807 = vpop.f32.mrb[0].mxu0
        %1808 = vmatprep.mubr.f32.mxu0 0.0
        %1809 = vmatmul.mubr.f32.gmra.mrb[0].mxu0 %v1706
        %v1810 = vpop.f32.mrb[0].mxu0
        %v1811 = vadd.f32 0.0, %v1810
        %v1812 = vpop.f32.mrb[0].mxu0
        %1813 = vmatprep.mubr.f32.mxu0 0.0
        %1814 = vmatmul.mubr.f32.gmra.mrb[0].mxu0 %v1708
        %v1815 = vpop.f32.mrb[0].mxu0
        %v1816 = vadd.f32 0.0, %v1815
        %v1817 = vpop.f32.mrb[0].mxu0
        %1818 = vmatprep.mubr.f32.mxu0 0.0
        %1819 = vmatmul.mubr.f32.gmra.mrb[0].mxu0 %v1710
        %v1820 = vpop.f32.mrb[0].mxu0
        %v1821 = vadd.f32 0.0, %v1820
        %v1822 = vpop.f32.mrb[0].mxu0
        %1823 = vmatprep.mubr.f32.mxu0 0.0
        %1824 = vmatmul.mubr.f32.gmra.mrb[0].mxu0 %v1712
        %v1825 = vpop.f32.mrb[0].mxu0
        %v1826 = vadd.f32 0.0, %v1825
        %v1827 = vpop.f32.mrb[0].mxu0
        %1828 = vmatprep.mubr.f32.mxu0 0.0
        %1829 = vmatmul.mubr.f32.gmra.mrb[0].mxu0 %v1714
        %v1830 = vpop.f32.mrb[0].mxu0
        %v1831 = vadd.f32 0.0, %v1830
        %v1832 = vpop.f32.mrb[0].mxu0
        %1833 = vmatprep.mubr.f32.mxu0 0.0
        %1834 = vmatmul.mubr.f32.gmra.mrb[0].mxu0 %v1716
        %v1835 = vpop.f32.mrb[0].mxu0
        %v1836 = vadd.f32 0.0, %v1835
        %v1837 = vpop.f32.mrb[0].mxu0
        %1838 = vdwg.mxu0
        %v1839 = vsel %vm1018, %v1632, -inf
        %1840 = vmax.xlane.f32.xlu0 %v1839
        %v1841 = vpop.xlane.xlu0 %1840
        %v1842 = vsel %vm1018, %v1637, -inf
        %1843 = vmax.xlane.f32.xlu0 %v1842
        %v1844 = vpop.xlane.xlu0 %1843
        %v1845 = vsel %vm1018, %v1642, -inf
        %1846 = vmax.xlane.f32.xlu0 %v1845
        %v1847 = vpop.xlane.xlu0 %1846
        %v1848 = vsel %vm1018, %v1647, -inf
        %1849 = vmax.xlane.f32.xlu0 %v1848
        %v1850 = vpop.xlane.xlu0 %1849
        %v1851 = vsel %vm1018, %v1652, -inf
        %1852 = vmax.xlane.f32.xlu0 %v1851
        %v1853 = vpop.xlane.xlu0 %1852
        %v1854 = vsel %vm1018, %v1657, -inf
        %1855 = vmax.xlane.f32.xlu0 %v1854
        %v1856 = vpop.xlane.xlu0 %1855
        %v1857 = vsel %vm1018, %v1662, -inf
        %1858 = vmax.xlane.f32.xlu0 %v1857
        %v1859 = vpop.xlane.xlu0 %1858
        %v1860 = vsel %vm1018, %v1667, -inf
        %1861 = vmax.xlane.f32.xlu0 %v1860
        %v1862 = vpop.xlane.xlu0 %1861
        %v1863 = vsel %vm1018, %v1801, -inf
        %1864 = vmax.xlane.f32.xlu0 %v1863
        %v1865 = vpop.xlane.xlu0 %1864
        %v1866 = vsel %vm1018, %v1806, -inf
        %1867 = vmax.xlane.f32.xlu0 %v1866
        %v1868 = vpop.xlane.xlu0 %1867
        %v1869 = vsel %vm1018, %v1811, -inf
        %1870 = vmax.xlane.f32.xlu0 %v1869
        %v1871 = vpop.xlane.xlu0 %1870
        %v1872 = vsel %vm1018, %v1816, -inf
        %1873 = vmax.xlane.f32.xlu0 %v1872
        %v1874 = vpop.xlane.xlu0 %1873
        %v1875 = vsel %vm1018, %v1821, -inf
        %1876 = vmax.xlane.f32.xlu0 %v1875
        %v1877 = vpop.xlane.xlu0 %1876
        %v1878 = vsel %vm1018, %v1826, -inf
        %1879 = vmax.xlane.f32.xlu0 %v1878
        %v1880 = vpop.xlane.xlu0 %1879
        %v1881 = vsel %vm1018, %v1831, -inf
        %1882 = vmax.xlane.f32.xlu0 %v1881
        %v1883 = vpop.xlane.xlu0 %1882
        %v1884 = vsel %vm1018, %v1836, -inf
        %1885 = vmax.xlane.f32.xlu0 %v1884
        %v1886 = vpop.xlane.xlu0 %1885
        %v1887 = vsub.f32 %v1632, %v1841
        %v1888 = vsub.f32 %v1637, %v1844
        %v1889 = vsub.f32 %v1642, %v1847
        %v1890 = vsub.f32 %v1647, %v1850
        %v1891 = vsub.f32 %v1652, %v1853
        %v1892 = vsub.f32 %v1657, %v1856
        %v1893 = vsub.f32 %v1662, %v1859
        %v1894 = vsub.f32 %v1667, %v1862
        %v1895 = vsub.f32 %v1801, %v1865
        %v1896 = vsub.f32 %v1806, %v1868
        %v1897 = vsub.f32 %v1811, %v1871
        %v1898 = vsub.f32 %v1816, %v1874
        %v1899 = vsub.f32 %v1821, %v1877
        %v1900 = vsub.f32 %v1826, %v1880
        %v1901 = vsub.f32 %v1831, %v1883
        %v1902 = vsub.f32 %v1836, %v1886
        %v1903 = vmul.f32 %v1887, 1.442695
        %v1904 = vpow.pop %v1903
        %v1905 = vmul.f32 %v1888, 1.442695
        %v1906 = vpow.pop %v1905
        %v1907 = vmul.f32 %v1889, 1.442695
        %v1908 = vpow.pop %v1907
        %v1909 = vmul.f32 %v1890, 1.442695
        %v1910 = vpow.pop %v1909
        %v1911 = vmul.f32 %v1891, 1.442695
        %v1912 = vpow.pop %v1911
        %v1913 = vmul.f32 %v1892, 1.442695
        %v1914 = vpow.pop %v1913
        %v1915 = vmul.f32 %v1893, 1.442695
        %v1916 = vpow.pop %v1915
        %v1917 = vmul.f32 %v1894, 1.442695
        %v1918 = vpow.pop %v1917
        %v1919 = vmul.f32 %v1895, 1.442695
        %v1920 = vpow.pop %v1919
        %v1921 = vmul.f32 %v1896, 1.442695
        %v1922 = vpow.pop %v1921
        %v1923 = vmul.f32 %v1897, 1.442695
        %v1924 = vpow.pop %v1923
        %v1925 = vmul.f32 %v1898, 1.442695
        %v1926 = vpow.pop %v1925
        %v1927 = vmul.f32 %v1899, 1.442695
        %v1928 = vpow.pop %v1927
        %v1929 = vmul.f32 %v1900, 1.442695
        %v1930 = vpow.pop %v1929
        %v1931 = vmul.f32 %v1901, 1.442695
        %v1932 = vpow.pop %v1931
        %v1933 = vmul.f32 %v1902, 1.442695
        %v1934 = vpow.pop %v1933
        %v1935 = vsel %vm1018, %v1904, 0.0
        %1936 = vadd.xlane.f32.xlu0 %v1935
        %v1937 = vpop.xlane.xlu0 %1936
        %v1938 = vsel %vm1018, %v1906, 0.0
        %1939 = vadd.xlane.f32.xlu0 %v1938
        %v1940 = vpop.xlane.xlu0 %1939
        %v1941 = vsel %vm1018, %v1908, 0.0
        %1942 = vadd.xlane.f32.xlu0 %v1941
        %v1943 = vpop.xlane.xlu0 %1942
        %v1944 = vsel %vm1018, %v1910, 0.0
        %1945 = vadd.xlane.f32.xlu0 %v1944
        %v1946 = vpop.xlane.xlu0 %1945
        %v1947 = vsel %vm1018, %v1912, 0.0
        %1948 = vadd.xlane.f32.xlu0 %v1947
        %v1949 = vpop.xlane.xlu0 %1948
        %v1950 = vsel %vm1018, %v1914, 0.0
        %1951 = vadd.xlane.f32.xlu0 %v1950
        %v1952 = vpop.xlane.xlu0 %1951
        %v1953 = vsel %vm1018, %v1916, 0.0
        %1954 = vadd.xlane.f32.xlu0 %v1953
        %v1955 = vpop.xlane.xlu0 %1954
        %v1956 = vsel %vm1018, %v1918, 0.0
        %1957 = vadd.xlane.f32.xlu0 %v1956
        %v1958 = vpop.xlane.xlu0 %1957
        %v1959 = vsel %vm1018, %v1920, 0.0
        %1960 = vadd.xlane.f32.xlu0 %v1959
        %v1961 = vpop.xlane.xlu0 %1960
        %v1962 = vsel %vm1018, %v1922, 0.0
        %1963 = vadd.xlane.f32.xlu0 %v1962
        %v1964 = vpop.xlane.xlu0 %1963
        %v1965 = vsel %vm1018, %v1924, 0.0
        %1966 = vadd.xlane.f32.xlu0 %v1965
        %v1967 = vpop.xlane.xlu0 %1966
        %v1968 = vsel %vm1018, %v1926, 0.0
        %1969 = vadd.xlane.f32.xlu0 %v1968
        %v1970 = vpop.xlane.xlu0 %1969
        %v1971 = vsel %vm1018, %v1928, 0.0
        %1972 = vadd.xlane.f32.xlu0 %v1971
        %v1973 = vpop.xlane.xlu0 %1972
        %v1974 = vsel %vm1018, %v1930, 0.0
        %1975 = vadd.xlane.f32.xlu0 %v1974
        %v1976 = vpop.xlane.xlu0 %1975
        %v1977 = vsel %vm1018, %v1932, 0.0
        %1978 = vadd.xlane.f32.xlu0 %v1977
        %v1979 = vpop.xlane.xlu0 %1978
        %v1980 = vsel %vm1018, %v1934, 0.0
        %1981 = vadd.xlane.f32.xlu0 %v1980
        %v1982 = vpop.xlane.xlu0 %1981
        %v1983 = vrcp.pop %v1937
        %v1984 = vrcp.pop %v1940
        %v1985 = vrcp.pop %v1943
        %v1986 = vrcp.pop %v1946
        %v1987 = vrcp.pop %v1949
        %v1988 = vrcp.pop %v1952
        %v1989 = vrcp.pop %v1955
        %v1990 = vrcp.pop %v1958
        %v1991 = vrcp.pop %v1961
        %v1992 = vrcp.pop %v1964
        %v1993 = vrcp.pop %v1967
        %v1994 = vrcp.pop %v1970
        %v1995 = vrcp.pop %v1973
        %v1996 = vrcp.pop %v1976
        %v1997 = vrcp.pop %v1979
        %v1998 = vrcp.pop %v1982
        %v1999 = vmul.f32 %v1937, %v1983
        %v2000 = vmul.f32 %v1940, %v1984
        %v2001 = vmul.f32 %v1943, %v1985
        %v2002 = vmul.f32 %v1946, %v1986
        %v2003 = vmul.f32 %v1949, %v1987
        %v2004 = vmul.f32 %v1952, %v1988
        %v2005 = vmul.f32 %v1955, %v1989
        %v2006 = vmul.f32 %v1958, %v1990
        %v2007 = vmul.f32 %v1961, %v1991
        %v2008 = vmul.f32 %v1964, %v1992
        %v2009 = vmul.f32 %v1967, %v1993
        %v2010 = vmul.f32 %v1970, %v1994
        %v2011 = vmul.f32 %v1973, %v1995
        %v2012 = vmul.f32 %v1976, %v1996
        %v2013 = vmul.f32 %v1979, %v1997
        %v2014 = vmul.f32 %v1982, %v1998
        %v2015 = vsub.f32 2.0, %v1999
        %v2016 = vsub.f32 2.0, %v2000
        %v2017 = vsub.f32 2.0, %v2001
        %v2018 = vsub.f32 2.0, %v2002
        %v2019 = vsub.f32 2.0, %v2003
        %v2020 = vsub.f32 2.0, %v2004
        %v2021 = vsub.f32 2.0, %v2005
        %v2022 = vsub.f32 2.0, %v2006
        %v2023 = vsub.f32 2.0, %v2007
        %v2024 = vsub.f32 2.0, %v2008
        %v2025 = vsub.f32 2.0, %v2009
        %v2026 = vsub.f32 2.0, %v2010
        %v2027 = vsub.f32 2.0, %v2011
        %v2028 = vsub.f32 2.0, %v2012
        %v2029 = vsub.f32 2.0, %v2013
        %v2030 = vsub.f32 2.0, %v2014
        %v2031 = vmul.f32 %v1983, %v2015
        %v2032 = vmul.f32 %v1984, %v2016
        %v2033 = vmul.f32 %v1985, %v2017
        %v2034 = vmul.f32 %v1986, %v2018
        %v2035 = vmul.f32 %v1987, %v2019
        %v2036 = vmul.f32 %v1988, %v2020
        %v2037 = vmul.f32 %v1989, %v2021
        %v2038 = vmul.f32 %v1990, %v2022
        %v2039 = vmul.f32 %v1991, %v2023
        %v2040 = vmul.f32 %v1992, %v2024
        %v2041 = vmul.f32 %v1993, %v2025
        %v2042 = vmul.f32 %v1994, %v2026
        %v2043 = vmul.f32 %v1995, %v2027
        %v2044 = vmul.f32 %v1996, %v2028
        %v2045 = vmul.f32 %v1997, %v2029
        %v2046 = vmul.f32 %v1998, %v2030
        %v2047 = vmul.f32 %v1904, %v2031
        %v2048 = vmul.f32 %v1906, %v2032
        %v2049 = vmul.f32 %v1908, %v2033
        %v2050 = vmul.f32 %v1910, %v2034
        %v2051 = vmul.f32 %v1912, %v2035
        %v2052 = vmul.f32 %v1914, %v2036
        %v2053 = vmul.f32 %v1916, %v2037
        %v2054 = vmul.f32 %v1918, %v2038
        %v2055 = vmul.f32 %v1920, %v2039
        %v2056 = vmul.f32 %v1922, %v2040
        %v2057 = vmul.f32 %v1924, %v2041
        %v2058 = vmul.f32 %v1926, %v2042
        %v2059 = vmul.f32 %v1928, %v2043
        %v2060 = vmul.f32 %v1930, %v2044
        %v2061 = vmul.f32 %v1932, %v2045
        %v2062 = vmul.f32 %v1934, %v2046
        %2071 = vrot.lane.b32.xlu0 %v633, 96
        %v2072 = vpop.permute.xlu0 %2071
        %2073 = vrot.lane.b32.xlu0 %v638, 96
        %v2074 = vpop.permute.xlu0 %2073
        %2075 = vrot.lane.b32.xlu0 %v643, 96
        %v2076 = vpop.permute.xlu0 %2075
        %2077 = vrot.lane.b32.xlu0 %v648, 96
        %v2078 = vpop.permute.xlu0 %2077
        %2079 = vrot.lane.b32.xlu0 %v653, 96
        %v2080 = vpop.permute.xlu0 %2079
        %2081 = vrot.lane.b32.xlu0 %v658, 96
        %v2082 = vpop.permute.xlu0 %2081
        %2083 = vrot.lane.b32.xlu0 %v663, 96
        %v2084 = vpop.permute.xlu0 %2083
        %2085 = vrot.lane.b32.xlu0 %v668, 96
        %v2086 = vpop.permute.xlu0 %2085
        %v2096 = vsel %vm1018, %v2047, 0
        %v2099 = vsel %vm1018, %v2048, 0
        %v2102 = vsel %vm1018, %v2049, 0
        %v2105 = vsel %vm1018, %v2050, 0
        %v2108 = vsel %vm1018, %v2051, 0
        %v2111 = vsel %vm1018, %v2052, 0
        %v2114 = vsel %vm1018, %v2053, 0
        %v2117 = vsel %vm1018, %v2054, 0
        %2119 = vmatprep.subr.mxu0 0.0
        %2120 = vmatpush1.msra.mxu0 %v2072
        %2121 = vmatprep.subr.mxu0 0.0
        %2122 = vmatpush1.msra.mxu0 %v2074
        %2123 = vmatprep.subr.mxu0 0.0
        %2124 = vmatpush1.msra.mxu0 %v2076
        %2125 = vmatprep.subr.mxu0 0.0
        %2126 = vmatpush1.msra.mxu0 %v2078
        %2127 = vmatprep.subr.mxu0 0.0
        %2128 = vmatpush1.msra.mxu0 %v2080
        %2129 = vmatprep.subr.mxu0 0.0
        %2130 = vmatpush1.msra.mxu0 %v2082
        %2131 = vmatprep.subr.mxu0 0.0
        %2132 = vmatpush1.msra.mxu0 %v2084
        %2133 = vmatprep.subr.mxu0 0.0
        %2134 = vmatpush1.msra.mxu0 %v2086
        %2135 = vmatprep.subr.mxu0 0.0
        %2136 = vmatpush1.msra.mxu0 0.0
        %2137 = vmatprep.subr.mxu0 0.0
        %2138 = vmatpush1.msra.mxu0 0.0
        %2139 = vmatprep.subr.mxu0 0.0
        %2140 = vmatpush1.msra.mxu0 0.0
        %2141 = vmatprep.subr.mxu0 0.0
        %2142 = vmatpush1.msra.mxu0 0.0
        %2143 = vmatprep.subr.mxu0 0.0
        %2144 = vmatpush1.msra.mxu0 0.0
        %2145 = vmatprep.subr.mxu0 0.0
        %2146 = vmatpush1.msra.mxu0 0.0
        %2147 = vmatprep.subr.mxu0 0.0
        %2148 = vmatpush1.msra.mxu0 0.0
        %2149 = vmatprep.subr.mxu0 0.0
        %2150 = vmatpush1.msra.mxu0 0.0
        %2151 = vmatprep.subr.mxu0 0.0
        %2152 = vmatpush1.msra.mxu0 0.0
        %2153 = vmatprep.subr.mxu0 0.0
        %2154 = vmatpush1.msra.mxu0 0.0
        %2155 = vmatprep.subr.mxu0 0.0
        %2156 = vmatpush1.msra.mxu0 0.0
        %2157 = vmatprep.subr.mxu0 0.0
        %2158 = vmatpush1.msra.mxu0 0.0
        %2159 = vmatprep.subr.mxu0 0.0
        %2160 = vmatpush1.msra.mxu0 0.0
        %2161 = vmatprep.subr.mxu0 0.0
        %2162 = vmatpush1.msra.mxu0 0.0
        %2163 = vmatprep.subr.mxu0 0.0
        %2164 = vmatpush1.msra.mxu0 0.0
        %2165 = vmatprep.subr.mxu0 0.0
        %2166 = vmatpush1.msra.mxu0 0.0
        %2167 = vmatprep.subr.mxu0 0.0
        %2168 = vmatpush1.msra.mxu0 0.0
        %2169 = vmatprep.subr.mxu0 0.0
        %2170 = vmatpush1.msra.mxu0 0.0
        %2171 = vmatprep.subr.mxu0 0.0
        %2172 = vmatpush1.msra.mxu0 0.0
        %2173 = vmatprep.subr.mxu0 0.0
        %2174 = vmatpush1.msra.mxu0 0.0
        %2175 = vmatprep.subr.mxu0 0.0
        %2176 = vmatpush1.msra.mxu0 0.0
        %2177 = vmatprep.subr.mxu0 0.0
        %2178 = vmatpush1.msra.mxu0 0.0
        %2179 = vmatprep.subr.mxu0 0.0
        %2180 = vmatpush1.msra.mxu0 0.0
        %2181 = vmatprep.subr.mxu0 0.0
        %2182 = vmatpush1.msra.mxu0 0.0
        %2183 = vmatprep.mubr.f32.mxu0 0.0
        %2184 = vmatmul.mubr.f32.gmra.mrb[0].mxu0 %v2096
        %v2185 = vpop.f32.mrb[0].mxu0
        %v2186 = vadd.f32 0.0, %v2185
        %v2187 = vpop.f32.mrb[0].mxu0
        %2188 = vmatprep.mubr.f32.mxu0 0.0
        %2189 = vmatmul.mubr.f32.gmra.mrb[0].mxu0 %v2099
        %v2190 = vpop.f32.mrb[0].mxu0
        %v2191 = vadd.f32 0.0, %v2190
        %v2192 = vpop.f32.mrb[0].mxu0
        %2193 = vmatprep.mubr.f32.mxu0 0.0
        %2194 = vmatmul.mubr.f32.gmra.mrb[0].mxu0 %v2102
        %v2195 = vpop.f32.mrb[0].mxu0
        %v2196 = vadd.f32 0.0, %v2195
        %v2197 = vpop.f32.mrb[0].mxu0
        %2198 = vmatprep.mubr.f32.mxu0 0.0
        %2199 = vmatmul.mubr.f32.gmra.mrb[0].mxu0 %v2105
        %v2200 = vpop.f32.mrb[0].mxu0
        %v2201 = vadd.f32 0.0, %v2200
        %v2202 = vpop.f32.mrb[0].mxu0
        %2203 = vmatprep.mubr.f32.mxu0 0.0
        %2204 = vmatmul.mubr.f32.gmra.mrb[0].mxu0 %v2108
        %v2205 = vpop.f32.mrb[0].mxu0
        %v2206 = vadd.f32 0.0, %v2205
        %v2207 = vpop.f32.mrb[0].mxu0
        %2208 = vmatprep.mubr.f32.mxu0 0.0
        %2209 = vmatmul.mubr.f32.gmra.mrb[0].mxu0 %v2111
        %v2210 = vpop.f32.mrb[0].mxu0
        %v2211 = vadd.f32 0.0, %v2210
        %v2212 = vpop.f32.mrb[0].mxu0
        %2213 = vmatprep.mubr.f32.mxu0 0.0
        %2214 = vmatmul.mubr.f32.gmra.mrb[0].mxu0 %v2114
        %v2215 = vpop.f32.mrb[0].mxu0
        %v2216 = vadd.f32 0.0, %v2215
        %v2217 = vpop.f32.mrb[0].mxu0
        %2218 = vmatprep.mubr.f32.mxu0 0.0
        %2219 = vmatmul.mubr.f32.gmra.mrb[0].mxu0 %v2117
        %v2220 = vpop.f32.mrb[0].mxu0
        %v2221 = vadd.f32 0.0, %v2220
        %v2222 = vpop.f32.mrb[0].mxu0
        %2223 = vdwg.mxu0
        %2232 = vrot.lane.b32.xlu0 %v673, 96
        %v2233 = vpop.permute.xlu0 %2232
        %2234 = vrot.lane.b32.xlu0 %v678, 96
        %v2235 = vpop.permute.xlu0 %2234
        %2236 = vrot.lane.b32.xlu0 %v683, 96
        %v2237 = vpop.permute.xlu0 %2236
        %2238 = vrot.lane.b32.xlu0 %v688, 96
        %v2239 = vpop.permute.xlu0 %2238
        %2240 = vrot.lane.b32.xlu0 %v693, 96
        %v2241 = vpop.permute.xlu0 %2240
        %2242 = vrot.lane.b32.xlu0 %v698, 96
        %v2243 = vpop.permute.xlu0 %2242
        %2244 = vrot.lane.b32.xlu0 %v703, 96
        %v2245 = vpop.permute.xlu0 %2244
        %2246 = vrot.lane.b32.xlu0 %v708, 96
        %v2247 = vpop.permute.xlu0 %2246
        %v2257 = vsel %vm1018, %v2055, 0
        %v2260 = vsel %vm1018, %v2056, 0
        %v2263 = vsel %vm1018, %v2057, 0
        %v2266 = vsel %vm1018, %v2058, 0
        %v2269 = vsel %vm1018, %v2059, 0
        %v2272 = vsel %vm1018, %v2060, 0
        %v2275 = vsel %vm1018, %v2061, 0
        %v2278 = vsel %vm1018, %v2062, 0
        %2280 = vmatprep.subr.mxu0 0.0
        %2281 = vmatpush1.msra.mxu0 %v2233
        %2282 = vmatprep.subr.mxu0 0.0
        %2283 = vmatpush1.msra.mxu0 %v2235
        %2284 = vmatprep.subr.mxu0 0.0
        %2285 = vmatpush1.msra.mxu0 %v2237
        %2286 = vmatprep.subr.mxu0 0.0
        %2287 = vmatpush1.msra.mxu0 %v2239
        %2288 = vmatprep.subr.mxu0 0.0
        %2289 = vmatpush1.msra.mxu0 %v2241
        %2290 = vmatprep.subr.mxu0 0.0
        %2291 = vmatpush1.msra.mxu0 %v2243
        %2292 = vmatprep.subr.mxu0 0.0
        %2293 = vmatpush1.msra.mxu0 %v2245
        %2294 = vmatprep.subr.mxu0 0.0
        %2295 = vmatpush1.msra.mxu0 %v2247
        %2296 = vmatprep.subr.mxu0 0.0
        %2297 = vmatpush1.msra.mxu0 0.0
        %2298 = vmatprep.subr.mxu0 0.0
        %2299 = vmatpush1.msra.mxu0 0.0
        %2300 = vmatprep.subr.mxu0 0.0
        %2301 = vmatpush1.msra.mxu0 0.0
        %2302 = vmatprep.subr.mxu0 0.0
        %2303 = vmatpush1.msra.mxu0 0.0
        %2304 = vmatprep.subr.mxu0 0.0
        %2305 = vmatpush1.msra.mxu0 0.0
        %2306 = vmatprep.subr.mxu0 0.0
        %2307 = vmatpush1.msra.mxu0 0.0
        %2308 = vmatprep.subr.mxu0 0.0
        %2309 = vmatpush1.msra.mxu0 0.0
        %2310 = vmatprep.subr.mxu0 0.0
        %2311 = vmatpush1.msra.mxu0 0.0
        %2312 = vmatprep.subr.mxu0 0.0
        %2313 = vmatpush1.msra.mxu0 0.0
        %2314 = vmatprep.subr.mxu0 0.0
        %2315 = vmatpush1.msra.mxu0 0.0
        %2316 = vmatprep.subr.mxu0 0.0
        %2317 = vmatpush1.msra.mxu0 0.0
        %2318 = vmatprep.subr.mxu0 0.0
        %2319 = vmatpush1.msra.mxu0 0.0
        %2320 = vmatprep.subr.mxu0 0.0
        %2321 = vmatpush1.msra.mxu0 0.0
        %2322 = vmatprep.subr.mxu0 0.0
        %2323 = vmatpush1.msra.mxu0 0.0
        %2324 = vmatprep.subr.mxu0 0.0
        %2325 = vmatpush1.msra.mxu0 0.0
        %2326 = vmatprep.subr.mxu0 0.0
        %2327 = vmatpush1.msra.mxu0 0.0
        %2328 = vmatprep.subr.mxu0 0.0
        %2329 = vmatpush1.msra.mxu0 0.0
        %2330 = vmatprep.subr.mxu0 0.0
        %2331 = vmatpush1.msra.mxu0 0.0
        %2332 = vmatprep.subr.mxu0 0.0
        %2333 = vmatpush1.msra.mxu0 0.0
        %2334 = vmatprep.subr.mxu0 0.0
        %2335 = vmatpush1.msra.mxu0 0.0
        %2336 = vmatprep.subr.mxu0 0.0
        %2337 = vmatpush1.msra.mxu0 0.0
        %2338 = vmatprep.subr.mxu0 0.0
        %2339 = vmatpush1.msra.mxu0 0.0
        %2340 = vmatprep.subr.mxu0 0.0
        %2341 = vmatpush1.msra.mxu0 0.0
        %2342 = vmatprep.subr.mxu0 0.0
        %2343 = vmatpush1.msra.mxu0 0.0
        %2344 = vmatprep.mubr.f32.mxu0 0.0
        %2345 = vmatmul.mubr.f32.gmra.mrb[0].mxu0 %v2257
        %v2346 = vpop.f32.mrb[0].mxu0
        %v2347 = vadd.f32 0.0, %v2346
        %v2348 = vpop.f32.mrb[0].mxu0
        %2349 = vmatprep.mubr.f32.mxu0 0.0
        %2350 = vmatmul.mubr.f32.gmra.mrb[0].mxu0 %v2260
        %v2351 = vpop.f32.mrb[0].mxu0
        %v2352 = vadd.f32 0.0, %v2351
        %v2353 = vpop.f32.mrb[0].mxu0
        %2354 = vmatprep.mubr.f32.mxu0 0.0
        %2355 = vmatmul.mubr.f32.gmra.mrb[0].mxu0 %v2263
        %v2356 = vpop.f32.mrb[0].mxu0
        %v2357 = vadd.f32 0.0, %v2356
        %v2358 = vpop.f32.mrb[0].mxu0
        %2359 = vmatprep.mubr.f32.mxu0 0.0
        %2360 = vmatmul.mubr.f32.gmra.mrb[0].mxu0 %v2266
        %v2361 = vpop.f32.mrb[0].mxu0
        %v2362 = vadd.f32 0.0, %v2361
        %v2363 = vpop.f32.mrb[0].mxu0
        %2364 = vmatprep.mubr.f32.mxu0 0.0
        %2365 = vmatmul.mubr.f32.gmra.mrb[0].mxu0 %v2269
        %v2366 = vpop.f32.mrb[0].mxu0
        %v2367 = vadd.f32 0.0, %v2366
        %v2368 = vpop.f32.mrb[0].mxu0
        %2369 = vmatprep.mubr.f32.mxu0 0.0
        %2370 = vmatmul.mubr.f32.gmra.mrb[0].mxu0 %v2272
        %v2371 = vpop.f32.mrb[0].mxu0
        %v2372 = vadd.f32 0.0, %v2371
        %v2373 = vpop.f32.mrb[0].mxu0
        %2374 = vmatprep.mubr.f32.mxu0 0.0
        %2375 = vmatmul.mubr.f32.gmra.mrb[0].mxu0 %v2275
        %v2376 = vpop.f32.mrb[0].mxu0
        %v2377 = vadd.f32 0.0, %v2376
        %v2378 = vpop.f32.mrb[0].mxu0
        %2379 = vmatprep.mubr.f32.mxu0 0.0
        %2380 = vmatmul.mubr.f32.gmra.mrb[0].mxu0 %v2278
        %v2381 = vpop.f32.mrb[0].mxu0
        %v2382 = vadd.f32 0.0, %v2381
        %v2383 = vpop.f32.mrb[0].mxu0
        %2384 = vdwg.mxu0
        %2385 = vrot.lane.b32.xlu0 %v472, 64
        %v2386 = vpop.permute.xlu0 %2385
        %2387 = vrot.lane.b32.xlu0 %v478, 64
        %v2388 = vpop.permute.xlu0 %2387
        %2389 = vrot.lane.b32.xlu0 %v484, 64
        %v2390 = vpop.permute.xlu0 %2389
        %2391 = vrot.lane.b32.xlu0 %v490, 64
        %v2392 = vpop.permute.xlu0 %2391
        %2393 = vrot.lane.b32.xlu0 %v496, 64
        %v2394 = vpop.permute.xlu0 %2393
        %2395 = vrot.lane.b32.xlu0 %v502, 64
        %v2396 = vpop.permute.xlu0 %2395
        %2397 = vrot.lane.b32.xlu0 %v508, 64
        %v2398 = vpop.permute.xlu0 %2397
        %2399 = vrot.lane.b32.xlu0 %v514, 64
        %v2400 = vpop.permute.xlu0 %2399
        %2401 = vrot.lane.b32.xlu0 %v474, 64
        %v2402 = vpop.permute.xlu0 %2401
        %2403 = vrot.lane.b32.xlu0 %v480, 64
        %v2404 = vpop.permute.xlu0 %2403
        %2405 = vrot.lane.b32.xlu0 %v486, 64
        %v2406 = vpop.permute.xlu0 %2405
        %2407 = vrot.lane.b32.xlu0 %v492, 64
        %v2408 = vpop.permute.xlu0 %2407
        %2409 = vrot.lane.b32.xlu0 %v498, 64
        %v2410 = vpop.permute.xlu0 %2409
        %2411 = vrot.lane.b32.xlu0 %v504, 64
        %v2412 = vpop.permute.xlu0 %2411
        %2413 = vrot.lane.b32.xlu0 %v510, 64
        %v2414 = vpop.permute.xlu0 %2413
        %2415 = vrot.lane.b32.xlu0 %v516, 64
        %v2416 = vpop.permute.xlu0 %2415
        %v2417 = vsel %vm711, %v2386, 0
        %v2419 = vsel %vm711, %v2388, 0
        %v2421 = vsel %vm711, %v2390, 0
        %v2423 = vsel %vm711, %v2392, 0
        %v2425 = vsel %vm711, %v2394, 0
        %v2427 = vsel %vm711, %v2396, 0
        %v2429 = vsel %vm711, %v2398, 0
        %v2431 = vsel %vm711, %v2400, 0
        %v2433 = vsel %vm711, %v2402, 0
        %v2435 = vsel %vm711, %v2404, 0
        %v2437 = vsel %vm711, %v2406, 0
        %v2439 = vsel %vm711, %v2408, 0
        %v2441 = vsel %vm711, %v2410, 0
        %v2443 = vsel %vm711, %v2412, 0
        %v2445 = vsel %vm711, %v2414, 0
        %v2447 = vsel %vm711, %v2416, 0
        %2449 = vmatprep.subr.mxu0 0.0
        %2450 = vmatpush1.xpose.msra.mxu0 %v2433
        %2451 = vmatprep.subr.mxu0 0.0
        %2452 = vmatpush1.xpose.msra.mxu0 %v2435
        %2453 = vmatprep.subr.mxu0 0.0
        %2454 = vmatpush1.xpose.msra.mxu0 %v2437
        %2455 = vmatprep.subr.mxu0 0.0
        %2456 = vmatpush1.xpose.msra.mxu0 %v2439
        %2457 = vmatprep.subr.mxu0 0.0
        %2458 = vmatpush1.xpose.msra.mxu0 %v2441
        %2459 = vmatprep.subr.mxu0 0.0
        %2460 = vmatpush1.xpose.msra.mxu0 %v2443
        %2461 = vmatprep.subr.mxu0 0.0
        %2462 = vmatpush1.xpose.msra.mxu0 %v2445
        %2463 = vmatprep.subr.mxu0 0.0
        %2464 = vmatpush1.xpose.msra.mxu0 %v2447
        %2465 = vmatprep.subr.mxu0 0.0
        %2466 = vmatpush1.xpose.msra.mxu0 0.0
        %2467 = vmatprep.subr.mxu0 0.0
        %2468 = vmatpush1.xpose.msra.mxu0 0.0
        %2469 = vmatprep.subr.mxu0 0.0
        %2470 = vmatpush1.xpose.msra.mxu0 0.0
        %2471 = vmatprep.subr.mxu0 0.0
        %2472 = vmatpush1.xpose.msra.mxu0 0.0
        %2473 = vmatprep.subr.mxu0 0.0
        %2474 = vmatpush1.xpose.msra.mxu0 0.0
        %2475 = vmatprep.subr.mxu0 0.0
        %2476 = vmatpush1.xpose.msra.mxu0 0.0
        %2477 = vmatprep.subr.mxu0 0.0
        %2478 = vmatpush1.xpose.msra.mxu0 0.0
        %2479 = vmatprep.subr.mxu0 0.0
        %2480 = vmatpush1.xpose.msra.mxu0 0.0
        %2481 = vmatprep.subr.mxu0 0.0
        %2482 = vmatpush1.xpose.msra.mxu0 0.0
        %2483 = vmatprep.subr.mxu0 0.0
        %2484 = vmatpush1.xpose.msra.mxu0 0.0
        %2485 = vmatprep.subr.mxu0 0.0
        %2486 = vmatpush1.xpose.msra.mxu0 0.0
        %2487 = vmatprep.subr.mxu0 0.0
        %2488 = vmatpush1.xpose.msra.mxu0 0.0
        %2489 = vmatprep.subr.mxu0 0.0
        %2490 = vmatpush1.xpose.msra.mxu0 0.0
        %2491 = vmatprep.subr.mxu0 0.0
        %2492 = vmatpush1.xpose.msra.mxu0 0.0
        %2493 = vmatprep.subr.mxu0 0.0
        %2494 = vmatpush1.xpose.msra.mxu0 0.0
        %2495 = vmatprep.subr.mxu0 0.0
        %2496 = vmatpush1.xpose.msra.mxu0 0.0
        %2497 = vmatprep.subr.mxu0 0.0
        %2498 = vmatpush1.xpose.msra.mxu0 0.0
        %2499 = vmatprep.subr.mxu0 0.0
        %2500 = vmatpush1.xpose.msra.mxu0 0.0
        %2501 = vmatprep.subr.mxu0 0.0
        %2502 = vmatpush1.xpose.msra.mxu0 0.0
        %2503 = vmatprep.subr.mxu0 0.0
        %2504 = vmatpush1.xpose.msra.mxu0 0.0
        %2505 = vmatprep.subr.mxu0 0.0
        %2506 = vmatpush1.xpose.msra.mxu0 0.0
        %2507 = vmatprep.subr.mxu0 0.0
        %2508 = vmatpush1.xpose.msra.mxu0 0.0
        %2509 = vmatprep.subr.mxu0 0.0
        %2510 = vmatpush1.xpose.msra.mxu0 0.0
        %2511 = vmatprep.subr.mxu0 0.0
        %2512 = vmatpush1.xpose.msra.mxu0 0.0
        %2513 = vmatprep.mubr.f32.mxu0 0.0
        %2514 = vmatmul.mubr.f32.gmra.mrb[0].mxu0 %v2417
        %v2515 = vpop.f32.mrb[0].mxu0
        %v2516 = vadd.f32 0.0, %v2515
        %v2517 = vpop.f32.mrb[0].mxu0
        %2518 = vmatprep.mubr.f32.mxu0 0.0
        %2519 = vmatmul.mubr.f32.gmra.mrb[0].mxu0 %v2419
        %v2520 = vpop.f32.mrb[0].mxu0
        %v2521 = vadd.f32 0.0, %v2520
        %v2522 = vpop.f32.mrb[0].mxu0
        %2523 = vmatprep.mubr.f32.mxu0 0.0
        %2524 = vmatmul.mubr.f32.gmra.mrb[0].mxu0 %v2421
        %v2525 = vpop.f32.mrb[0].mxu0
        %v2526 = vadd.f32 0.0, %v2525
        %v2527 = vpop.f32.mrb[0].mxu0
        %2528 = vmatprep.mubr.f32.mxu0 0.0
        %2529 = vmatmul.mubr.f32.gmra.mrb[0].mxu0 %v2423
        %v2530 = vpop.f32.mrb[0].mxu0
        %v2531 = vadd.f32 0.0, %v2530
        %v2532 = vpop.f32.mrb[0].mxu0
        %2533 = vmatprep.mubr.f32.mxu0 0.0
        %2534 = vmatmul.mubr.f32.gmra.mrb[0].mxu0 %v2425
        %v2535 = vpop.f32.mrb[0].mxu0
        %v2536 = vadd.f32 0.0, %v2535
        %v2537 = vpop.f32.mrb[0].mxu0
        %2538 = vmatprep.mubr.f32.mxu0 0.0
        %2539 = vmatmul.mubr.f32.gmra.mrb[0].mxu0 %v2427
        %v2540 = vpop.f32.mrb[0].mxu0
        %v2541 = vadd.f32 0.0, %v2540
        %v2542 = vpop.f32.mrb[0].mxu0
        %2543 = vmatprep.mubr.f32.mxu0 0.0
        %2544 = vmatmul.mubr.f32.gmra.mrb[0].mxu0 %v2429
        %v2545 = vpop.f32.mrb[0].mxu0
        %v2546 = vadd.f32 0.0, %v2545
        %v2547 = vpop.f32.mrb[0].mxu0
        %2548 = vmatprep.mubr.f32.mxu0 0.0
        %2549 = vmatmul.mubr.f32.gmra.mrb[0].mxu0 %v2431
        %v2550 = vpop.f32.mrb[0].mxu0
        %v2551 = vadd.f32 0.0, %v2550
        %v2552 = vpop.f32.mrb[0].mxu0
        %2553 = vdwg.mxu0
        %2554 = vrot.lane.b32.xlu0 %v520, 64
        %v2555 = vpop.permute.xlu0 %2554
        %2556 = vrot.lane.b32.xlu0 %v526, 64
        %v2557 = vpop.permute.xlu0 %2556
        %2558 = vrot.lane.b32.xlu0 %v532, 64
        %v2559 = vpop.permute.xlu0 %2558
        %2560 = vrot.lane.b32.xlu0 %v538, 64
        %v2561 = vpop.permute.xlu0 %2560
        %2562 = vrot.lane.b32.xlu0 %v544, 64
        %v2563 = vpop.permute.xlu0 %2562
        %2564 = vrot.lane.b32.xlu0 %v550, 64
        %v2565 = vpop.permute.xlu0 %2564
        %2566 = vrot.lane.b32.xlu0 %v556, 64
        %v2567 = vpop.permute.xlu0 %2566
        %2568 = vrot.lane.b32.xlu0 %v562, 64
        %v2569 = vpop.permute.xlu0 %2568
        %2570 = vrot.lane.b32.xlu0 %v522, 64
        %v2571 = vpop.permute.xlu0 %2570
        %2572 = vrot.lane.b32.xlu0 %v528, 64
        %v2573 = vpop.permute.xlu0 %2572
        %2574 = vrot.lane.b32.xlu0 %v534, 64
        %v2575 = vpop.permute.xlu0 %2574
        %2576 = vrot.lane.b32.xlu0 %v540, 64
        %v2577 = vpop.permute.xlu0 %2576
        %2578 = vrot.lane.b32.xlu0 %v546, 64
        %v2579 = vpop.permute.xlu0 %2578
        %2580 = vrot.lane.b32.xlu0 %v552, 64
        %v2581 = vpop.permute.xlu0 %2580
        %2582 = vrot.lane.b32.xlu0 %v558, 64
        %v2583 = vpop.permute.xlu0 %2582
        %2584 = vrot.lane.b32.xlu0 %v564, 64
        %v2585 = vpop.permute.xlu0 %2584
        %v2586 = vsel %vm711, %v2555, 0
        %v2588 = vsel %vm711, %v2557, 0
        %v2590 = vsel %vm711, %v2559, 0
        %v2592 = vsel %vm711, %v2561, 0
        %v2594 = vsel %vm711, %v2563, 0
        %v2596 = vsel %vm711, %v2565, 0
        %v2598 = vsel %vm711, %v2567, 0
        %v2600 = vsel %vm711, %v2569, 0
        %v2602 = vsel %vm711, %v2571, 0
        %v2604 = vsel %vm711, %v2573, 0
        %v2606 = vsel %vm711, %v2575, 0
        %v2608 = vsel %vm711, %v2577, 0
        %v2610 = vsel %vm711, %v2579, 0
        %v2612 = vsel %vm711, %v2581, 0
        %v2614 = vsel %vm711, %v2583, 0
        %v2616 = vsel %vm711, %v2585, 0
        %2618 = vmatprep.subr.mxu0 0.0
        %2619 = vmatpush1.xpose.msra.mxu0 %v2602
        %2620 = vmatprep.subr.mxu0 0.0
        %2621 = vmatpush1.xpose.msra.mxu0 %v2604
        %2622 = vmatprep.subr.mxu0 0.0
        %2623 = vmatpush1.xpose.msra.mxu0 %v2606
        %2624 = vmatprep.subr.mxu0 0.0
        %2625 = vmatpush1.xpose.msra.mxu0 %v2608
        %2626 = vmatprep.subr.mxu0 0.0
        %2627 = vmatpush1.xpose.msra.mxu0 %v2610
        %2628 = vmatprep.subr.mxu0 0.0
        %2629 = vmatpush1.xpose.msra.mxu0 %v2612
        %2630 = vmatprep.subr.mxu0 0.0
        %2631 = vmatpush1.xpose.msra.mxu0 %v2614
        %2632 = vmatprep.subr.mxu0 0.0
        %2633 = vmatpush1.xpose.msra.mxu0 %v2616
        %2634 = vmatprep.subr.mxu0 0.0
        %2635 = vmatpush1.xpose.msra.mxu0 0.0
        %2636 = vmatprep.subr.mxu0 0.0
        %2637 = vmatpush1.xpose.msra.mxu0 0.0
        %2638 = vmatprep.subr.mxu0 0.0
        %2639 = vmatpush1.xpose.msra.mxu0 0.0
        %2640 = vmatprep.subr.mxu0 0.0
        %2641 = vmatpush1.xpose.msra.mxu0 0.0
        %2642 = vmatprep.subr.mxu0 0.0
        %2643 = vmatpush1.xpose.msra.mxu0 0.0
        %2644 = vmatprep.subr.mxu0 0.0
        %2645 = vmatpush1.xpose.msra.mxu0 0.0
        %2646 = vmatprep.subr.mxu0 0.0
        %2647 = vmatpush1.xpose.msra.mxu0 0.0
        %2648 = vmatprep.subr.mxu0 0.0
        %2649 = vmatpush1.xpose.msra.mxu0 0.0
        %2650 = vmatprep.subr.mxu0 0.0
        %2651 = vmatpush1.xpose.msra.mxu0 0.0
        %2652 = vmatprep.subr.mxu0 0.0
        %2653 = vmatpush1.xpose.msra.mxu0 0.0
        %2654 = vmatprep.subr.mxu0 0.0
        %2655 = vmatpush1.xpose.msra.mxu0 0.0
        %2656 = vmatprep.subr.mxu0 0.0
        %2657 = vmatpush1.xpose.msra.mxu0 0.0
        %2658 = vmatprep.subr.mxu0 0.0
        %2659 = vmatpush1.xpose.msra.mxu0 0.0
        %2660 = vmatprep.subr.mxu0 0.0
        %2661 = vmatpush1.xpose.msra.mxu0 0.0
        %2662 = vmatprep.subr.mxu0 0.0
        %2663 = vmatpush1.xpose.msra.mxu0 0.0
        %2664 = vmatprep.subr.mxu0 0.0
        %2665 = vmatpush1.xpose.msra.mxu0 0.0
        %2666 = vmatprep.subr.mxu0 0.0
        %2667 = vmatpush1.xpose.msra.mxu0 0.0
        %2668 = vmatprep.subr.mxu0 0.0
        %2669 = vmatpush1.xpose.msra.mxu0 0.0
        %2670 = vmatprep.subr.mxu0 0.0
        %2671 = vmatpush1.xpose.msra.mxu0 0.0
        %2672 = vmatprep.subr.mxu0 0.0
        %2673 = vmatpush1.xpose.msra.mxu0 0.0
        %2674 = vmatprep.subr.mxu0 0.0
        %2675 = vmatpush1.xpose.msra.mxu0 0.0
        %2676 = vmatprep.subr.mxu0 0.0
        %2677 = vmatpush1.xpose.msra.mxu0 0.0
        %2678 = vmatprep.subr.mxu0 0.0
        %2679 = vmatpush1.xpose.msra.mxu0 0.0
        %2680 = vmatprep.subr.mxu0 0.0
        %2681 = vmatpush1.xpose.msra.mxu0 0.0
        %2682 = vmatprep.mubr.f32.mxu0 0.0
        %2683 = vmatmul.mubr.f32.gmra.mrb[0].mxu0 %v2586
        %v2684 = vpop.f32.mrb[0].mxu0
        %v2685 = vadd.f32 0.0, %v2684
        %v2686 = vpop.f32.mrb[0].mxu0
        %2687 = vmatprep.mubr.f32.mxu0 0.0
        %2688 = vmatmul.mubr.f32.gmra.mrb[0].mxu0 %v2588
        %v2689 = vpop.f32.mrb[0].mxu0
        %v2690 = vadd.f32 0.0, %v2689
        %v2691 = vpop.f32.mrb[0].mxu0
        %2692 = vmatprep.mubr.f32.mxu0 0.0
        %2693 = vmatmul.mubr.f32.gmra.mrb[0].mxu0 %v2590
        %v2694 = vpop.f32.mrb[0].mxu0
        %v2695 = vadd.f32 0.0, %v2694
        %v2696 = vpop.f32.mrb[0].mxu0
        %2697 = vmatprep.mubr.f32.mxu0 0.0
        %2698 = vmatmul.mubr.f32.gmra.mrb[0].mxu0 %v2592
        %v2699 = vpop.f32.mrb[0].mxu0
        %v2700 = vadd.f32 0.0, %v2699
        %v2701 = vpop.f32.mrb[0].mxu0
        %2702 = vmatprep.mubr.f32.mxu0 0.0
        %2703 = vmatmul.mubr.f32.gmra.mrb[0].mxu0 %v2594
        %v2704 = vpop.f32.mrb[0].mxu0
        %v2705 = vadd.f32 0.0, %v2704
        %v2706 = vpop.f32.mrb[0].mxu0
        %2707 = vmatprep.mubr.f32.mxu0 0.0
        %2708 = vmatmul.mubr.f32.gmra.mrb[0].mxu0 %v2596
        %v2709 = vpop.f32.mrb[0].mxu0
        %v2710 = vadd.f32 0.0, %v2709
        %v2711 = vpop.f32.mrb[0].mxu0
        %2712 = vmatprep.mubr.f32.mxu0 0.0
        %2713 = vmatmul.mubr.f32.gmra.mrb[0].mxu0 %v2598
        %v2714 = vpop.f32.mrb[0].mxu0
        %v2715 = vadd.f32 0.0, %v2714
        %v2716 = vpop.f32.mrb[0].mxu0
        %2717 = vmatprep.mubr.f32.mxu0 0.0
        %2718 = vmatmul.mubr.f32.gmra.mrb[0].mxu0 %v2600
        %v2719 = vpop.f32.mrb[0].mxu0
        %v2720 = vadd.f32 0.0, %v2719
        %v2721 = vpop.f32.mrb[0].mxu0
        %2722 = vdwg.mxu0
        %v2723 = vsel %vm1018, %v2516, -inf
        %2724 = vmax.xlane.f32.xlu0 %v2723
        %v2725 = vpop.xlane.xlu0 %2724
        %v2726 = vsel %vm1018, %v2521, -inf
        %2727 = vmax.xlane.f32.xlu0 %v2726
        %v2728 = vpop.xlane.xlu0 %2727
        %v2729 = vsel %vm1018, %v2526, -inf
        %2730 = vmax.xlane.f32.xlu0 %v2729
        %v2731 = vpop.xlane.xlu0 %2730
        %v2732 = vsel %vm1018, %v2531, -inf
        %2733 = vmax.xlane.f32.xlu0 %v2732
        %v2734 = vpop.xlane.xlu0 %2733
        %v2735 = vsel %vm1018, %v2536, -inf
        %2736 = vmax.xlane.f32.xlu0 %v2735
        %v2737 = vpop.xlane.xlu0 %2736
        %v2738 = vsel %vm1018, %v2541, -inf
        %2739 = vmax.xlane.f32.xlu0 %v2738
        %v2740 = vpop.xlane.xlu0 %2739
        %v2741 = vsel %vm1018, %v2546, -inf
        %2742 = vmax.xlane.f32.xlu0 %v2741
        %v2743 = vpop.xlane.xlu0 %2742
        %v2744 = vsel %vm1018, %v2551, -inf
        %2745 = vmax.xlane.f32.xlu0 %v2744
        %v2746 = vpop.xlane.xlu0 %2745
        %v2747 = vsel %vm1018, %v2685, -inf
        %2748 = vmax.xlane.f32.xlu0 %v2747
        %v2749 = vpop.xlane.xlu0 %2748
        %v2750 = vsel %vm1018, %v2690, -inf
        %2751 = vmax.xlane.f32.xlu0 %v2750
        %v2752 = vpop.xlane.xlu0 %2751
        %v2753 = vsel %vm1018, %v2695, -inf
        %2754 = vmax.xlane.f32.xlu0 %v2753
        %v2755 = vpop.xlane.xlu0 %2754
        %v2756 = vsel %vm1018, %v2700, -inf
        %2757 = vmax.xlane.f32.xlu0 %v2756
        %v2758 = vpop.xlane.xlu0 %2757
        %v2759 = vsel %vm1018, %v2705, -inf
        %2760 = vmax.xlane.f32.xlu0 %v2759
        %v2761 = vpop.xlane.xlu0 %2760
        %v2762 = vsel %vm1018, %v2710, -inf
        %2763 = vmax.xlane.f32.xlu0 %v2762
        %v2764 = vpop.xlane.xlu0 %2763
        %v2765 = vsel %vm1018, %v2715, -inf
        %2766 = vmax.xlane.f32.xlu0 %v2765
        %v2767 = vpop.xlane.xlu0 %2766
        %v2768 = vsel %vm1018, %v2720, -inf
        %2769 = vmax.xlane.f32.xlu0 %v2768
        %v2770 = vpop.xlane.xlu0 %2769
        %v2771 = vsub.f32 %v2516, %v2725
        %v2772 = vsub.f32 %v2521, %v2728
        %v2773 = vsub.f32 %v2526, %v2731
        %v2774 = vsub.f32 %v2531, %v2734
        %v2775 = vsub.f32 %v2536, %v2737
        %v2776 = vsub.f32 %v2541, %v2740
        %v2777 = vsub.f32 %v2546, %v2743
        %v2778 = vsub.f32 %v2551, %v2746
        %v2779 = vsub.f32 %v2685, %v2749
        %v2780 = vsub.f32 %v2690, %v2752
        %v2781 = vsub.f32 %v2695, %v2755
        %v2782 = vsub.f32 %v2700, %v2758
        %v2783 = vsub.f32 %v2705, %v2761
        %v2784 = vsub.f32 %v2710, %v2764
        %v2785 = vsub.f32 %v2715, %v2767
        %v2786 = vsub.f32 %v2720, %v2770
        %v2787 = vmul.f32 %v2771, 1.442695
        %v2788 = vpow.pop %v2787
        %v2789 = vmul.f32 %v2772, 1.442695
        %v2790 = vpow.pop %v2789
        %v2791 = vmul.f32 %v2773, 1.442695
        %v2792 = vpow.pop %v2791
        %v2793 = vmul.f32 %v2774, 1.442695
        %v2794 = vpow.pop %v2793
        %v2795 = vmul.f32 %v2775, 1.442695
        %v2796 = vpow.pop %v2795
        %v2797 = vmul.f32 %v2776, 1.442695
        %v2798 = vpow.pop %v2797
        %v2799 = vmul.f32 %v2777, 1.442695
        %v2800 = vpow.pop %v2799
        %v2801 = vmul.f32 %v2778, 1.442695
        %v2802 = vpow.pop %v2801
        %v2803 = vmul.f32 %v2779, 1.442695
        %v2804 = vpow.pop %v2803
        %v2805 = vmul.f32 %v2780, 1.442695
        %v2806 = vpow.pop %v2805
        %v2807 = vmul.f32 %v2781, 1.442695
        %v2808 = vpow.pop %v2807
        %v2809 = vmul.f32 %v2782, 1.442695
        %v2810 = vpow.pop %v2809
        %v2811 = vmul.f32 %v2783, 1.442695
        %v2812 = vpow.pop %v2811
        %v2813 = vmul.f32 %v2784, 1.442695
        %v2814 = vpow.pop %v2813
        %v2815 = vmul.f32 %v2785, 1.442695
        %v2816 = vpow.pop %v2815
        %v2817 = vmul.f32 %v2786, 1.442695
        %v2818 = vpow.pop %v2817
        %v2819 = vsel %vm1018, %v2788, 0.0
        %2820 = vadd.xlane.f32.xlu0 %v2819
        %v2821 = vpop.xlane.xlu0 %2820
        %v2822 = vsel %vm1018, %v2790, 0.0
        %2823 = vadd.xlane.f32.xlu0 %v2822
        %v2824 = vpop.xlane.xlu0 %2823
        %v2825 = vsel %vm1018, %v2792, 0.0
        %2826 = vadd.xlane.f32.xlu0 %v2825
        %v2827 = vpop.xlane.xlu0 %2826
        %v2828 = vsel %vm1018, %v2794, 0.0
        %2829 = vadd.xlane.f32.xlu0 %v2828
        %v2830 = vpop.xlane.xlu0 %2829
        %v2831 = vsel %vm1018, %v2796, 0.0
        %2832 = vadd.xlane.f32.xlu0 %v2831
        %v2833 = vpop.xlane.xlu0 %2832
        %v2834 = vsel %vm1018, %v2798, 0.0
        %2835 = vadd.xlane.f32.xlu0 %v2834
        %v2836 = vpop.xlane.xlu0 %2835
        %v2837 = vsel %vm1018, %v2800, 0.0
        %2838 = vadd.xlane.f32.xlu0 %v2837
        %v2839 = vpop.xlane.xlu0 %2838
        %v2840 = vsel %vm1018, %v2802, 0.0
        %2841 = vadd.xlane.f32.xlu0 %v2840
        %v2842 = vpop.xlane.xlu0 %2841
        %v2843 = vsel %vm1018, %v2804, 0.0
        %2844 = vadd.xlane.f32.xlu0 %v2843
        %v2845 = vpop.xlane.xlu0 %2844
        %v2846 = vsel %vm1018, %v2806, 0.0
        %2847 = vadd.xlane.f32.xlu0 %v2846
        %v2848 = vpop.xlane.xlu0 %2847
        %v2849 = vsel %vm1018, %v2808, 0.0
        %2850 = vadd.xlane.f32.xlu0 %v2849
        %v2851 = vpop.xlane.xlu0 %2850
        %v2852 = vsel %vm1018, %v2810, 0.0
        %2853 = vadd.xlane.f32.xlu0 %v2852
        %v2854 = vpop.xlane.xlu0 %2853
        %v2855 = vsel %vm1018, %v2812, 0.0
        %2856 = vadd.xlane.f32.xlu0 %v2855
        %v2857 = vpop.xlane.xlu0 %2856
        %v2858 = vsel %vm1018, %v2814, 0.0
        %2859 = vadd.xlane.f32.xlu0 %v2858
        %v2860 = vpop.xlane.xlu0 %2859
        %v2861 = vsel %vm1018, %v2816, 0.0
        %2862 = vadd.xlane.f32.xlu0 %v2861
        %v2863 = vpop.xlane.xlu0 %2862
        %v2864 = vsel %vm1018, %v2818, 0.0
        %2865 = vadd.xlane.f32.xlu0 %v2864
        %v2866 = vpop.xlane.xlu0 %2865
        %v2867 = vrcp.pop %v2821
        %v2868 = vrcp.pop %v2824
        %v2869 = vrcp.pop %v2827
        %v2870 = vrcp.pop %v2830
        %v2871 = vrcp.pop %v2833
        %v2872 = vrcp.pop %v2836
        %v2873 = vrcp.pop %v2839
        %v2874 = vrcp.pop %v2842
        %v2875 = vrcp.pop %v2845
        %v2876 = vrcp.pop %v2848
        %v2877 = vrcp.pop %v2851
        %v2878 = vrcp.pop %v2854
        %v2879 = vrcp.pop %v2857
        %v2880 = vrcp.pop %v2860
        %v2881 = vrcp.pop %v2863
        %v2882 = vrcp.pop %v2866
        %v2883 = vmul.f32 %v2821, %v2867
        %v2884 = vmul.f32 %v2824, %v2868
        %v2885 = vmul.f32 %v2827, %v2869
        %v2886 = vmul.f32 %v2830, %v2870
        %v2887 = vmul.f32 %v2833, %v2871
        %v2888 = vmul.f32 %v2836, %v2872
        %v2889 = vmul.f32 %v2839, %v2873
        %v2890 = vmul.f32 %v2842, %v2874
        %v2891 = vmul.f32 %v2845, %v2875
        %v2892 = vmul.f32 %v2848, %v2876
        %v2893 = vmul.f32 %v2851, %v2877
        %v2894 = vmul.f32 %v2854, %v2878
        %v2895 = vmul.f32 %v2857, %v2879
        %v2896 = vmul.f32 %v2860, %v2880
        %v2897 = vmul.f32 %v2863, %v2881
        %v2898 = vmul.f32 %v2866, %v2882
        %v2899 = vsub.f32 2.0, %v2883
        %v2900 = vsub.f32 2.0, %v2884
        %v2901 = vsub.f32 2.0, %v2885
        %v2902 = vsub.f32 2.0, %v2886
        %v2903 = vsub.f32 2.0, %v2887
        %v2904 = vsub.f32 2.0, %v2888
        %v2905 = vsub.f32 2.0, %v2889
        %v2906 = vsub.f32 2.0, %v2890
        %v2907 = vsub.f32 2.0, %v2891
        %v2908 = vsub.f32 2.0, %v2892
        %v2909 = vsub.f32 2.0, %v2893
        %v2910 = vsub.f32 2.0, %v2894
        %v2911 = vsub.f32 2.0, %v2895
        %v2912 = vsub.f32 2.0, %v2896
        %v2913 = vsub.f32 2.0, %v2897
        %v2914 = vsub.f32 2.0, %v2898
        %v2915 = vmul.f32 %v2867, %v2899
        %v2916 = vmul.f32 %v2868, %v2900
        %v2917 = vmul.f32 %v2869, %v2901
        %v2918 = vmul.f32 %v2870, %v2902
        %v2919 = vmul.f32 %v2871, %v2903
        %v2920 = vmul.f32 %v2872, %v2904
        %v2921 = vmul.f32 %v2873, %v2905
        %v2922 = vmul.f32 %v2874, %v2906
        %v2923 = vmul.f32 %v2875, %v2907
        %v2924 = vmul.f32 %v2876, %v2908
        %v2925 = vmul.f32 %v2877, %v2909
        %v2926 = vmul.f32 %v2878, %v2910
        %v2927 = vmul.f32 %v2879, %v2911
        %v2928 = vmul.f32 %v2880, %v2912
        %v2929 = vmul.f32 %v2881, %v2913
        %v2930 = vmul.f32 %v2882, %v2914
        %v2931 = vmul.f32 %v2788, %v2915
        %v2932 = vmul.f32 %v2790, %v2916
        %v2933 = vmul.f32 %v2792, %v2917
        %v2934 = vmul.f32 %v2794, %v2918
        %v2935 = vmul.f32 %v2796, %v2919
        %v2936 = vmul.f32 %v2798, %v2920
        %v2937 = vmul.f32 %v2800, %v2921
        %v2938 = vmul.f32 %v2802, %v2922
        %v2939 = vmul.f32 %v2804, %v2923
        %v2940 = vmul.f32 %v2806, %v2924
        %v2941 = vmul.f32 %v2808, %v2925
        %v2942 = vmul.f32 %v2810, %v2926
        %v2943 = vmul.f32 %v2812, %v2927
        %v2944 = vmul.f32 %v2814, %v2928
        %v2945 = vmul.f32 %v2816, %v2929
        %v2946 = vmul.f32 %v2818, %v2930
        %2947 = vrot.lane.b32.xlu0 %v633, 64
        %v2948 = vpop.permute.xlu0 %2947
        %2949 = vrot.lane.b32.xlu0 %v638, 64
        %v2950 = vpop.permute.xlu0 %2949
        %2951 = vrot.lane.b32.xlu0 %v643, 64
        %v2952 = vpop.permute.xlu0 %2951
        %2953 = vrot.lane.b32.xlu0 %v648, 64
        %v2954 = vpop.permute.xlu0 %2953
        %2955 = vrot.lane.b32.xlu0 %v653, 64
        %v2956 = vpop.permute.xlu0 %2955
        %2957 = vrot.lane.b32.xlu0 %v658, 64
        %v2958 = vpop.permute.xlu0 %2957
        %2959 = vrot.lane.b32.xlu0 %v663, 64
        %v2960 = vpop.permute.xlu0 %2959
        %2961 = vrot.lane.b32.xlu0 %v668, 64
        %v2962 = vpop.permute.xlu0 %2961
        %v2972 = vsel %vm1018, %v2931, 0
        %v2975 = vsel %vm1018, %v2932, 0
        %v2978 = vsel %vm1018, %v2933, 0
        %v2981 = vsel %vm1018, %v2934, 0
        %v2984 = vsel %vm1018, %v2935, 0
        %v2987 = vsel %vm1018, %v2936, 0
        %v2990 = vsel %vm1018, %v2937, 0
        %v2993 = vsel %vm1018, %v2938, 0
        %2995 = vmatprep.subr.mxu0 0.0
        %2996 = vmatpush1.msra.mxu0 %v2948
        %2997 = vmatprep.subr.mxu0 0.0
        %2998 = vmatpush1.msra.mxu0 %v2950
        %2999 = vmatprep.subr.mxu0 0.0
        %3000 = vmatpush1.msra.mxu0 %v2952
        %3001 = vmatprep.subr.mxu0 0.0
        %3002 = vmatpush1.msra.mxu0 %v2954
        %3003 = vmatprep.subr.mxu0 0.0
        %3004 = vmatpush1.msra.mxu0 %v2956
        %3005 = vmatprep.subr.mxu0 0.0
        %3006 = vmatpush1.msra.mxu0 %v2958
        %3007 = vmatprep.subr.mxu0 0.0
        %3008 = vmatpush1.msra.mxu0 %v2960
        %3009 = vmatprep.subr.mxu0 0.0
        %3010 = vmatpush1.msra.mxu0 %v2962
        %3011 = vmatprep.subr.mxu0 0.0
        %3012 = vmatpush1.msra.mxu0 0.0
        %3013 = vmatprep.subr.mxu0 0.0
        %3014 = vmatpush1.msra.mxu0 0.0
        %3015 = vmatprep.subr.mxu0 0.0
        %3016 = vmatpush1.msra.mxu0 0.0
        %3017 = vmatprep.subr.mxu0 0.0
        %3018 = vmatpush1.msra.mxu0 0.0
        %3019 = vmatprep.subr.mxu0 0.0
        %3020 = vmatpush1.msra.mxu0 0.0
        %3021 = vmatprep.subr.mxu0 0.0
        %3022 = vmatpush1.msra.mxu0 0.0
        %3023 = vmatprep.subr.mxu0 0.0
        %3024 = vmatpush1.msra.mxu0 0.0
        %3025 = vmatprep.subr.mxu0 0.0
        %3026 = vmatpush1.msra.mxu0 0.0
        %3027 = vmatprep.subr.mxu0 0.0
        %3028 = vmatpush1.msra.mxu0 0.0
        %3029 = vmatprep.subr.mxu0 0.0
        %3030 = vmatpush1.msra.mxu0 0.0
        %3031 = vmatprep.subr.mxu0 0.0
        %3032 = vmatpush1.msra.mxu0 0.0
        %3033 = vmatprep.subr.mxu0 0.0
        %3034 = vmatpush1.msra.mxu0 0.0
        %3035 = vmatprep.subr.mxu0 0.0
        %3036 = vmatpush1.msra.mxu0 0.0
        %3037 = vmatprep.subr.mxu0 0.0
        %3038 = vmatpush1.msra.mxu0 0.0
        %3039 = vmatprep.subr.mxu0 0.0
        %3040 = vmatpush1.msra.mxu0 0.0
        %3041 = vmatprep.subr.mxu0 0.0
        %3042 = vmatpush1.msra.mxu0 0.0
        %3043 = vmatprep.subr.mxu0 0.0
        %3044 = vmatpush1.msra.mxu0 0.0
        %3045 = vmatprep.subr.mxu0 0.0
        %3046 = vmatpush1.msra.mxu0 0.0
        %3047 = vmatprep.subr.mxu0 0.0
        %3048 = vmatpush1.msra.mxu0 0.0
        %3049 = vmatprep.subr.mxu0 0.0
        %3050 = vmatpush1.msra.mxu0 0.0
        %3051 = vmatprep.subr.mxu0 0.0
        %3052 = vmatpush1.msra.mxu0 0.0
        %3053 = vmatprep.subr.mxu0 0.0
        %3054 = vmatpush1.msra.mxu0 0.0
        %3055 = vmatprep.subr.mxu0 0.0
        %3056 = vmatpush1.msra.mxu0 0.0
        %3057 = vmatprep.subr.mxu0 0.0
        %3058 = vmatpush1.msra.mxu0 0.0
        %3059 = vmatprep.mubr.f32.mxu0 0.0
        %3060 = vmatmul.mubr.f32.gmra.mrb[0].mxu0 %v2972
        %v3061 = vpop.f32.mrb[0].mxu0
        %v3062 = vadd.f32 0.0, %v3061
        %v3063 = vpop.f32.mrb[0].mxu0
        %3064 = vmatprep.mubr.f32.mxu0 0.0
        %3065 = vmatmul.mubr.f32.gmra.mrb[0].mxu0 %v2975
        %v3066 = vpop.f32.mrb[0].mxu0
        %v3067 = vadd.f32 0.0, %v3066
        %v3068 = vpop.f32.mrb[0].mxu0
        %3069 = vmatprep.mubr.f32.mxu0 0.0
        %3070 = vmatmul.mubr.f32.gmra.mrb[0].mxu0 %v2978
        %v3071 = vpop.f32.mrb[0].mxu0
        %v3072 = vadd.f32 0.0, %v3071
        %v3073 = vpop.f32.mrb[0].mxu0
        %3074 = vmatprep.mubr.f32.mxu0 0.0
        %3075 = vmatmul.mubr.f32.gmra.mrb[0].mxu0 %v2981
        %v3076 = vpop.f32.mrb[0].mxu0
        %v3077 = vadd.f32 0.0, %v3076
        %v3078 = vpop.f32.mrb[0].mxu0
        %3079 = vmatprep.mubr.f32.mxu0 0.0
        %3080 = vmatmul.mubr.f32.gmra.mrb[0].mxu0 %v2984
        %v3081 = vpop.f32.mrb[0].mxu0
        %v3082 = vadd.f32 0.0, %v3081
        %v3083 = vpop.f32.mrb[0].mxu0
        %3084 = vmatprep.mubr.f32.mxu0 0.0
        %3085 = vmatmul.mubr.f32.gmra.mrb[0].mxu0 %v2987
        %v3086 = vpop.f32.mrb[0].mxu0
        %v3087 = vadd.f32 0.0, %v3086
        %v3088 = vpop.f32.mrb[0].mxu0
        %3089 = vmatprep.mubr.f32.mxu0 0.0
        %3090 = vmatmul.mubr.f32.gmra.mrb[0].mxu0 %v2990
        %v3091 = vpop.f32.mrb[0].mxu0
        %v3092 = vadd.f32 0.0, %v3091
        %v3093 = vpop.f32.mrb[0].mxu0
        %3094 = vmatprep.mubr.f32.mxu0 0.0
        %3095 = vmatmul.mubr.f32.gmra.mrb[0].mxu0 %v2993
        %v3096 = vpop.f32.mrb[0].mxu0
        %v3097 = vadd.f32 0.0, %v3096
        %v3098 = vpop.f32.mrb[0].mxu0
        %3099 = vdwg.mxu0
        %3100 = vrot.lane.b32.xlu0 %v673, 64
        %v3101 = vpop.permute.xlu0 %3100
        %3102 = vrot.lane.b32.xlu0 %v678, 64
        %v3103 = vpop.permute.xlu0 %3102
        %3104 = vrot.lane.b32.xlu0 %v683, 64
        %v3105 = vpop.permute.xlu0 %3104
        %3106 = vrot.lane.b32.xlu0 %v688, 64
        %v3107 = vpop.permute.xlu0 %3106
        %3108 = vrot.lane.b32.xlu0 %v693, 64
        %v3109 = vpop.permute.xlu0 %3108
        %3110 = vrot.lane.b32.xlu0 %v698, 64
        %v3111 = vpop.permute.xlu0 %3110
        %3112 = vrot.lane.b32.xlu0 %v703, 64
        %v3113 = vpop.permute.xlu0 %3112
        %3114 = vrot.lane.b32.xlu0 %v708, 64
        %v3115 = vpop.permute.xlu0 %3114
        %v3125 = vsel %vm1018, %v2939, 0
        %v3128 = vsel %vm1018, %v2940, 0
        %v3131 = vsel %vm1018, %v2941, 0
        %v3134 = vsel %vm1018, %v2942, 0
        %v3137 = vsel %vm1018, %v2943, 0
        %v3140 = vsel %vm1018, %v2944, 0
        %v3143 = vsel %vm1018, %v2945, 0
        %v3146 = vsel %vm1018, %v2946, 0
        %3148 = vmatprep.subr.mxu0 0.0
        %3149 = vmatpush1.msra.mxu0 %v3101
        %3150 = vmatprep.subr.mxu0 0.0
        %3151 = vmatpush1.msra.mxu0 %v3103
        %3152 = vmatprep.subr.mxu0 0.0
        %3153 = vmatpush1.msra.mxu0 %v3105
        %3154 = vmatprep.subr.mxu0 0.0
        %3155 = vmatpush1.msra.mxu0 %v3107
        %3156 = vmatprep.subr.mxu0 0.0
        %3157 = vmatpush1.msra.mxu0 %v3109
        %3158 = vmatprep.subr.mxu0 0.0
        %3159 = vmatpush1.msra.mxu0 %v3111
        %3160 = vmatprep.subr.mxu0 0.0
        %3161 = vmatpush1.msra.mxu0 %v3113
        %3162 = vmatprep.subr.mxu0 0.0
        %3163 = vmatpush1.msra.mxu0 %v3115
        %3164 = vmatprep.subr.mxu0 0.0
        %3165 = vmatpush1.msra.mxu0 0.0
        %3166 = vmatprep.subr.mxu0 0.0
        %3167 = vmatpush1.msra.mxu0 0.0
        %3168 = vmatprep.subr.mxu0 0.0
        %3169 = vmatpush1.msra.mxu0 0.0
        %3170 = vmatprep.subr.mxu0 0.0
        %3171 = vmatpush1.msra.mxu0 0.0
        %3172 = vmatprep.subr.mxu0 0.0
        %3173 = vmatpush1.msra.mxu0 0.0
        %3174 = vmatprep.subr.mxu0 0.0
        %3175 = vmatpush1.msra.mxu0 0.0
        %3176 = vmatprep.subr.mxu0 0.0
        %3177 = vmatpush1.msra.mxu0 0.0
        %3178 = vmatprep.subr.mxu0 0.0
        %3179 = vmatpush1.msra.mxu0 0.0
        %3180 = vmatprep.subr.mxu0 0.0
        %3181 = vmatpush1.msra.mxu0 0.0
        %3182 = vmatprep.subr.mxu0 0.0
        %3183 = vmatpush1.msra.mxu0 0.0
        %3184 = vmatprep.subr.mxu0 0.0
        %3185 = vmatpush1.msra.mxu0 0.0
        %3186 = vmatprep.subr.mxu0 0.0
        %3187 = vmatpush1.msra.mxu0 0.0
        %3188 = vmatprep.subr.mxu0 0.0
        %3189 = vmatpush1.msra.mxu0 0.0
        %3190 = vmatprep.subr.mxu0 0.0
        %3191 = vmatpush1.msra.mxu0 0.0
        %3192 = vmatprep.subr.mxu0 0.0
        %3193 = vmatpush1.msra.mxu0 0.0
        %3194 = vmatprep.subr.mxu0 0.0
        %3195 = vmatpush1.msra.mxu0 0.0
        %3196 = vmatprep.subr.mxu0 0.0
        %3197 = vmatpush1.msra.mxu0 0.0
        %3198 = vmatprep.subr.mxu0 0.0
        %3199 = vmatpush1.msra.mxu0 0.0
        %3200 = vmatprep.subr.mxu0 0.0
        %3201 = vmatpush1.msra.mxu0 0.0
        %3202 = vmatprep.subr.mxu0 0.0
        %3203 = vmatpush1.msra.mxu0 0.0
        %3204 = vmatprep.subr.mxu0 0.0
        %3205 = vmatpush1.msra.mxu0 0.0
        %3206 = vmatprep.subr.mxu0 0.0
        %3207 = vmatpush1.msra.mxu0 0.0
        %3208 = vmatprep.subr.mxu0 0.0
        %3209 = vmatpush1.msra.mxu0 0.0
        %3210 = vmatprep.subr.mxu0 0.0
        %3211 = vmatpush1.msra.mxu0 0.0
        %3212 = vmatprep.mubr.f32.mxu0 0.0
        %3213 = vmatmul.mubr.f32.gmra.mrb[0].mxu0 %v3125
        %v3214 = vpop.f32.mrb[0].mxu0
        %v3215 = vadd.f32 0.0, %v3214
        %v3216 = vpop.f32.mrb[0].mxu0
        %3217 = vmatprep.mubr.f32.mxu0 0.0
        %3218 = vmatmul.mubr.f32.gmra.mrb[0].mxu0 %v3128
        %v3219 = vpop.f32.mrb[0].mxu0
        %v3220 = vadd.f32 0.0, %v3219
        %v3221 = vpop.f32.mrb[0].mxu0
        %3222 = vmatprep.mubr.f32.mxu0 0.0
        %3223 = vmatmul.mubr.f32.gmra.mrb[0].mxu0 %v3131
        %v3224 = vpop.f32.mrb[0].mxu0
        %v3225 = vadd.f32 0.0, %v3224
        %v3226 = vpop.f32.mrb[0].mxu0
        %3227 = vmatprep.mubr.f32.mxu0 0.0
        %3228 = vmatmul.mubr.f32.gmra.mrb[0].mxu0 %v3134
        %v3229 = vpop.f32.mrb[0].mxu0
        %v3230 = vadd.f32 0.0, %v3229
        %v3231 = vpop.f32.mrb[0].mxu0
        %3232 = vmatprep.mubr.f32.mxu0 0.0
        %3233 = vmatmul.mubr.f32.gmra.mrb[0].mxu0 %v3137
        %v3234 = vpop.f32.mrb[0].mxu0
        %v3235 = vadd.f32 0.0, %v3234
        %v3236 = vpop.f32.mrb[0].mxu0
        %3237 = vmatprep.mubr.f32.mxu0 0.0
        %3238 = vmatmul.mubr.f32.gmra.mrb[0].mxu0 %v3140
        %v3239 = vpop.f32.mrb[0].mxu0
        %v3240 = vadd.f32 0.0, %v3239
        %v3241 = vpop.f32.mrb[0].mxu0
        %3242 = vmatprep.mubr.f32.mxu0 0.0
        %3243 = vmatmul.mubr.f32.gmra.mrb[0].mxu0 %v3143
        %v3244 = vpop.f32.mrb[0].mxu0
        %v3245 = vadd.f32 0.0, %v3244
        %v3246 = vpop.f32.mrb[0].mxu0
        %3247 = vmatprep.mubr.f32.mxu0 0.0
        %3248 = vmatmul.mubr.f32.gmra.mrb[0].mxu0 %v3146
        %v3249 = vpop.f32.mrb[0].mxu0
        %v3250 = vadd.f32 0.0, %v3249
        %v3251 = vpop.f32.mrb[0].mxu0
        %3252 = vdwg.mxu0
        %3253 = vrot.lane.b32.xlu0 %v472, 32
        %v3254 = vpop.permute.xlu0 %3253
        %3255 = vrot.lane.b32.xlu0 %v478, 32
        %v3256 = vpop.permute.xlu0 %3255
        %3257 = vrot.lane.b32.xlu0 %v484, 32
        %v3258 = vpop.permute.xlu0 %3257
        %3259 = vrot.lane.b32.xlu0 %v490, 32
        %v3260 = vpop.permute.xlu0 %3259
        %3261 = vrot.lane.b32.xlu0 %v496, 32
        %v3262 = vpop.permute.xlu0 %3261
        %3263 = vrot.lane.b32.xlu0 %v502, 32
        %v3264 = vpop.permute.xlu0 %3263
        %3265 = vrot.lane.b32.xlu0 %v508, 32
        %v3266 = vpop.permute.xlu0 %3265
        %3267 = vrot.lane.b32.xlu0 %v514, 32
        %v3268 = vpop.permute.xlu0 %3267
        %3269 = vrot.lane.b32.xlu0 %v474, 32
        %v3270 = vpop.permute.xlu0 %3269
        %3271 = vrot.lane.b32.xlu0 %v480, 32
        %v3272 = vpop.permute.xlu0 %3271
        %3273 = vrot.lane.b32.xlu0 %v486, 32
        %v3274 = vpop.permute.xlu0 %3273
        %3275 = vrot.lane.b32.xlu0 %v492, 32
        %v3276 = vpop.permute.xlu0 %3275
        %3277 = vrot.lane.b32.xlu0 %v498, 32
        %v3278 = vpop.permute.xlu0 %3277
        %3279 = vrot.lane.b32.xlu0 %v504, 32
        %v3280 = vpop.permute.xlu0 %3279
        %3281 = vrot.lane.b32.xlu0 %v510, 32
        %v3282 = vpop.permute.xlu0 %3281
        %3283 = vrot.lane.b32.xlu0 %v516, 32
        %v3284 = vpop.permute.xlu0 %3283
        %v3285 = vsel %vm711, %v3254, 0
        %v3287 = vsel %vm711, %v3256, 0
        %v3289 = vsel %vm711, %v3258, 0
        %v3291 = vsel %vm711, %v3260, 0
        %v3293 = vsel %vm711, %v3262, 0
        %v3295 = vsel %vm711, %v3264, 0
        %v3297 = vsel %vm711, %v3266, 0
        %v3299 = vsel %vm711, %v3268, 0
        %v3301 = vsel %vm711, %v3270, 0
        %v3303 = vsel %vm711, %v3272, 0
        %v3305 = vsel %vm711, %v3274, 0
        %v3307 = vsel %vm711, %v3276, 0
        %v3309 = vsel %vm711, %v3278, 0
        %v3311 = vsel %vm711, %v3280, 0
        %v3313 = vsel %vm711, %v3282, 0
        %v3315 = vsel %vm711, %v3284, 0
        %3317 = vmatprep.subr.mxu0 0.0
        %3318 = vmatpush1.xpose.msra.mxu0 %v3301
        %3319 = vmatprep.subr.mxu0 0.0
        %3320 = vmatpush1.xpose.msra.mxu0 %v3303
        %3321 = vmatprep.subr.mxu0 0.0
        %3322 = vmatpush1.xpose.msra.mxu0 %v3305
        %3323 = vmatprep.subr.mxu0 0.0
        %3324 = vmatpush1.xpose.msra.mxu0 %v3307
        %3325 = vmatprep.subr.mxu0 0.0
        %3326 = vmatpush1.xpose.msra.mxu0 %v3309
        %3327 = vmatprep.subr.mxu0 0.0
        %3328 = vmatpush1.xpose.msra.mxu0 %v3311
        %3329 = vmatprep.subr.mxu0 0.0
        %3330 = vmatpush1.xpose.msra.mxu0 %v3313
        %3331 = vmatprep.subr.mxu0 0.0
        %3332 = vmatpush1.xpose.msra.mxu0 %v3315
        %3333 = vmatprep.subr.mxu0 0.0
        %3334 = vmatpush1.xpose.msra.mxu0 0.0
        %3335 = vmatprep.subr.mxu0 0.0
        %3336 = vmatpush1.xpose.msra.mxu0 0.0
        %3337 = vmatprep.subr.mxu0 0.0
        %3338 = vmatpush1.xpose.msra.mxu0 0.0
        %3339 = vmatprep.subr.mxu0 0.0
        %3340 = vmatpush1.xpose.msra.mxu0 0.0
        %3341 = vmatprep.subr.mxu0 0.0
        %3342 = vmatpush1.xpose.msra.mxu0 0.0
        %3343 = vmatprep.subr.mxu0 0.0
        %3344 = vmatpush1.xpose.msra.mxu0 0.0
        %3345 = vmatprep.subr.mxu0 0.0
        %3346 = vmatpush1.xpose.msra.mxu0 0.0
        %3347 = vmatprep.subr.mxu0 0.0
        %3348 = vmatpush1.xpose.msra.mxu0 0.0
        %3349 = vmatprep.subr.mxu0 0.0
        %3350 = vmatpush1.xpose.msra.mxu0 0.0
        %3351 = vmatprep.subr.mxu0 0.0
        %3352 = vmatpush1.xpose.msra.mxu0 0.0
        %3353 = vmatprep.subr.mxu0 0.0
        %3354 = vmatpush1.xpose.msra.mxu0 0.0
        %3355 = vmatprep.subr.mxu0 0.0
        %3356 = vmatpush1.xpose.msra.mxu0 0.0
        %3357 = vmatprep.subr.mxu0 0.0
        %3358 = vmatpush1.xpose.msra.mxu0 0.0
        %3359 = vmatprep.subr.mxu0 0.0
        %3360 = vmatpush1.xpose.msra.mxu0 0.0
        %3361 = vmatprep.subr.mxu0 0.0
        %3362 = vmatpush1.xpose.msra.mxu0 0.0
        %3363 = vmatprep.subr.mxu0 0.0
        %3364 = vmatpush1.xpose.msra.mxu0 0.0
        %3365 = vmatprep.subr.mxu0 0.0
        %3366 = vmatpush1.xpose.msra.mxu0 0.0
        %3367 = vmatprep.subr.mxu0 0.0
        %3368 = vmatpush1.xpose.msra.mxu0 0.0
        %3369 = vmatprep.subr.mxu0 0.0
        %3370 = vmatpush1.xpose.msra.mxu0 0.0
        %3371 = vmatprep.subr.mxu0 0.0
        %3372 = vmatpush1.xpose.msra.mxu0 0.0
        %3373 = vmatprep.subr.mxu0 0.0
        %3374 = vmatpush1.xpose.msra.mxu0 0.0
        %3375 = vmatprep.subr.mxu0 0.0
        %3376 = vmatpush1.xpose.msra.mxu0 0.0
        %3377 = vmatprep.subr.mxu0 0.0
        %3378 = vmatpush1.xpose.msra.mxu0 0.0
        %3379 = vmatprep.subr.mxu0 0.0
        %3380 = vmatpush1.xpose.msra.mxu0 0.0
        %3381 = vmatprep.mubr.f32.mxu0 0.0
        %3382 = vmatmul.mubr.f32.gmra.mrb[0].mxu0 %v3285
        %v3383 = vpop.f32.mrb[0].mxu0
        %v3384 = vadd.f32 0.0, %v3383
        %v3385 = vpop.f32.mrb[0].mxu0
        %3386 = vmatprep.mubr.f32.mxu0 0.0
        %3387 = vmatmul.mubr.f32.gmra.mrb[0].mxu0 %v3287
        %v3388 = vpop.f32.mrb[0].mxu0
        %v3389 = vadd.f32 0.0, %v3388
        %v3390 = vpop.f32.mrb[0].mxu0
        %3391 = vmatprep.mubr.f32.mxu0 0.0
        %3392 = vmatmul.mubr.f32.gmra.mrb[0].mxu0 %v3289
        %v3393 = vpop.f32.mrb[0].mxu0
        %v3394 = vadd.f32 0.0, %v3393
        %v3395 = vpop.f32.mrb[0].mxu0
        %3396 = vmatprep.mubr.f32.mxu0 0.0
        %3397 = vmatmul.mubr.f32.gmra.mrb[0].mxu0 %v3291
        %v3398 = vpop.f32.mrb[0].mxu0
        %v3399 = vadd.f32 0.0, %v3398
        %v3400 = vpop.f32.mrb[0].mxu0
        %3401 = vmatprep.mubr.f32.mxu0 0.0
        %3402 = vmatmul.mubr.f32.gmra.mrb[0].mxu0 %v3293
        %v3403 = vpop.f32.mrb[0].mxu0
        %v3404 = vadd.f32 0.0, %v3403
        %v3405 = vpop.f32.mrb[0].mxu0
        %3406 = vmatprep.mubr.f32.mxu0 0.0
        %3407 = vmatmul.mubr.f32.gmra.mrb[0].mxu0 %v3295
        %v3408 = vpop.f32.mrb[0].mxu0
        %v3409 = vadd.f32 0.0, %v3408
        %v3410 = vpop.f32.mrb[0].mxu0
        %3411 = vmatprep.mubr.f32.mxu0 0.0
        %3412 = vmatmul.mubr.f32.gmra.mrb[0].mxu0 %v3297
        %v3413 = vpop.f32.mrb[0].mxu0
        %v3414 = vadd.f32 0.0, %v3413
        %v3415 = vpop.f32.mrb[0].mxu0
        %3416 = vmatprep.mubr.f32.mxu0 0.0
        %3417 = vmatmul.mubr.f32.gmra.mrb[0].mxu0 %v3299
        %v3418 = vpop.f32.mrb[0].mxu0
        %v3419 = vadd.f32 0.0, %v3418
        %v3420 = vpop.f32.mrb[0].mxu0
        %3421 = vdwg.mxu0
        %3422 = vrot.lane.b32.xlu0 %v520, 32
        %v3423 = vpop.permute.xlu0 %3422
        %3424 = vrot.lane.b32.xlu0 %v526, 32
        %v3425 = vpop.permute.xlu0 %3424
        %3426 = vrot.lane.b32.xlu0 %v532, 32
        %v3427 = vpop.permute.xlu0 %3426
        %3428 = vrot.lane.b32.xlu0 %v538, 32
        %v3429 = vpop.permute.xlu0 %3428
        %3430 = vrot.lane.b32.xlu0 %v544, 32
        %v3431 = vpop.permute.xlu0 %3430
        %3432 = vrot.lane.b32.xlu0 %v550, 32
        %v3433 = vpop.permute.xlu0 %3432
        %3434 = vrot.lane.b32.xlu0 %v556, 32
        %v3435 = vpop.permute.xlu0 %3434
        %3436 = vrot.lane.b32.xlu0 %v562, 32
        %v3437 = vpop.permute.xlu0 %3436
        %3438 = vrot.lane.b32.xlu0 %v522, 32
        %v3439 = vpop.permute.xlu0 %3438
        %3440 = vrot.lane.b32.xlu0 %v528, 32
        %v3441 = vpop.permute.xlu0 %3440
        %3442 = vrot.lane.b32.xlu0 %v534, 32
        %v3443 = vpop.permute.xlu0 %3442
        %3444 = vrot.lane.b32.xlu0 %v540, 32
        %v3445 = vpop.permute.xlu0 %3444
        %3446 = vrot.lane.b32.xlu0 %v546, 32
        %v3447 = vpop.permute.xlu0 %3446
        %3448 = vrot.lane.b32.xlu0 %v552, 32
        %v3449 = vpop.permute.xlu0 %3448
        %3450 = vrot.lane.b32.xlu0 %v558, 32
        %v3451 = vpop.permute.xlu0 %3450
        %3452 = vrot.lane.b32.xlu0 %v564, 32
        %v3453 = vpop.permute.xlu0 %3452
        %v3454 = vsel %vm711, %v3423, 0
        %v3456 = vsel %vm711, %v3425, 0
        %v3458 = vsel %vm711, %v3427, 0
        %v3460 = vsel %vm711, %v3429, 0
        %v3462 = vsel %vm711, %v3431, 0
        %v3464 = vsel %vm711, %v3433, 0
        %v3466 = vsel %vm711, %v3435, 0
        %v3468 = vsel %vm711, %v3437, 0
        %v3470 = vsel %vm711, %v3439, 0
        %v3472 = vsel %vm711, %v3441, 0
        %v3474 = vsel %vm711, %v3443, 0
        %v3476 = vsel %vm711, %v3445, 0
        %v3478 = vsel %vm711, %v3447, 0
        %v3480 = vsel %vm711, %v3449, 0
        %v3482 = vsel %vm711, %v3451, 0
        %v3484 = vsel %vm711, %v3453, 0
        %3486 = vmatprep.subr.mxu0 0.0
        %3487 = vmatpush1.xpose.msra.mxu0 %v3470
        %3488 = vmatprep.subr.mxu0 0.0
        %3489 = vmatpush1.xpose.msra.mxu0 %v3472
        %3490 = vmatprep.subr.mxu0 0.0
        %3491 = vmatpush1.xpose.msra.mxu0 %v3474
        %3492 = vmatprep.subr.mxu0 0.0
        %3493 = vmatpush1.xpose.msra.mxu0 %v3476
        %3494 = vmatprep.subr.mxu0 0.0
        %3495 = vmatpush1.xpose.msra.mxu0 %v3478
        %3496 = vmatprep.subr.mxu0 0.0
        %3497 = vmatpush1.xpose.msra.mxu0 %v3480
        %3498 = vmatprep.subr.mxu0 0.0
        %3499 = vmatpush1.xpose.msra.mxu0 %v3482
        %3500 = vmatprep.subr.mxu0 0.0
        %3501 = vmatpush1.xpose.msra.mxu0 %v3484
        %3502 = vmatprep.subr.mxu0 0.0
        %3503 = vmatpush1.xpose.msra.mxu0 0.0
        %3504 = vmatprep.subr.mxu0 0.0
        %3505 = vmatpush1.xpose.msra.mxu0 0.0
        %3506 = vmatprep.subr.mxu0 0.0
        %3507 = vmatpush1.xpose.msra.mxu0 0.0
        %3508 = vmatprep.subr.mxu0 0.0
        %3509 = vmatpush1.xpose.msra.mxu0 0.0
        %3510 = vmatprep.subr.mxu0 0.0
        %3511 = vmatpush1.xpose.msra.mxu0 0.0
        %3512 = vmatprep.subr.mxu0 0.0
        %3513 = vmatpush1.xpose.msra.mxu0 0.0
        %3514 = vmatprep.subr.mxu0 0.0
        %3515 = vmatpush1.xpose.msra.mxu0 0.0
        %3516 = vmatprep.subr.mxu0 0.0
        %3517 = vmatpush1.xpose.msra.mxu0 0.0
        %3518 = vmatprep.subr.mxu0 0.0
        %3519 = vmatpush1.xpose.msra.mxu0 0.0
        %3520 = vmatprep.subr.mxu0 0.0
        %3521 = vmatpush1.xpose.msra.mxu0 0.0
        %3522 = vmatprep.subr.mxu0 0.0
        %3523 = vmatpush1.xpose.msra.mxu0 0.0
        %3524 = vmatprep.subr.mxu0 0.0
        %3525 = vmatpush1.xpose.msra.mxu0 0.0
        %3526 = vmatprep.subr.mxu0 0.0
        %3527 = vmatpush1.xpose.msra.mxu0 0.0
        %3528 = vmatprep.subr.mxu0 0.0
        %3529 = vmatpush1.xpose.msra.mxu0 0.0
        %3530 = vmatprep.subr.mxu0 0.0
        %3531 = vmatpush1.xpose.msra.mxu0 0.0
        %3532 = vmatprep.subr.mxu0 0.0
        %3533 = vmatpush1.xpose.msra.mxu0 0.0
        %3534 = vmatprep.subr.mxu0 0.0
        %3535 = vmatpush1.xpose.msra.mxu0 0.0
        %3536 = vmatprep.subr.mxu0 0.0
        %3537 = vmatpush1.xpose.msra.mxu0 0.0
        %3538 = vmatprep.subr.mxu0 0.0
        %3539 = vmatpush1.xpose.msra.mxu0 0.0
        %3540 = vmatprep.subr.mxu0 0.0
        %3541 = vmatpush1.xpose.msra.mxu0 0.0
        %3542 = vmatprep.subr.mxu0 0.0
        %3543 = vmatpush1.xpose.msra.mxu0 0.0
        %3544 = vmatprep.subr.mxu0 0.0
        %3545 = vmatpush1.xpose.msra.mxu0 0.0
        %3546 = vmatprep.subr.mxu0 0.0
        %3547 = vmatpush1.xpose.msra.mxu0 0.0
        %3548 = vmatprep.subr.mxu0 0.0
        %3549 = vmatpush1.xpose.msra.mxu0 0.0
        %3550 = vmatprep.mubr.f32.mxu0 0.0
        %3551 = vmatmul.mubr.f32.gmra.mrb[0].mxu0 %v3454
        %v3552 = vpop.f32.mrb[0].mxu0
        %v3553 = vadd.f32 0.0, %v3552
        %v3554 = vpop.f32.mrb[0].mxu0
        %3555 = vmatprep.mubr.f32.mxu0 0.0
        %3556 = vmatmul.mubr.f32.gmra.mrb[0].mxu0 %v3456
        %v3557 = vpop.f32.mrb[0].mxu0
        %v3558 = vadd.f32 0.0, %v3557
        %v3559 = vpop.f32.mrb[0].mxu0
        %3560 = vmatprep.mubr.f32.mxu0 0.0
        %3561 = vmatmul.mubr.f32.gmra.mrb[0].mxu0 %v3458
        %v3562 = vpop.f32.mrb[0].mxu0
        %v3563 = vadd.f32 0.0, %v3562
        %v3564 = vpop.f32.mrb[0].mxu0
        %3565 = vmatprep.mubr.f32.mxu0 0.0
        %3566 = vmatmul.mubr.f32.gmra.mrb[0].mxu0 %v3460
        %v3567 = vpop.f32.mrb[0].mxu0
        %v3568 = vadd.f32 0.0, %v3567
        %v3569 = vpop.f32.mrb[0].mxu0
        %3570 = vmatprep.mubr.f32.mxu0 0.0
        %3571 = vmatmul.mubr.f32.gmra.mrb[0].mxu0 %v3462
        %v3572 = vpop.f32.mrb[0].mxu0
        %v3573 = vadd.f32 0.0, %v3572
        %v3574 = vpop.f32.mrb[0].mxu0
        %3575 = vmatprep.mubr.f32.mxu0 0.0
        %3576 = vmatmul.mubr.f32.gmra.mrb[0].mxu0 %v3464
        %v3577 = vpop.f32.mrb[0].mxu0
        %v3578 = vadd.f32 0.0, %v3577
        %v3579 = vpop.f32.mrb[0].mxu0
        %3580 = vmatprep.mubr.f32.mxu0 0.0
        %3581 = vmatmul.mubr.f32.gmra.mrb[0].mxu0 %v3466
        %v3582 = vpop.f32.mrb[0].mxu0
        %v3583 = vadd.f32 0.0, %v3582
        %v3584 = vpop.f32.mrb[0].mxu0
        %3585 = vmatprep.mubr.f32.mxu0 0.0
        %3586 = vmatmul.mubr.f32.gmra.mrb[0].mxu0 %v3468
        %v3587 = vpop.f32.mrb[0].mxu0
        %v3588 = vadd.f32 0.0, %v3587
        %v3589 = vpop.f32.mrb[0].mxu0
        %3590 = vdwg.mxu0
        %v3591 = vsel %vm1018, %v3384, -inf
        %3592 = vmax.xlane.f32.xlu0 %v3591
        %v3593 = vpop.xlane.xlu0 %3592
        %v3594 = vsel %vm1018, %v3389, -inf
        %3595 = vmax.xlane.f32.xlu0 %v3594
        %v3596 = vpop.xlane.xlu0 %3595
        %v3597 = vsel %vm1018, %v3394, -inf
        %3598 = vmax.xlane.f32.xlu0 %v3597
        %v3599 = vpop.xlane.xlu0 %3598
        %v3600 = vsel %vm1018, %v3399, -inf
        %3601 = vmax.xlane.f32.xlu0 %v3600
        %v3602 = vpop.xlane.xlu0 %3601
        %v3603 = vsel %vm1018, %v3404, -inf
        %3604 = vmax.xlane.f32.xlu0 %v3603
        %v3605 = vpop.xlane.xlu0 %3604
        %v3606 = vsel %vm1018, %v3409, -inf
        %3607 = vmax.xlane.f32.xlu0 %v3606
        %v3608 = vpop.xlane.xlu0 %3607
        %v3609 = vsel %vm1018, %v3414, -inf
        %3610 = vmax.xlane.f32.xlu0 %v3609
        %v3611 = vpop.xlane.xlu0 %3610
        %v3612 = vsel %vm1018, %v3419, -inf
        %3613 = vmax.xlane.f32.xlu0 %v3612
        %v3614 = vpop.xlane.xlu0 %3613
        %v3615 = vsel %vm1018, %v3553, -inf
        %3616 = vmax.xlane.f32.xlu0 %v3615
        %v3617 = vpop.xlane.xlu0 %3616
        %v3618 = vsel %vm1018, %v3558, -inf
        %3619 = vmax.xlane.f32.xlu0 %v3618
        %v3620 = vpop.xlane.xlu0 %3619
        %v3621 = vsel %vm1018, %v3563, -inf
        %3622 = vmax.xlane.f32.xlu0 %v3621
        %v3623 = vpop.xlane.xlu0 %3622
        %v3624 = vsel %vm1018, %v3568, -inf
        %3625 = vmax.xlane.f32.xlu0 %v3624
        %v3626 = vpop.xlane.xlu0 %3625
        %v3627 = vsel %vm1018, %v3573, -inf
        %3628 = vmax.xlane.f32.xlu0 %v3627
        %v3629 = vpop.xlane.xlu0 %3628
        %v3630 = vsel %vm1018, %v3578, -inf
        %3631 = vmax.xlane.f32.xlu0 %v3630
        %v3632 = vpop.xlane.xlu0 %3631
        %v3633 = vsel %vm1018, %v3583, -inf
        %3634 = vmax.xlane.f32.xlu0 %v3633
        %v3635 = vpop.xlane.xlu0 %3634
        %v3636 = vsel %vm1018, %v3588, -inf
        %3637 = vmax.xlane.f32.xlu0 %v3636
        %v3638 = vpop.xlane.xlu0 %3637
        %v3639 = vsub.f32 %v3384, %v3593
        %v3640 = vsub.f32 %v3389, %v3596
        %v3641 = vsub.f32 %v3394, %v3599
        %v3642 = vsub.f32 %v3399, %v3602
        %v3643 = vsub.f32 %v3404, %v3605
        %v3644 = vsub.f32 %v3409, %v3608
        %v3645 = vsub.f32 %v3414, %v3611
        %v3646 = vsub.f32 %v3419, %v3614
        %v3647 = vsub.f32 %v3553, %v3617
        %v3648 = vsub.f32 %v3558, %v3620
        %v3649 = vsub.f32 %v3563, %v3623
        %v3650 = vsub.f32 %v3568, %v3626
        %v3651 = vsub.f32 %v3573, %v3629
        %v3652 = vsub.f32 %v3578, %v3632
        %v3653 = vsub.f32 %v3583, %v3635
        %v3654 = vsub.f32 %v3588, %v3638
        %v3655 = vmul.f32 %v3639, 1.442695
        %v3656 = vpow.pop %v3655
        %v3657 = vmul.f32 %v3640, 1.442695
        %v3658 = vpow.pop %v3657
        %v3659 = vmul.f32 %v3641, 1.442695
        %v3660 = vpow.pop %v3659
        %v3661 = vmul.f32 %v3642, 1.442695
        %v3662 = vpow.pop %v3661
        %v3663 = vmul.f32 %v3643, 1.442695
        %v3664 = vpow.pop %v3663
        %v3665 = vmul.f32 %v3644, 1.442695
        %v3666 = vpow.pop %v3665
        %v3667 = vmul.f32 %v3645, 1.442695
        %v3668 = vpow.pop %v3667
        %v3669 = vmul.f32 %v3646, 1.442695
        %v3670 = vpow.pop %v3669
        %v3671 = vmul.f32 %v3647, 1.442695
        %v3672 = vpow.pop %v3671
        %v3673 = vmul.f32 %v3648, 1.442695
        %v3674 = vpow.pop %v3673
        %v3675 = vmul.f32 %v3649, 1.442695
        %v3676 = vpow.pop %v3675
        %v3677 = vmul.f32 %v3650, 1.442695
        %v3678 = vpow.pop %v3677
        %v3679 = vmul.f32 %v3651, 1.442695
        %v3680 = vpow.pop %v3679
        %v3681 = vmul.f32 %v3652, 1.442695
        %v3682 = vpow.pop %v3681
        %v3683 = vmul.f32 %v3653, 1.442695
        %v3684 = vpow.pop %v3683
        %v3685 = vmul.f32 %v3654, 1.442695
        %v3686 = vpow.pop %v3685
        %v3687 = vsel %vm1018, %v3656, 0.0
        %3688 = vadd.xlane.f32.xlu0 %v3687
        %v3689 = vpop.xlane.xlu0 %3688
        %v3690 = vsel %vm1018, %v3658, 0.0
        %3691 = vadd.xlane.f32.xlu0 %v3690
        %v3692 = vpop.xlane.xlu0 %3691
        %v3693 = vsel %vm1018, %v3660, 0.0
        %3694 = vadd.xlane.f32.xlu0 %v3693
        %v3695 = vpop.xlane.xlu0 %3694
        %v3696 = vsel %vm1018, %v3662, 0.0
        %3697 = vadd.xlane.f32.xlu0 %v3696
        %v3698 = vpop.xlane.xlu0 %3697
        %v3699 = vsel %vm1018, %v3664, 0.0
        %3700 = vadd.xlane.f32.xlu0 %v3699
        %v3701 = vpop.xlane.xlu0 %3700
        %v3702 = vsel %vm1018, %v3666, 0.0
        %3703 = vadd.xlane.f32.xlu0 %v3702
        %v3704 = vpop.xlane.xlu0 %3703
        %v3705 = vsel %vm1018, %v3668, 0.0
        %3706 = vadd.xlane.f32.xlu0 %v3705
        %v3707 = vpop.xlane.xlu0 %3706
        %v3708 = vsel %vm1018, %v3670, 0.0
        %3709 = vadd.xlane.f32.xlu0 %v3708
        %v3710 = vpop.xlane.xlu0 %3709
        %v3711 = vsel %vm1018, %v3672, 0.0
        %3712 = vadd.xlane.f32.xlu0 %v3711
        %v3713 = vpop.xlane.xlu0 %3712
        %v3714 = vsel %vm1018, %v3674, 0.0
        %3715 = vadd.xlane.f32.xlu0 %v3714
        %v3716 = vpop.xlane.xlu0 %3715
        %v3717 = vsel %vm1018, %v3676, 0.0
        %3718 = vadd.xlane.f32.xlu0 %v3717
        %v3719 = vpop.xlane.xlu0 %3718
        %v3720 = vsel %vm1018, %v3678, 0.0
        %3721 = vadd.xlane.f32.xlu0 %v3720
        %v3722 = vpop.xlane.xlu0 %3721
        %v3723 = vsel %vm1018, %v3680, 0.0
        %3724 = vadd.xlane.f32.xlu0 %v3723
        %v3725 = vpop.xlane.xlu0 %3724
        %v3726 = vsel %vm1018, %v3682, 0.0
        %3727 = vadd.xlane.f32.xlu0 %v3726
        %v3728 = vpop.xlane.xlu0 %3727
        %v3729 = vsel %vm1018, %v3684, 0.0
        %3730 = vadd.xlane.f32.xlu0 %v3729
        %v3731 = vpop.xlane.xlu0 %3730
        %v3732 = vsel %vm1018, %v3686, 0.0
        %3733 = vadd.xlane.f32.xlu0 %v3732
        %v3734 = vpop.xlane.xlu0 %3733
        %v3735 = vrcp.pop %v3689
        %v3736 = vrcp.pop %v3692
        %v3737 = vrcp.pop %v3695
        %v3738 = vrcp.pop %v3698
        %v3739 = vrcp.pop %v3701
        %v3740 = vrcp.pop %v3704
        %v3741 = vrcp.pop %v3707
        %v3742 = vrcp.pop %v3710
        %v3743 = vrcp.pop %v3713
        %v3744 = vrcp.pop %v3716
        %v3745 = vrcp.pop %v3719
        %v3746 = vrcp.pop %v3722
        %v3747 = vrcp.pop %v3725
        %v3748 = vrcp.pop %v3728
        %v3749 = vrcp.pop %v3731
        %v3750 = vrcp.pop %v3734
        %v3751 = vmul.f32 %v3689, %v3735
        %v3752 = vmul.f32 %v3692, %v3736
        %v3753 = vmul.f32 %v3695, %v3737
        %v3754 = vmul.f32 %v3698, %v3738
        %v3755 = vmul.f32 %v3701, %v3739
        %v3756 = vmul.f32 %v3704, %v3740
        %v3757 = vmul.f32 %v3707, %v3741
        %v3758 = vmul.f32 %v3710, %v3742
        %v3759 = vmul.f32 %v3713, %v3743
        %v3760 = vmul.f32 %v3716, %v3744
        %v3761 = vmul.f32 %v3719, %v3745
        %v3762 = vmul.f32 %v3722, %v3746
        %v3763 = vmul.f32 %v3725, %v3747
        %v3764 = vmul.f32 %v3728, %v3748
        %v3765 = vmul.f32 %v3731, %v3749
        %v3766 = vmul.f32 %v3734, %v3750
        %v3767 = vsub.f32 2.0, %v3751
        %v3768 = vsub.f32 2.0, %v3752
        %v3769 = vsub.f32 2.0, %v3753
        %v3770 = vsub.f32 2.0, %v3754
        %v3771 = vsub.f32 2.0, %v3755
        %v3772 = vsub.f32 2.0, %v3756
        %v3773 = vsub.f32 2.0, %v3757
        %v3774 = vsub.f32 2.0, %v3758
        %v3775 = vsub.f32 2.0, %v3759
        %v3776 = vsub.f32 2.0, %v3760
        %v3777 = vsub.f32 2.0, %v3761
        %v3778 = vsub.f32 2.0, %v3762
        %v3779 = vsub.f32 2.0, %v3763
        %v3780 = vsub.f32 2.0, %v3764
        %v3781 = vsub.f32 2.0, %v3765
        %v3782 = vsub.f32 2.0, %v3766
        %v3783 = vmul.f32 %v3735, %v3767
        %v3784 = vmul.f32 %v3736, %v3768
        %v3785 = vmul.f32 %v3737, %v3769
        %v3786 = vmul.f32 %v3738, %v3770
        %v3787 = vmul.f32 %v3739, %v3771
        %v3788 = vmul.f32 %v3740, %v3772
        %v3789 = vmul.f32 %v3741, %v3773
        %v3790 = vmul.f32 %v3742, %v3774
        %v3791 = vmul.f32 %v3743, %v3775
        %v3792 = vmul.f32 %v3744, %v3776
        %v3793 = vmul.f32 %v3745, %v3777
        %v3794 = vmul.f32 %v3746, %v3778
        %v3795 = vmul.f32 %v3747, %v3779
        %v3796 = vmul.f32 %v3748, %v3780
        %v3797 = vmul.f32 %v3749, %v3781
        %v3798 = vmul.f32 %v3750, %v3782
        %v3799 = vmul.f32 %v3656, %v3783
        %v3800 = vmul.f32 %v3658, %v3784
        %v3801 = vmul.f32 %v3660, %v3785
        %v3802 = vmul.f32 %v3662, %v3786
        %v3803 = vmul.f32 %v3664, %v3787
        %v3804 = vmul.f32 %v3666, %v3788
        %v3805 = vmul.f32 %v3668, %v3789
        %v3806 = vmul.f32 %v3670, %v3790
        %v3807 = vmul.f32 %v3672, %v3791
        %v3808 = vmul.f32 %v3674, %v3792
        %v3809 = vmul.f32 %v3676, %v3793
        %v3810 = vmul.f32 %v3678, %v3794
        %v3811 = vmul.f32 %v3680, %v3795
        %v3812 = vmul.f32 %v3682, %v3796
        %v3813 = vmul.f32 %v3684, %v3797
        %v3814 = vmul.f32 %v3686, %v3798
        %3815 = vrot.lane.b32.xlu0 %v633, 32
        %v3816 = vpop.permute.xlu0 %3815
        %3817 = vrot.lane.b32.xlu0 %v638, 32
        %v3818 = vpop.permute.xlu0 %3817
        %3819 = vrot.lane.b32.xlu0 %v643, 32
        %v3820 = vpop.permute.xlu0 %3819
        %3821 = vrot.lane.b32.xlu0 %v648, 32
        %v3822 = vpop.permute.xlu0 %3821
        %3823 = vrot.lane.b32.xlu0 %v653, 32
        %v3824 = vpop.permute.xlu0 %3823
        %3825 = vrot.lane.b32.xlu0 %v658, 32
        %v3826 = vpop.permute.xlu0 %3825
        %3827 = vrot.lane.b32.xlu0 %v663, 32
        %v3828 = vpop.permute.xlu0 %3827
        %3829 = vrot.lane.b32.xlu0 %v668, 32
        %v3830 = vpop.permute.xlu0 %3829
        %v3840 = vsel %vm1018, %v3799, 0
        %v3843 = vsel %vm1018, %v3800, 0
        %v3846 = vsel %vm1018, %v3801, 0
        %v3849 = vsel %vm1018, %v3802, 0
        %v3852 = vsel %vm1018, %v3803, 0
        %v3855 = vsel %vm1018, %v3804, 0
        %v3858 = vsel %vm1018, %v3805, 0
        %v3861 = vsel %vm1018, %v3806, 0
        %3863 = vmatprep.subr.mxu0 0.0
        %3864 = vmatpush1.msra.mxu0 %v3816
        %3865 = vmatprep.subr.mxu0 0.0
        %3866 = vmatpush1.msra.mxu0 %v3818
        %3867 = vmatprep.subr.mxu0 0.0
        %3868 = vmatpush1.msra.mxu0 %v3820
        %3869 = vmatprep.subr.mxu0 0.0
        %3870 = vmatpush1.msra.mxu0 %v3822
        %3871 = vmatprep.subr.mxu0 0.0
        %3872 = vmatpush1.msra.mxu0 %v3824
        %3873 = vmatprep.subr.mxu0 0.0
        %3874 = vmatpush1.msra.mxu0 %v3826
        %3875 = vmatprep.subr.mxu0 0.0
        %3876 = vmatpush1.msra.mxu0 %v3828
        %3877 = vmatprep.subr.mxu0 0.0
        %3878 = vmatpush1.msra.mxu0 %v3830
        %3879 = vmatprep.subr.mxu0 0.0
        %3880 = vmatpush1.msra.mxu0 0.0
        %3881 = vmatprep.subr.mxu0 0.0
        %3882 = vmatpush1.msra.mxu0 0.0
        %3883 = vmatprep.subr.mxu0 0.0
        %3884 = vmatpush1.msra.mxu0 0.0
        %3885 = vmatprep.subr.mxu0 0.0
        %3886 = vmatpush1.msra.mxu0 0.0
        %3887 = vmatprep.subr.mxu0 0.0
        %3888 = vmatpush1.msra.mxu0 0.0
        %3889 = vmatprep.subr.mxu0 0.0
        %3890 = vmatpush1.msra.mxu0 0.0
        %3891 = vmatprep.subr.mxu0 0.0
        %3892 = vmatpush1.msra.mxu0 0.0
        %3893 = vmatprep.subr.mxu0 0.0
        %3894 = vmatpush1.msra.mxu0 0.0
        %3895 = vmatprep.subr.mxu0 0.0
        %3896 = vmatpush1.msra.mxu0 0.0
        %3897 = vmatprep.subr.mxu0 0.0
        %3898 = vmatpush1.msra.mxu0 0.0
        %3899 = vmatprep.subr.mxu0 0.0
        %3900 = vmatpush1.msra.mxu0 0.0
        %3901 = vmatprep.subr.mxu0 0.0
        %3902 = vmatpush1.msra.mxu0 0.0
        %3903 = vmatprep.subr.mxu0 0.0
        %3904 = vmatpush1.msra.mxu0 0.0
        %3905 = vmatprep.subr.mxu0 0.0
        %3906 = vmatpush1.msra.mxu0 0.0
        %3907 = vmatprep.subr.mxu0 0.0
        %3908 = vmatpush1.msra.mxu0 0.0
        %3909 = vmatprep.subr.mxu0 0.0
        %3910 = vmatpush1.msra.mxu0 0.0
        %3911 = vmatprep.subr.mxu0 0.0
        %3912 = vmatpush1.msra.mxu0 0.0
        %3913 = vmatprep.subr.mxu0 0.0
        %3914 = vmatpush1.msra.mxu0 0.0
        %3915 = vmatprep.subr.mxu0 0.0
        %3916 = vmatpush1.msra.mxu0 0.0
        %3917 = vmatprep.subr.mxu0 0.0
        %3918 = vmatpush1.msra.mxu0 0.0
        %3919 = vmatprep.subr.mxu0 0.0
        %3920 = vmatpush1.msra.mxu0 0.0
        %3921 = vmatprep.subr.mxu0 0.0
        %3922 = vmatpush1.msra.mxu0 0.0
        %3923 = vmatprep.subr.mxu0 0.0
        %3924 = vmatpush1.msra.mxu0 0.0
        %3925 = vmatprep.subr.mxu0 0.0
        %3926 = vmatpush1.msra.mxu0 0.0
        %3927 = vmatprep.mubr.f32.mxu0 0.0
        %3928 = vmatmul.mubr.f32.gmra.mrb[0].mxu0 %v3840
        %v3929 = vpop.f32.mrb[0].mxu0
        %v3930 = vadd.f32 0.0, %v3929
        %v3931 = vpop.f32.mrb[0].mxu0
        %3932 = vmatprep.mubr.f32.mxu0 0.0
        %3933 = vmatmul.mubr.f32.gmra.mrb[0].mxu0 %v3843
        %v3934 = vpop.f32.mrb[0].mxu0
        %v3935 = vadd.f32 0.0, %v3934
        %v3936 = vpop.f32.mrb[0].mxu0
        %3937 = vmatprep.mubr.f32.mxu0 0.0
        %3938 = vmatmul.mubr.f32.gmra.mrb[0].mxu0 %v3846
        %v3939 = vpop.f32.mrb[0].mxu0
        %v3940 = vadd.f32 0.0, %v3939
        %v3941 = vpop.f32.mrb[0].mxu0
        %3942 = vmatprep.mubr.f32.mxu0 0.0
        %3943 = vmatmul.mubr.f32.gmra.mrb[0].mxu0 %v3849
        %v3944 = vpop.f32.mrb[0].mxu0
        %v3945 = vadd.f32 0.0, %v3944
        %v3946 = vpop.f32.mrb[0].mxu0
        %3947 = vmatprep.mubr.f32.mxu0 0.0
        %3948 = vmatmul.mubr.f32.gmra.mrb[0].mxu0 %v3852
        %v3949 = vpop.f32.mrb[0].mxu0
        %v3950 = vadd.f32 0.0, %v3949
        %v3951 = vpop.f32.mrb[0].mxu0
        %3952 = vmatprep.mubr.f32.mxu0 0.0
        %3953 = vmatmul.mubr.f32.gmra.mrb[0].mxu0 %v3855
        %v3954 = vpop.f32.mrb[0].mxu0
        %v3955 = vadd.f32 0.0, %v3954
        %v3956 = vpop.f32.mrb[0].mxu0
        %3957 = vmatprep.mubr.f32.mxu0 0.0
        %3958 = vmatmul.mubr.f32.gmra.mrb[0].mxu0 %v3858
        %v3959 = vpop.f32.mrb[0].mxu0
        %v3960 = vadd.f32 0.0, %v3959
        %v3961 = vpop.f32.mrb[0].mxu0
        %3962 = vmatprep.mubr.f32.mxu0 0.0
        %3963 = vmatmul.mubr.f32.gmra.mrb[0].mxu0 %v3861
        %v3964 = vpop.f32.mrb[0].mxu0
        %v3965 = vadd.f32 0.0, %v3964
        %v3966 = vpop.f32.mrb[0].mxu0
        %3967 = vdwg.mxu0
        %3968 = vrot.lane.b32.xlu0 %v673, 32
        %v3969 = vpop.permute.xlu0 %3968
        %3970 = vrot.lane.b32.xlu0 %v678, 32
        %v3971 = vpop.permute.xlu0 %3970
        %3972 = vrot.lane.b32.xlu0 %v683, 32
        %v3973 = vpop.permute.xlu0 %3972
        %3974 = vrot.lane.b32.xlu0 %v688, 32
        %v3975 = vpop.permute.xlu0 %3974
        %3976 = vrot.lane.b32.xlu0 %v693, 32
        %v3977 = vpop.permute.xlu0 %3976
        %3978 = vrot.lane.b32.xlu0 %v698, 32
        %v3979 = vpop.permute.xlu0 %3978
        %3980 = vrot.lane.b32.xlu0 %v703, 32
        %v3981 = vpop.permute.xlu0 %3980
        %3982 = vrot.lane.b32.xlu0 %v708, 32
        %v3983 = vpop.permute.xlu0 %3982
        %v3993 = vsel %vm1018, %v3807, 0
        %v3996 = vsel %vm1018, %v3808, 0
        %v3999 = vsel %vm1018, %v3809, 0
        %v4002 = vsel %vm1018, %v3810, 0
        %v4005 = vsel %vm1018, %v3811, 0
        %v4008 = vsel %vm1018, %v3812, 0
        %v4011 = vsel %vm1018, %v3813, 0
        %v4014 = vsel %vm1018, %v3814, 0
        %4016 = vmatprep.subr.mxu0 0.0
        %4017 = vmatpush1.msra.mxu0 %v3969
        %4018 = vmatprep.subr.mxu0 0.0
        %4019 = vmatpush1.msra.mxu0 %v3971
        %4020 = vmatprep.subr.mxu0 0.0
        %4021 = vmatpush1.msra.mxu0 %v3973
        %4022 = vmatprep.subr.mxu0 0.0
        %4023 = vmatpush1.msra.mxu0 %v3975
        %4024 = vmatprep.subr.mxu0 0.0
        %4025 = vmatpush1.msra.mxu0 %v3977
        %4026 = vmatprep.subr.mxu0 0.0
        %4027 = vmatpush1.msra.mxu0 %v3979
        %4028 = vmatprep.subr.mxu0 0.0
        %4029 = vmatpush1.msra.mxu0 %v3981
        %4030 = vmatprep.subr.mxu0 0.0
        %4031 = vmatpush1.msra.mxu0 %v3983
        %4032 = vmatprep.subr.mxu0 0.0
        %4033 = vmatpush1.msra.mxu0 0.0
        %4034 = vmatprep.subr.mxu0 0.0
        %4035 = vmatpush1.msra.mxu0 0.0
        %4036 = vmatprep.subr.mxu0 0.0
        %4037 = vmatpush1.msra.mxu0 0.0
        %4038 = vmatprep.subr.mxu0 0.0
        %4039 = vmatpush1.msra.mxu0 0.0
        %4040 = vmatprep.subr.mxu0 0.0
        %4041 = vmatpush1.msra.mxu0 0.0
        %4042 = vmatprep.subr.mxu0 0.0
        %4043 = vmatpush1.msra.mxu0 0.0
        %4044 = vmatprep.subr.mxu0 0.0
        %4045 = vmatpush1.msra.mxu0 0.0
        %4046 = vmatprep.subr.mxu0 0.0
        %4047 = vmatpush1.msra.mxu0 0.0
        %4048 = vmatprep.subr.mxu0 0.0
        %4049 = vmatpush1.msra.mxu0 0.0
        %4050 = vmatprep.subr.mxu0 0.0
        %4051 = vmatpush1.msra.mxu0 0.0
        %4052 = vmatprep.subr.mxu0 0.0
        %4053 = vmatpush1.msra.mxu0 0.0
        %4054 = vmatprep.subr.mxu0 0.0
        %4055 = vmatpush1.msra.mxu0 0.0
        %4056 = vmatprep.subr.mxu0 0.0
        %4057 = vmatpush1.msra.mxu0 0.0
        %4058 = vmatprep.subr.mxu0 0.0
        %4059 = vmatpush1.msra.mxu0 0.0
        %4060 = vmatprep.subr.mxu0 0.0
        %4061 = vmatpush1.msra.mxu0 0.0
        %4062 = vmatprep.subr.mxu0 0.0
        %4063 = vmatpush1.msra.mxu0 0.0
        %4064 = vmatprep.subr.mxu0 0.0
        %4065 = vmatpush1.msra.mxu0 0.0
        %4066 = vmatprep.subr.mxu0 0.0
        %4067 = vmatpush1.msra.mxu0 0.0
        %4068 = vmatprep.subr.mxu0 0.0
        %4069 = vmatpush1.msra.mxu0 0.0
        %4070 = vmatprep.subr.mxu0 0.0
        %4071 = vmatpush1.msra.mxu0 0.0
        %4072 = vmatprep.subr.mxu0 0.0
        %4073 = vmatpush1.msra.mxu0 0.0
        %4074 = vmatprep.subr.mxu0 0.0
        %4075 = vmatpush1.msra.mxu0 0.0
        %4076 = vmatprep.subr.mxu0 0.0
        %4077 = vmatpush1.msra.mxu0 0.0
        %4078 = vmatprep.subr.mxu0 0.0
        %4079 = vmatpush1.msra.mxu0 0.0
        %4080 = vmatprep.mubr.f32.mxu0 0.0
        %4081 = vmatmul.mubr.f32.gmra.mrb[0].mxu0 %v3993
        %v4082 = vpop.f32.mrb[0].mxu0
        %v4083 = vadd.f32 0.0, %v4082
        %v4084 = vpop.f32.mrb[0].mxu0
        %4085 = vmatprep.mubr.f32.mxu0 0.0
        %4086 = vmatmul.mubr.f32.gmra.mrb[0].mxu0 %v3996
        %v4087 = vpop.f32.mrb[0].mxu0
        %v4088 = vadd.f32 0.0, %v4087
        %v4089 = vpop.f32.mrb[0].mxu0
        %4090 = vmatprep.mubr.f32.mxu0 0.0
        %4091 = vmatmul.mubr.f32.gmra.mrb[0].mxu0 %v3999
        %v4092 = vpop.f32.mrb[0].mxu0
        %v4093 = vadd.f32 0.0, %v4092
        %v4094 = vpop.f32.mrb[0].mxu0
        %4095 = vmatprep.mubr.f32.mxu0 0.0
        %4096 = vmatmul.mubr.f32.gmra.mrb[0].mxu0 %v4002
        %v4097 = vpop.f32.mrb[0].mxu0
        %v4098 = vadd.f32 0.0, %v4097
        %v4099 = vpop.f32.mrb[0].mxu0
        %4100 = vmatprep.mubr.f32.mxu0 0.0
        %4101 = vmatmul.mubr.f32.gmra.mrb[0].mxu0 %v4005
        %v4102 = vpop.f32.mrb[0].mxu0
        %v4103 = vadd.f32 0.0, %v4102
        %v4104 = vpop.f32.mrb[0].mxu0
        %4105 = vmatprep.mubr.f32.mxu0 0.0
        %4106 = vmatmul.mubr.f32.gmra.mrb[0].mxu0 %v4008
        %v4107 = vpop.f32.mrb[0].mxu0
        %v4108 = vadd.f32 0.0, %v4107
        %v4109 = vpop.f32.mrb[0].mxu0
        %4110 = vmatprep.mubr.f32.mxu0 0.0
        %4111 = vmatmul.mubr.f32.gmra.mrb[0].mxu0 %v4011
        %v4112 = vpop.f32.mrb[0].mxu0
        %v4113 = vadd.f32 0.0, %v4112
        %v4114 = vpop.f32.mrb[0].mxu0
        %4115 = vmatprep.mubr.f32.mxu0 0.0
        %4116 = vmatmul.mubr.f32.gmra.mrb[0].mxu0 %v4014
        %v4117 = vpop.f32.mrb[0].mxu0
        %v4118 = vadd.f32 0.0, %v4117
        %v4119 = vpop.f32.mrb[0].mxu0
        %4120 = vdwg.mxu0
        %4137 = vrot.lane.b32.xlu0 %v2186, 32
        %v4138 = vpop.permute.xlu0 %4137
        %4139 = vrot.lane.b32.xlu0 %v2191, 32
        %v4140 = vpop.permute.xlu0 %4139
        %4141 = vrot.lane.b32.xlu0 %v2196, 32
        %v4142 = vpop.permute.xlu0 %4141
        %4143 = vrot.lane.b32.xlu0 %v2201, 32
        %v4144 = vpop.permute.xlu0 %4143
        %4145 = vrot.lane.b32.xlu0 %v2206, 32
        %v4146 = vpop.permute.xlu0 %4145
        %4147 = vrot.lane.b32.xlu0 %v2211, 32
        %v4148 = vpop.permute.xlu0 %4147
        %4149 = vrot.lane.b32.xlu0 %v2216, 32
        %v4150 = vpop.permute.xlu0 %4149
        %4151 = vrot.lane.b32.xlu0 %v2221, 32
        %v4152 = vpop.permute.xlu0 %4151
        %4153 = vrot.lane.b32.xlu0 %v2347, 32
        %v4154 = vpop.permute.xlu0 %4153
        %4155 = vrot.lane.b32.xlu0 %v2352, 32
        %v4156 = vpop.permute.xlu0 %4155
        %4157 = vrot.lane.b32.xlu0 %v2357, 32
        %v4158 = vpop.permute.xlu0 %4157
        %4159 = vrot.lane.b32.xlu0 %v2362, 32
        %v4160 = vpop.permute.xlu0 %4159
        %4161 = vrot.lane.b32.xlu0 %v2367, 32
        %v4162 = vpop.permute.xlu0 %4161
        %4163 = vrot.lane.b32.xlu0 %v2372, 32
        %v4164 = vpop.permute.xlu0 %4163
        %4165 = vrot.lane.b32.xlu0 %v2377, 32
        %v4166 = vpop.permute.xlu0 %4165
        %4167 = vrot.lane.b32.xlu0 %v2382, 32
        %v4168 = vpop.permute.xlu0 %4167
        %4201 = vrot.lane.b32.xlu0 %v3062, 64
        %v4202 = vpop.permute.xlu0 %4201
        %4203 = vrot.lane.b32.xlu0 %v3067, 64
        %v4204 = vpop.permute.xlu0 %4203
        %4205 = vrot.lane.b32.xlu0 %v3072, 64
        %v4206 = vpop.permute.xlu0 %4205
        %4207 = vrot.lane.b32.xlu0 %v3077, 64
        %v4208 = vpop.permute.xlu0 %4207
        %4209 = vrot.lane.b32.xlu0 %v3082, 64
        %v4210 = vpop.permute.xlu0 %4209
        %4211 = vrot.lane.b32.xlu0 %v3087, 64
        %v4212 = vpop.permute.xlu0 %4211
        %4213 = vrot.lane.b32.xlu0 %v3092, 64
        %v4214 = vpop.permute.xlu0 %4213
        %4215 = vrot.lane.b32.xlu0 %v3097, 64
        %v4216 = vpop.permute.xlu0 %4215
        %4217 = vrot.lane.b32.xlu0 %v3215, 64
        %v4218 = vpop.permute.xlu0 %4217
        %4219 = vrot.lane.b32.xlu0 %v3220, 64
        %v4220 = vpop.permute.xlu0 %4219
        %4221 = vrot.lane.b32.xlu0 %v3225, 64
        %v4222 = vpop.permute.xlu0 %4221
        %4223 = vrot.lane.b32.xlu0 %v3230, 64
        %v4224 = vpop.permute.xlu0 %4223
        %4225 = vrot.lane.b32.xlu0 %v3235, 64
        %v4226 = vpop.permute.xlu0 %4225
        %4227 = vrot.lane.b32.xlu0 %v3240, 64
        %v4228 = vpop.permute.xlu0 %4227
        %4229 = vrot.lane.b32.xlu0 %v3245, 64
        %v4230 = vpop.permute.xlu0 %4229
        %4231 = vrot.lane.b32.xlu0 %v3250, 64
        %v4232 = vpop.permute.xlu0 %4231
        %4265 = vrot.lane.b32.xlu0 %v3930, 96
        %v4266 = vpop.permute.xlu0 %4265
        %4267 = vrot.lane.b32.xlu0 %v3935, 96
        %v4268 = vpop.permute.xlu0 %4267
        %4269 = vrot.lane.b32.xlu0 %v3940, 96
        %v4270 = vpop.permute.xlu0 %4269
        %4271 = vrot.lane.b32.xlu0 %v3945, 96
        %v4272 = vpop.permute.xlu0 %4271
        %4273 = vrot.lane.b32.xlu0 %v3950, 96
        %v4274 = vpop.permute.xlu0 %4273
        %4275 = vrot.lane.b32.xlu0 %v3955, 96
        %v4276 = vpop.permute.xlu0 %4275
        %4277 = vrot.lane.b32.xlu0 %v3960, 96
        %v4278 = vpop.permute.xlu0 %4277
        %4279 = vrot.lane.b32.xlu0 %v3965, 96
        %v4280 = vpop.permute.xlu0 %4279
        %4281 = vrot.lane.b32.xlu0 %v4083, 96
        %v4282 = vpop.permute.xlu0 %4281
        %4283 = vrot.lane.b32.xlu0 %v4088, 96
        %v4284 = vpop.permute.xlu0 %4283
        %4285 = vrot.lane.b32.xlu0 %v4093, 96
        %v4286 = vpop.permute.xlu0 %4285
        %4287 = vrot.lane.b32.xlu0 %v4098, 96
        %v4288 = vpop.permute.xlu0 %4287
        %4289 = vrot.lane.b32.xlu0 %v4103, 96
        %v4290 = vpop.permute.xlu0 %4289
        %4291 = vrot.lane.b32.xlu0 %v4108, 96
        %v4292 = vpop.permute.xlu0 %4291
        %4293 = vrot.lane.b32.xlu0 %v4113, 96
        %v4294 = vpop.permute.xlu0 %4293
        %4295 = vrot.lane.b32.xlu0 %v4118, 96
        %v4296 = vpop.permute.xlu0 %4295
        %v4313 = vsel %vm711, %v1334, %v4138
        %v4314 = vsel %vm711, %v1339, %v4140
        %v4315 = vsel %vm711, %v1344, %v4142
        %v4316 = vsel %vm711, %v1349, %v4144
        %v4317 = vsel %vm711, %v1354, %v4146
        %v4318 = vsel %vm711, %v1359, %v4148
        %v4319 = vsel %vm711, %v1364, %v4150
        %v4320 = vsel %vm711, %v1369, %v4152
        %v4321 = vsel %vm711, %v1463, %v4154
        %v4322 = vsel %vm711, %v1468, %v4156
        %v4323 = vsel %vm711, %v1473, %v4158
        %v4324 = vsel %vm711, %v1478, %v4160
        %v4325 = vsel %vm711, %v1483, %v4162
        %v4326 = vsel %vm711, %v1488, %v4164
        %v4327 = vsel %vm711, %v1493, %v4166
        %v4328 = vsel %vm711, %v1498, %v4168
        %v4329 = vsel %vm1018, %v4313, %v4202
        %v4330 = vsel %vm1018, %v4314, %v4204
        %v4331 = vsel %vm1018, %v4315, %v4206
        %v4332 = vsel %vm1018, %v4316, %v4208
        %v4333 = vsel %vm1018, %v4317, %v4210
        %v4334 = vsel %vm1018, %v4318, %v4212
        %v4335 = vsel %vm1018, %v4319, %v4214
        %v4336 = vsel %vm1018, %v4320, %v4216
        %v4337 = vsel %vm1018, %v4321, %v4218
        %v4338 = vsel %vm1018, %v4322, %v4220
        %v4339 = vsel %vm1018, %v4323, %v4222
        %v4340 = vsel %vm1018, %v4324, %v4224
        %v4341 = vsel %vm1018, %v4325, %v4226
        %v4342 = vsel %vm1018, %v4326, %v4228
        %v4343 = vsel %vm1018, %v4327, %v4230
        %v4344 = vsel %vm1018, %v4328, %v4232
        %vm4345 = vcmask 785408
        %v4346 = vsel %vm4345, %v4329, %v4266
        %v4347 = vsel %vm4345, %v4330, %v4268
        %v4348 = vsel %vm4345, %v4331, %v4270
        %v4349 = vsel %vm4345, %v4332, %v4272
        %v4350 = vsel %vm4345, %v4333, %v4274
        %v4351 = vsel %vm4345, %v4334, %v4276
        %v4352 = vsel %vm4345, %v4335, %v4278
        %v4353 = vsel %vm4345, %v4336, %v4280
        %v4354 = vsel %vm4345, %v4337, %v4282
        %v4355 = vsel %vm4345, %v4338, %v4284
        %v4356 = vsel %vm4345, %v4339, %v4286
        %v4357 = vsel %vm4345, %v4340, %v4288
        %v4358 = vsel %vm4345, %v4341, %v4290
        %v4359 = vsel %vm4345, %v4342, %v4292
        %v4360 = vsel %vm4345, %v4343, %v4294
        %v4361 = vsel %vm4345, %v4344, %v4296
        %v4362 = vld [vmem:[#allocation8] sm:$0xff]
        %v4363 = vld [vmem:[#allocation8 + $0x8] sm:$0xff]
        %v4364 = vld [vmem:[#allocation8 + $0x10] sm:$0xff]
        %v4365 = vld [vmem:[#allocation8 + $0x18] sm:$0xff]
        %v4366 = vld [vmem:[#allocation8 + $0x20] sm:$0xff]
        %v4367 = vld [vmem:[#allocation8 + $0x28] sm:$0xff]
        %v4368 = vld [vmem:[#allocation8 + $0x30] sm:$0xff]
        %v4369 = vld [vmem:[#allocation8 + $0x38] sm:$0xff]
        %v4370 = vld [vmem:[#allocation8 + $0x40] sm:$0xff]
        %v4371 = vld [vmem:[#allocation8 + $0x48] sm:$0xff]
        %v4372 = vld [vmem:[#allocation8 + $0x50] sm:$0xff]
        %v4373 = vld [vmem:[#allocation8 + $0x58] sm:$0xff]
        %v4374 = vld [vmem:[#allocation8 + $0x60] sm:$0xff]
        %v4375 = vld [vmem:[#allocation8 + $0x68] sm:$0xff]
        %v4376 = vld [vmem:[#allocation8 + $0x70] sm:$0xff]
        %v4377 = vld [vmem:[#allocation8 + $0x78] sm:$0xff]
        %4378 = vmatprep.subr.mxu0 0.0
        %4379 = vmatpush1.msra.mxu0 %v4362
        %4380 = vmatprep.subr.mxu0 0.0
        %4381 = vmatpush1.msra.mxu0 %v4363
        %4382 = vmatprep.subr.mxu0 0.0
        %4383 = vmatpush1.msra.mxu0 %v4364
        %4384 = vmatprep.subr.mxu0 0.0
        %4385 = vmatpush1.msra.mxu0 %v4365
        %4386 = vmatprep.subr.mxu0 0.0
        %4387 = vmatpush1.msra.mxu0 %v4366
        %4388 = vmatprep.subr.mxu0 0.0
        %4389 = vmatpush1.msra.mxu0 %v4367
        %4390 = vmatprep.subr.mxu0 0.0
        %4391 = vmatpush1.msra.mxu0 %v4368
        %4392 = vmatprep.subr.mxu0 0.0
        %4393 = vmatpush1.msra.mxu0 %v4369
        %4394 = vmatprep.subr.mxu0 0.0
        %4395 = vmatpush1.msra.mxu0 %v4370
        %4396 = vmatprep.subr.mxu0 0.0
        %4397 = vmatpush1.msra.mxu0 %v4371
        %4398 = vmatprep.subr.mxu0 0.0
        %4399 = vmatpush1.msra.mxu0 %v4372
        %4400 = vmatprep.subr.mxu0 0.0
        %4401 = vmatpush1.msra.mxu0 %v4373
        %4402 = vmatprep.subr.mxu0 0.0
        %4403 = vmatpush1.msra.mxu0 %v4374
        %4404 = vmatprep.subr.mxu0 0.0
        %4405 = vmatpush1.msra.mxu0 %v4375
        %4406 = vmatprep.subr.mxu0 0.0
        %4407 = vmatpush1.msra.mxu0 %v4376
        %4408 = vmatprep.subr.mxu0 0.0
        %4409 = vmatpush1.msra.mxu0 %v4377
        %4410 = vmatprep.subr.mxu0 0.0
        %4411 = vmatpush1.msra.mxu0 0.0
        %4412 = vmatprep.subr.mxu0 0.0
        %4413 = vmatpush1.msra.mxu0 0.0
        %4414 = vmatprep.subr.mxu0 0.0
        %4415 = vmatpush1.msra.mxu0 0.0
        %4416 = vmatprep.subr.mxu0 0.0
        %4417 = vmatpush1.msra.mxu0 0.0
        %4418 = vmatprep.subr.mxu0 0.0
        %4419 = vmatpush1.msra.mxu0 0.0
        %4420 = vmatprep.subr.mxu0 0.0
        %4421 = vmatpush1.msra.mxu0 0.0
        %4422 = vmatprep.subr.mxu0 0.0
        %4423 = vmatpush1.msra.mxu0 0.0
        %4424 = vmatprep.subr.mxu0 0.0
        %4425 = vmatpush1.msra.mxu0 0.0
        %4426 = vmatprep.subr.mxu0 0.0
        %4427 = vmatpush1.msra.mxu0 0.0
        %4428 = vmatprep.subr.mxu0 0.0
        %4429 = vmatpush1.msra.mxu0 0.0
        %4430 = vmatprep.subr.mxu0 0.0
        %4431 = vmatpush1.msra.mxu0 0.0
        %4432 = vmatprep.subr.mxu0 0.0
        %4433 = vmatpush1.msra.mxu0 0.0
        %4434 = vmatprep.subr.mxu0 0.0
        %4435 = vmatpush1.msra.mxu0 0.0
        %4436 = vmatprep.subr.mxu0 0.0
        %4437 = vmatpush1.msra.mxu0 0.0
        %4438 = vmatprep.subr.mxu0 0.0
        %4439 = vmatpush1.msra.mxu0 0.0
        %4440 = vmatprep.subr.mxu0 0.0
        %4441 = vmatpush1.msra.mxu0 0.0
        %4442 = vmatprep.mubr.f32.mxu0 0.0
        %4443 = vmatmul.mubr.f32.gmra.mrb[0].mxu0 %v4346
        %v4444 = vpop.f32.mrb[0].mxu0
        %v4445 = vadd.f32 0.0, %v4444
        %v4446 = vpop.f32.mrb[0].mxu0
        %4447 = vmatprep.mubr.f32.mxu0 0.0
        %4448 = vmatmul.mubr.f32.gmra.mrb[0].mxu0 %v4347
        %v4449 = vpop.f32.mrb[0].mxu0
        %v4450 = vadd.f32 0.0, %v4449
        %v4451 = vpop.f32.mrb[0].mxu0
        %4452 = vmatprep.mubr.f32.mxu0 0.0
        %4453 = vmatmul.mubr.f32.gmra.mrb[0].mxu0 %v4348
        %v4454 = vpop.f32.mrb[0].mxu0
        %v4455 = vadd.f32 0.0, %v4454
        %v4456 = vpop.f32.mrb[0].mxu0
        %4457 = vmatprep.mubr.f32.mxu0 0.0
        %4458 = vmatmul.mubr.f32.gmra.mrb[0].mxu0 %v4349
        %v4459 = vpop.f32.mrb[0].mxu0
        %v4460 = vadd.f32 0.0, %v4459
        %v4461 = vpop.f32.mrb[0].mxu0
        %4462 = vmatprep.mubr.f32.mxu0 0.0
        %4463 = vmatmul.mubr.f32.gmra.mrb[0].mxu0 %v4350
        %v4464 = vpop.f32.mrb[0].mxu0
        %v4465 = vadd.f32 0.0, %v4464
        %v4466 = vpop.f32.mrb[0].mxu0
        %4467 = vmatprep.mubr.f32.mxu0 0.0
        %4468 = vmatmul.mubr.f32.gmra.mrb[0].mxu0 %v4351
        %v4469 = vpop.f32.mrb[0].mxu0
        %v4470 = vadd.f32 0.0, %v4469
        %v4471 = vpop.f32.mrb[0].mxu0
        %4472 = vmatprep.mubr.f32.mxu0 0.0
        %4473 = vmatmul.mubr.f32.gmra.mrb[0].mxu0 %v4352
        %v4474 = vpop.f32.mrb[0].mxu0
        %v4475 = vadd.f32 0.0, %v4474
        %v4476 = vpop.f32.mrb[0].mxu0
        %4477 = vmatprep.mubr.f32.mxu0 0.0
        %4478 = vmatmul.mubr.f32.gmra.mrb[0].mxu0 %v4353
        %v4479 = vpop.f32.mrb[0].mxu0
        %v4480 = vadd.f32 0.0, %v4479
        %v4481 = vpop.f32.mrb[0].mxu0
        %4482 = vmatprep.mubr.f32.mxu0 0.0
        %4483 = vmatmul.mubr.f32.gmra.mrb[0].mxu0 %v4354
        %v4484 = vpop.f32.mrb[0].mxu0
        %v4485 = vadd.f32 0.0, %v4484
        %v4486 = vpop.f32.mrb[0].mxu0
        %4487 = vmatprep.mubr.f32.mxu0 0.0
        %4488 = vmatmul.mubr.f32.gmra.mrb[0].mxu0 %v4355
        %v4489 = vpop.f32.mrb[0].mxu0
        %v4490 = vadd.f32 0.0, %v4489
        %v4491 = vpop.f32.mrb[0].mxu0
        %4492 = vmatprep.mubr.f32.mxu0 0.0
        %4493 = vmatmul.mubr.f32.gmra.mrb[0].mxu0 %v4356
        %v4494 = vpop.f32.mrb[0].mxu0
        %v4495 = vadd.f32 0.0, %v4494
        %v4496 = vpop.f32.mrb[0].mxu0
        %4497 = vmatprep.mubr.f32.mxu0 0.0
        %4498 = vmatmul.mubr.f32.gmra.mrb[0].mxu0 %v4357
        %v4499 = vpop.f32.mrb[0].mxu0
        %v4500 = vadd.f32 0.0, %v4499
        %v4501 = vpop.f32.mrb[0].mxu0
        %4502 = vmatprep.mubr.f32.mxu0 0.0
        %4503 = vmatmul.mubr.f32.gmra.mrb[0].mxu0 %v4358
        %v4504 = vpop.f32.mrb[0].mxu0
        %v4505 = vadd.f32 0.0, %v4504
        %v4506 = vpop.f32.mrb[0].mxu0
        %4507 = vmatprep.mubr.f32.mxu0 0.0
        %4508 = vmatmul.mubr.f32.gmra.mrb[0].mxu0 %v4359
        %v4509 = vpop.f32.mrb[0].mxu0
        %v4510 = vadd.f32 0.0, %v4509
        %v4511 = vpop.f32.mrb[0].mxu0
        %4512 = vmatprep.mubr.f32.mxu0 0.0
        %4513 = vmatmul.mubr.f32.gmra.mrb[0].mxu0 %v4360
        %v4514 = vpop.f32.mrb[0].mxu0
        %v4515 = vadd.f32 0.0, %v4514
        %v4516 = vpop.f32.mrb[0].mxu0
        %4517 = vmatprep.mubr.f32.mxu0 0.0
        %4518 = vmatmul.mubr.f32.gmra.mrb[0].mxu0 %v4361
        %v4519 = vpop.f32.mrb[0].mxu0
        %v4520 = vadd.f32 0.0, %v4519
        %v4521 = vpop.f32.mrb[0].mxu0
        %4522 = vdwg.mxu0
        %v4523 = vadd.f32 %v341, %v4445
        %v4524 = vadd.f32 %v342, %v4450
        %v4525 = vadd.f32 %v343, %v4455
        %v4526 = vadd.f32 %v344, %v4460
        %v4527 = vadd.f32 %v345, %v4465
        %v4528 = vadd.f32 %v346, %v4470
        %v4529 = vadd.f32 %v347, %v4475
        %v4530 = vadd.f32 %v348, %v4480
        %v4531 = vadd.f32 %v349, %v4485
        %v4532 = vadd.f32 %v350, %v4490
        %v4533 = vadd.f32 %v351, %v4495
        %v4534 = vadd.f32 %v352, %v4500
        %v4535 = vadd.f32 %v353, %v4505
        %v4536 = vadd.f32 %v354, %v4510
        %v4537 = vadd.f32 %v355, %v4515
        %v4538 = vadd.f32 %v356, %v4520
        %4539 = vadd.xlane.f32.xlu0 %v4523
        %v4540 = vpop.xlane.xlu0 %4539
        %4541 = vadd.xlane.f32.xlu0 %v4524
        %v4542 = vpop.xlane.xlu0 %4541
        %4543 = vadd.xlane.f32.xlu0 %v4525
        %v4544 = vpop.xlane.xlu0 %4543
        %4545 = vadd.xlane.f32.xlu0 %v4526
        %v4546 = vpop.xlane.xlu0 %4545
        %4547 = vadd.xlane.f32.xlu0 %v4527
        %v4548 = vpop.xlane.xlu0 %4547
        %4549 = vadd.xlane.f32.xlu0 %v4528
        %v4550 = vpop.xlane.xlu0 %4549
        %4551 = vadd.xlane.f32.xlu0 %v4529
        %v4552 = vpop.xlane.xlu0 %4551
        %4553 = vadd.xlane.f32.xlu0 %v4530
        %v4554 = vpop.xlane.xlu0 %4553
        %4555 = vadd.xlane.f32.xlu0 %v4531
        %v4556 = vpop.xlane.xlu0 %4555
        %4557 = vadd.xlane.f32.xlu0 %v4532
        %v4558 = vpop.xlane.xlu0 %4557
        %4559 = vadd.xlane.f32.xlu0 %v4533
        %v4560 = vpop.xlane.xlu0 %4559
        %4561 = vadd.xlane.f32.xlu0 %v4534
        %v4562 = vpop.xlane.xlu0 %4561
        %4563 = vadd.xlane.f32.xlu0 %v4535
        %v4564 = vpop.xlane.xlu0 %4563
        %4565 = vadd.xlane.f32.xlu0 %v4536
        %v4566 = vpop.xlane.xlu0 %4565
        %4567 = vadd.xlane.f32.xlu0 %v4537
        %v4568 = vpop.xlane.xlu0 %4567
        %4569 = vadd.xlane.f32.xlu0 %v4538
        %v4570 = vpop.xlane.xlu0 %4569
        %v4571 = vrcp.pop 128.0
        %v4572 = vmul.f32 %v4540, %v4571
        %v4573 = vmul.f32 %v4542, %v4571
        %v4574 = vmul.f32 %v4544, %v4571
        %v4575 = vmul.f32 %v4546, %v4571
        %v4576 = vmul.f32 %v4548, %v4571
        %v4577 = vmul.f32 %v4550, %v4571
        %v4578 = vmul.f32 %v4552, %v4571
        %v4579 = vmul.f32 %v4554, %v4571
        %v4580 = vmul.f32 %v4556, %v4571
        %v4581 = vmul.f32 %v4558, %v4571
        %v4582 = vmul.f32 %v4560, %v4571
        %v4583 = vmul.f32 %v4562, %v4571
        %v4584 = vmul.f32 %v4564, %v4571
        %v4585 = vmul.f32 %v4566, %v4571
        %v4586 = vmul.f32 %v4568, %v4571
        %v4587 = vmul.f32 %v4570, %v4571
        %v4588 = vsub.f32 %v4523, %v4572
        %v4589 = vsub.f32 %v4524, %v4573
        %v4590 = vsub.f32 %v4525, %v4574
        %v4591 = vsub.f32 %v4526, %v4575
        %v4592 = vsub.f32 %v4527, %v4576
        %v4593 = vsub.f32 %v4528, %v4577
        %v4594 = vsub.f32 %v4529, %v4578
        %v4595 = vsub.f32 %v4530, %v4579
        %v4596 = vsub.f32 %v4531, %v4580
        %v4597 = vsub.f32 %v4532, %v4581
        %v4598 = vsub.f32 %v4533, %v4582
        %v4599 = vsub.f32 %v4534, %v4583
        %v4600 = vsub.f32 %v4535, %v4584
        %v4601 = vsub.f32 %v4536, %v4585
        %v4602 = vsub.f32 %v4537, %v4586
        %v4603 = vsub.f32 %v4538, %v4587
        %v4604 = vmul.f32 %v4588, %v4588
        %v4605 = vmul.f32 %v4589, %v4589
        %v4606 = vmul.f32 %v4590, %v4590
        %v4607 = vmul.f32 %v4591, %v4591
        %v4608 = vmul.f32 %v4592, %v4592
        %v4609 = vmul.f32 %v4593, %v4593
        %v4610 = vmul.f32 %v4594, %v4594
        %v4611 = vmul.f32 %v4595, %v4595
        %v4612 = vmul.f32 %v4596, %v4596
        %v4613 = vmul.f32 %v4597, %v4597
        %v4614 = vmul.f32 %v4598, %v4598
        %v4615 = vmul.f32 %v4599, %v4599
        %v4616 = vmul.f32 %v4600, %v4600
        %v4617 = vmul.f32 %v4601, %v4601
        %v4618 = vmul.f32 %v4602, %v4602
        %v4619 = vmul.f32 %v4603, %v4603
        %4620 = vadd.xlane.f32.xlu0 %v4604
        %v4621 = vpop.xlane.xlu0 %4620
        %4622 = vadd.xlane.f32.xlu0 %v4605
        %v4623 = vpop.xlane.xlu0 %4622
        %4624 = vadd.xlane.f32.xlu0 %v4606
        %v4625 = vpop.xlane.xlu0 %4624
        %4626 = vadd.xlane.f32.xlu0 %v4607
        %v4627 = vpop.xlane.xlu0 %4626
        %4628 = vadd.xlane.f32.xlu0 %v4608
        %v4629 = vpop.xlane.xlu0 %4628
        %4630 = vadd.xlane.f32.xlu0 %v4609
        %v4631 = vpop.xlane.xlu0 %4630
        %4632 = vadd.xlane.f32.xlu0 %v4610
        %v4633 = vpop.xlane.xlu0 %4632
        %4634 = vadd.xlane.f32.xlu0 %v4611
        %v4635 = vpop.xlane.xlu0 %4634
        %4636 = vadd.xlane.f32.xlu0 %v4612
        %v4637 = vpop.xlane.xlu0 %4636
        %4638 = vadd.xlane.f32.xlu0 %v4613
        %v4639 = vpop.xlane.xlu0 %4638
        %4640 = vadd.xlane.f32.xlu0 %v4614
        %v4641 = vpop.xlane.xlu0 %4640
        %4642 = vadd.xlane.f32.xlu0 %v4615
        %v4643 = vpop.xlane.xlu0 %4642
        %4644 = vadd.xlane.f32.xlu0 %v4616
        %v4645 = vpop.xlane.xlu0 %4644
        %4646 = vadd.xlane.f32.xlu0 %v4617
        %v4647 = vpop.xlane.xlu0 %4646
        %4648 = vadd.xlane.f32.xlu0 %v4618
        %v4649 = vpop.xlane.xlu0 %4648
        %4650 = vadd.xlane.f32.xlu0 %v4619
        %v4651 = vpop.xlane.xlu0 %4650
        %v4652 = vmul.f32 %v4621, %v4571
        %v4653 = vmul.f32 %v4623, %v4571
        %v4654 = vmul.f32 %v4625, %v4571
        %v4655 = vmul.f32 %v4627, %v4571
        %v4656 = vmul.f32 %v4629, %v4571
        %v4657 = vmul.f32 %v4631, %v4571
        %v4658 = vmul.f32 %v4633, %v4571
        %v4659 = vmul.f32 %v4635, %v4571
        %v4660 = vmul.f32 %v4637, %v4571
        %v4661 = vmul.f32 %v4639, %v4571
        %v4662 = vmul.f32 %v4641, %v4571
        %v4663 = vmul.f32 %v4643, %v4571
        %v4664 = vmul.f32 %v4645, %v4571
        %v4665 = vmul.f32 %v4647, %v4571
        %v4666 = vmul.f32 %v4649, %v4571
        %v4667 = vmul.f32 %v4651, %v4571
        %v4668 = vadd.f32 %v4652, 1e-05
        %v4669 = vadd.f32 %v4653, 1e-05
        %v4670 = vadd.f32 %v4654, 1e-05
        %v4671 = vadd.f32 %v4655, 1e-05
        %v4672 = vadd.f32 %v4656, 1e-05
        %v4673 = vadd.f32 %v4657, 1e-05
        %v4674 = vadd.f32 %v4658, 1e-05
        %v4675 = vadd.f32 %v4659, 1e-05
        %v4676 = vadd.f32 %v4660, 1e-05
        %v4677 = vadd.f32 %v4661, 1e-05
        %v4678 = vadd.f32 %v4662, 1e-05
        %v4679 = vadd.f32 %v4663, 1e-05
        %v4680 = vadd.f32 %v4664, 1e-05
        %v4681 = vadd.f32 %v4665, 1e-05
        %v4682 = vadd.f32 %v4666, 1e-05
        %v4683 = vadd.f32 %v4667, 1e-05
        %v4684 = vrsqrt.pop %v4668
        %v4685 = vrsqrt.pop %v4669
        %v4686 = vrsqrt.pop %v4670
        %v4687 = vrsqrt.pop %v4671
        %v4688 = vrsqrt.pop %v4672
        %v4689 = vrsqrt.pop %v4673
        %v4690 = vrsqrt.pop %v4674
        %v4691 = vrsqrt.pop %v4675
        %v4692 = vrsqrt.pop %v4676
        %v4693 = vrsqrt.pop %v4677
        %v4694 = vrsqrt.pop %v4678
        %v4695 = vrsqrt.pop %v4679
        %v4696 = vrsqrt.pop %v4680
        %v4697 = vrsqrt.pop %v4681
        %v4698 = vrsqrt.pop %v4682
        %v4699 = vrsqrt.pop %v4683
        %v4700 = vmul.f32 %v4588, %v4684
        %v4701 = vmul.f32 %v4589, %v4685
        %v4702 = vmul.f32 %v4590, %v4686
        %v4703 = vmul.f32 %v4591, %v4687
        %v4704 = vmul.f32 %v4592, %v4688
        %v4705 = vmul.f32 %v4593, %v4689
        %v4706 = vmul.f32 %v4594, %v4690
        %v4707 = vmul.f32 %v4595, %v4691
        %v4708 = vmul.f32 %v4596, %v4692
        %v4709 = vmul.f32 %v4597, %v4693
        %v4710 = vmul.f32 %v4598, %v4694
        %v4711 = vmul.f32 %v4599, %v4695
        %v4712 = vmul.f32 %v4600, %v4696
        %v4713 = vmul.f32 %v4601, %v4697
        %v4714 = vmul.f32 %v4602, %v4698
        %v4715 = vmul.f32 %v4603, %v4699
        %v4716 = vld [vmem:[%s4] sm:$0x1]
        %v4718 = vlaneseq
        %v4719 = vshrl.u32 %v4718, 7
        %v4720 = vsub.s32 0, %v4719
        %v4721 = vrot.slane %v4716, %v4720
        %v4723 = vmul.f32 %v4700, %v4721
        %v4724 = vmul.f32 %v4701, %v4721
        %v4725 = vmul.f32 %v4702, %v4721
        %v4726 = vmul.f32 %v4703, %v4721
        %v4727 = vmul.f32 %v4704, %v4721
        %v4728 = vmul.f32 %v4705, %v4721
        %v4729 = vmul.f32 %v4706, %v4721
        %v4730 = vmul.f32 %v4707, %v4721
        %v4731 = vmul.f32 %v4708, %v4721
        %v4732 = vmul.f32 %v4709, %v4721
        %v4733 = vmul.f32 %v4710, %v4721
        %v4734 = vmul.f32 %v4711, %v4721
        %v4735 = vmul.f32 %v4712, %v4721
        %v4736 = vmul.f32 %v4713, %v4721
        %v4737 = vmul.f32 %v4714, %v4721
        %v4738 = vmul.f32 %v4715, %v4721
        %v4739 = vld [vmem:[%s5] sm:$0x1]
        %v4741 = vlaneseq
        %v4742 = vshrl.u32 %v4741, 7
        %v4743 = vsub.s32 0, %v4742
        %v4744 = vrot.slane %v4739, %v4743
        %v4746 = vadd.f32 %v4723, %v4744
        %v4747 = vadd.f32 %v4724, %v4744
        %v4748 = vadd.f32 %v4725, %v4744
        %v4749 = vadd.f32 %v4726, %v4744
        %v4750 = vadd.f32 %v4727, %v4744
        %v4751 = vadd.f32 %v4728, %v4744
        %v4752 = vadd.f32 %v4729, %v4744
        %v4753 = vadd.f32 %v4730, %v4744
        %v4754 = vadd.f32 %v4731, %v4744
        %v4755 = vadd.f32 %v4732, %v4744
        %v4756 = vadd.f32 %v4733, %v4744
        %v4757 = vadd.f32 %v4734, %v4744
        %v4758 = vadd.f32 %v4735, %v4744
        %v4759 = vadd.f32 %v4736, %v4744
        %v4760 = vadd.f32 %v4737, %v4744
        %v4761 = vadd.f32 %v4738, %v4744
        %4762 = vst [vmem:[%s314] sm:$0xff] %v4746
        %4763 = vst [vmem:[%s314 + $0x8] sm:$0xff] %v4747
        %4764 = vst [vmem:[%s314 + $0x10] sm:$0xff] %v4748
        %4765 = vst [vmem:[%s314 + $0x18] sm:$0xff] %v4749
        %4766 = vst [vmem:[%s314 + $0x20] sm:$0xff] %v4750
        %4767 = vst [vmem:[%s314 + $0x28] sm:$0xff] %v4751
        %4768 = vst [vmem:[%s314 + $0x30] sm:$0xff] %v4752
        %4769 = vst [vmem:[%s314 + $0x38] sm:$0xff] %v4753
        %4770 = vst [vmem:[%s314 + $0x40] sm:$0xff] %v4754
        %4771 = vst [vmem:[%s314 + $0x48] sm:$0xff] %v4755
        %4772 = vst [vmem:[%s314 + $0x50] sm:$0xff] %v4756
        %4773 = vst [vmem:[%s314 + $0x58] sm:$0xff] %v4757
        %4774 = vst [vmem:[%s314 + $0x60] sm:$0xff] %v4758
        %4775 = vst [vmem:[%s314 + $0x68] sm:$0xff] %v4759
        %4776 = vst [vmem:[%s314 + $0x70] sm:$0xff] %v4760
        %4777 = vst [vmem:[%s314 + $0x78] sm:$0xff] %v4761
        %s4778 = sand.u32 %s164, 1
        %s4779 = scalar_lea.sflag [#allocation4], %s4778
        %s4780 = sand.u32 %s164, 1
        %s4781 = smul.addr %s4780, 128
        %s4782 = scalar_lea.vmem [#allocation10], %s4781
        // Predicated region
        $region61: #{tpu_custom_call.1} parent=43 // pred_check
          %p4783 = pneg %p174
        $region62: #{tpu_custom_call.1} parent=43 // pred_check_branch
          %4785 = sbr.rel (%p4783) target = $region64
        $region63: #{tpu_custom_call.1} parent=43 // pred_region
          %s4786 = smul.u32 2, %s25
          %s4788 = ssub.s32 2048, 2048
          %4789 = vsyncadd %s4779, %s4788
          %s4790 = smul.addr %s4786, 8
          %s4791 = smul.addr %s4790, 128
          %s4792 = scalar_lea.hbm %s6, %s4791
          %s4793 = sshll.u32 %s4782, 4
          %s4794 = int_to_ptr.vmem [resolvable:$true] %s4793
          %4799 = dma.vmem_to_hbm [thread:$0]  %s4794, 2048, %s4792, %s4779, 128, 128, 8
        $region64: #{tpu_custom_call.1} parent=43 // pred_fallthru
          _
      $region44: #{tpu_custom_call.1} parent=5 // pred_fallthru
        _
      %p4800 = scmp.le.s32.totalorder 2, %s20
      // Predicated region
      $region65: #{tpu_custom_call.1} parent=5 // pred_check
        %p4801 = pneg %p4800
      $region66: #{tpu_custom_call.1} parent=5 // pred_check_branch
        %4803 = sbr.rel (%p4801) target = $region68
      $region67: #{tpu_custom_call.1} parent=5 // pred_region
        %s4804 = ssub.s32 %s20, 2
        // Predicated region
        $region69: #{tpu_custom_call.1} parent=67 // pred_check
          %p4805 = pneg %p180
        $region70: #{tpu_custom_call.1} parent=67 // pred_check_branch
          %4807 = sbr.rel (%p4805) target = $region72
        $region71: #{tpu_custom_call.1} parent=67 // pred_region
          %s4808 = sand.u32 %s165, 1
          %s4809 = scalar_lea.sflag [#allocation4], %s4808
          %s4810 = sand.u32 %s165, 1
          %s4811 = smul.addr %s4810, 128
          %s4812 = scalar_lea.vmem [#allocation10], %s4811
          %4813 = dma.done %s4809, 2048
        $region72: #{tpu_custom_call.1} parent=67 // pred_fallthru
          _
      $region68: #{tpu_custom_call.1} parent=5 // pred_fallthru
        _
    $region6: #{tpu_custom_call.1} parent=1 // loop_footer
      %s24 = sadd.s32 1, %s20
    $region7: #{tpu_custom_call.1} parent=1 // loop_footer_branch
      %19 = sbr.rel target = $region3
    $region8: #{tpu_custom_call.1} parent=1 // loop_exit
      _
    %4814 = vsyncpa [#allocation3], 1
    %s4815 = scalar_lea.sflag [#allocation3], 1
    %4816 = vsyncpa %s4815, 1
    %4817 = vsyncpa [#allocation6], 1
    %4818 = vsyncpa [#allocation9], 1
    %4819 = vsyncpa [#allocation4], 1
    %s4820 = scalar_lea.sflag [#allocation4], 1
    %4821 = vsyncpa %s4820, 1

</llo_original>
